<compile_context>
chip_gen: v5e
topology: v5e:2x2
jax: 0.10.0
libtpu: 0.0.40
codegen_flags: <defaults>
</compile_context>

<pallas_src>
import jax
import jax.numpy as jnp
from jax import lax
from jax.experimental import pallas as pl
from jax.experimental.pallas import tpu as pltpu

NUM_CLASSES = 10
NUM_CLASSES_PAD = 128        # lane-dense output width (cropped to 10 outside)
EMBED_DIM = 2048             # MODEL_SPECS['resnet50']['dim']
CONV_OUT = 64                # adapted conv1 output channels
CONV_IN = 3
KH = KW = 3
KK = KH * KW * CONV_IN       # 27 im2col columns
KK_PAD = 32                  # sublane-aligned contraction dim (zero-padded)
PACK = 4                     # patch rows packed per 128-lane vreg row (4*32 = 128)


# ----------------------------- Pallas kernel ------------------------------- #

def _fused_forward_kernel(p_ref, wc_ref, pool_ref, wh_ref, b_ref, o_ref):
    """B_TILE images per step: conv1(3x3,s1,p1)+ReLU -> global avg pool -> fc head.

    p_ref   : (B_TILE*HW//PACK, PACK*KK_PAD)   bf16  packed im2col patches (lane-dense)
    wc_ref  : (PACK*KK_PAD, PACK*CONV_OUT)     bf16  block-diagonal conv1 weight
    pool_ref: (B_TILE, B_TILE*HW//PACK)        f32   block-diagonal 1/HW pooling LHS
    wh_ref  : (PACK*CONV_OUT, NUM_CLASSES_PAD) f32   head weight (tiled 4x, classes padded)
    b_ref   : (1, NUM_CLASSES_PAD)             f32   head bias (padded)
    o_ref   : (B_TILE, NUM_CLASSES_PAD)        f32   logits (lane-dense store)
    """
    # conv1 for all B_TILE images in one MXU matmul (4 spatial positions per row).
    conv = jnp.dot(p_ref[...], wc_ref[...],
                   preferred_element_type=jnp.float32)            # (rows, 4*64)
    conv = jnp.maximum(conv, 0.0)                                 # stem ReLU
    # global average pool as an MXU matmul (block-diagonal 1/HW rows).
    pooled = jnp.dot(pool_ref[...], conv,
                     preferred_element_type=jnp.float32)          # (B_TILE, 4*64)
    # head: the 4 packed column groups are re-summed implicitly because wh is
    # tiled 4x along its input dim.
    logits = jnp.dot(pooled, wh_ref[...],
                     preferred_element_type=jnp.float32) + b_ref[...]
    o_ref[...] = logits.astype(o_ref.dtype)


# ------------------------------ JAX wrapper -------------------------------- #

def _im2col_packed(x_nchw):
    """NCHW -> (N*H*W//PACK, PACK*KK_PAD) bf16 packed 3x3/s1/p1 patches.

    Patch order inside each 32-wide group is (kh, kw, cin)-major, matching the
    OIHW -> (2,3,1,0) weight transpose below. Four consecutive spatial positions
    share one 128-wide row so patch blocks are fully lane-dense in HBM and VMEM.
    """
    N, C, H, W = x_nchw.shape
    x = jnp.transpose(x_nchw, (0, 2, 3, 1))                       # NHWC
    xp = jnp.pad(x, ((0, 0), (1, 1), (1, 1), (0, 0)))
    cols = [xp[:, kh:kh + H, kw:kw + W, :]
            for kh in range(KH) for kw in range(KW)]              # each (N, H, W, C)
    patches = jnp.concatenate(cols, axis=-1).reshape(N, H * W, KK)
    patches = jnp.pad(patches, ((0, 0), (0, 0), (0, KK_PAD - KK)))
    return patches.reshape(N * H * W // PACK, PACK * KK_PAD).astype(jnp.bfloat16)


def _pick_b_tile(n_images):
    """Batch-tile size: >=8 (sublane-aligned output block), capped so the
    double-buffered patch block + f32 conv intermediate stay a few MiB (safe under
    v7x's 64 MiB VMEM / v5e's 16 MiB default scoped VMEM), and kept small enough
    that realistic batches still give >=2 grid steps for v7x megacore."""
    for bt in (32, 16, 8):
        if n_images >= 2 * bt:
            return bt
    return 8


def classification_network_forward(x_nchw, params, b_tile=None):
    """ClassificationNetwork('resnet50', num_classes=10, adapt=True).forward(x)."""
    N, C, H, W = x_nchw.shape
    assert C == CONV_IN
    HW = H * W
    assert HW % PACK == 0, "H*W must be a multiple of the row-packing factor"

    if b_tile is None:
        b_tile = _pick_b_tile(N)
    n_pad = -(-N // b_tile) * b_tile
    if n_pad != N:
        x_nchw = jnp.pad(x_nchw, ((0, n_pad - N), (0, 0), (0, 0), (0, 0)))

    rows_per_img = HW // PACK
    rows_per_blk = b_tile * rows_per_img
    n_rows = n_pad * rows_per_img

    patches = _im2col_packed(x_nchw)                              # (n_rows, 128) bf16

    # conv1 OIHW -> (kh,kw,cin)-major x cout, K padded 27->32, replicated
    # block-diagonally so the 4 packed patch groups multiply in one matmul.
    wc = jnp.transpose(params["conv1_w"], (2, 3, 1, 0)).reshape(KK, CONV_OUT)
    wc = jnp.pad(wc, ((0, KK_PAD - KK), (0, 0)))                  # (32, 64)
    wc_big = jnp.zeros((PACK * KK_PAD, PACK * CONV_OUT), jnp.float32)
    for j in range(PACK):
        wc_big = wc_big.at[j * KK_PAD:(j + 1) * KK_PAD,
                           j * CONV_OUT:(j + 1) * CONV_OUT].set(wc)
    wc_big = wc_big.astype(jnp.bfloat16)                          # (128, 256)

    # Block-diagonal average-pool LHS (1/HW on rows belonging to each image).
    img_of_row = jnp.arange(rows_per_blk, dtype=jnp.int32) // rows_per_img
    pool_m = (jnp.arange(b_tile, dtype=jnp.int32)[:, None] == img_of_row[None, :])
    pool_m = pool_m.astype(jnp.float32) * (1.0 / float(HW))       # (b_tile, rows_per_blk)

    # Head: only rows 0:CONV_OUT are live under the identity-trunk assumption.
    # Tile 4x vertically so the packed column groups sum inside the head matmul;
    # zero-pad classes 10 -> 128 so the output store is lane-dense.
    wh = jnp.pad(params["fc_w"][:CONV_OUT, :],
                 ((0, 0), (0, NUM_CLASSES_PAD - NUM_CLASSES)))    # (64, 128)
    wh_big = jnp.tile(wh, (PACK, 1))                              # (256, 128)
    b = jnp.pad(params["fc_b"],
                (0, NUM_CLASSES_PAD - NUM_CLASSES)).reshape(1, NUM_CLASSES_PAD)

    flops = (2 * n_rows * (PACK * KK_PAD) * (PACK * CONV_OUT)
             + 2 * n_pad * HW * CONV_OUT
             + 2 * n_pad * (PACK * CONV_OUT) * NUM_CLASSES_PAD)
    bytes_accessed = (patches.size * 2 + wc_big.size * 2
                      + (pool_m.size + wh_big.size + b.size) * 4
                      + n_pad * NUM_CLASSES_PAD * 4)

    out_pad = pl.pallas_call(
        _fused_forward_kernel,
        out_shape=jax.ShapeDtypeStruct((n_pad, NUM_CLASSES_PAD), jnp.float32),
        grid=(n_pad // b_tile,),
        in_specs=[
            pl.BlockSpec((rows_per_blk, PACK * KK_PAD), lambda n: (n, 0)),
            pl.BlockSpec((PACK * KK_PAD, PACK * CONV_OUT), lambda n: (0, 0)),
            pl.BlockSpec((b_tile, rows_per_blk), lambda n: (0, 0)),
            pl.BlockSpec((PACK * CONV_OUT, NUM_CLASSES_PAD), lambda n: (0, 0)),
            pl.BlockSpec((1, NUM_CLASSES_PAD), lambda n: (0, 0)),
        ],
        out_specs=pl.BlockSpec((b_tile, NUM_CLASSES_PAD), lambda n: (n, 0)),
        compiler_params=pltpu.CompilerParams(
            dimension_semantics=("parallel",),
            vmem_limit_bytes=32 * 1024 * 1024),
        cost_estimate=pl.CostEstimate(flops=flops, transcendentals=0,
                                      bytes_accessed=bytes_accessed),
    )(patches, wc_big, pool_m, wh_big, b)

    return out_pad[:N, :NUM_CLASSES]                              # crop pad batch/lanes


# ------------------------------- reference --------------------------------- #

def _reference(x_nchw, params):
    y = lax.conv_general_dilated(
        x_nchw, params["conv1_w"], window_strides=(1, 1),
        padding=((1, 1), (1, 1)),
        dimension_numbers=("NCHW", "OIHW", "NCHW"))
    y = jnp.maximum(y, 0.0)
    feat = jnp.mean(y, axis=(2, 3))                               # (N, 64)
    return feat @ params["fc_w"][:CONV_OUT, :] + params["fc_b"]


# --------------------------------- driver ---------------------------------- #

if __name__ == "__main__":
    key = jax.random.PRNGKey(0)
    k_x, k_conv, k_w, k_b = jax.random.split(key, 4)

    N, H, W = 16, 32, 32                                          # small-image (CIFAR-like) input
    x = jax.random.normal(k_x, (N, CONV_IN, H, W), jnp.float32)

    params = {
        # adapted conv1: Conv2d(3, 64, 3, 1, 1, bias=False), OIHW
        "conv1_w": 0.1 * jax.random.normal(k_conv, (CONV_OUT, CONV_IN, KH, KW), jnp.float32),
        # classification head: Linear(2048, 10); stored as W.T = (in, out)
        "fc_w": 0.02 * jax.random.normal(k_w, (EMBED_DIM, NUM_CLASSES), jnp.float32),
        "fc_b": 0.01 * jax.random.normal(k_b, (NUM_CLASSES,), jnp.float32),
    }

    fwd = jax.jit(classification_network_forward)
    out = fwd(x, params)
    out = jax.block_until_ready(out)

    ref = _reference(x, params)
    assert out.shape == (N, NUM_CLASSES), out.shape
    assert jnp.allclose(out, ref, atol=1e-3, rtol=1e-3), (
        f"max abs err {jnp.max(jnp.abs(out - ref))}")

    print("KERNEL_OK")
</pallas_src>

<mosaic_0001>
module attributes {stable_mosaic.version = 11 : i64} {
  func.func @_fused_forward_kernel(%arg0: i32, %arg1: memref<2048x128xbf16, #tpu.memory_space<vmem>>, %arg2: memref<128x256xbf16, #tpu.memory_space<vmem>>, %arg3: memref<8x2048xf32, #tpu.memory_space<vmem>>, %arg4: memref<256x128xf32, #tpu.memory_space<vmem>>, %arg5: memref<1x128xf32, #tpu.memory_space<vmem>>, %arg6: memref<8x128xf32, #tpu.memory_space<vmem>>) attributes {dimension_semantics = [#tpu.dimension_semantics<parallel>], iteration_bounds = array<i64: 2>, scalar_prefetch = 0 : i64, scratch_operands = 0 : i64, tpu.core_type = #tpu.core_type<tc>, window_params = [{transform_indices = @transform_0, window_bounds = array<i64: 2048, 128>}, {pipeline_mode = #tpu.pipeline_mode<synchronous>, transform_indices = @transform_1, window_bounds = array<i64: 128, 256>}, {pipeline_mode = #tpu.pipeline_mode<synchronous>, transform_indices = @transform_2, window_bounds = array<i64: 8, 2048>}, {pipeline_mode = #tpu.pipeline_mode<synchronous>, transform_indices = @transform_3, window_bounds = array<i64: 256, 128>}, {pipeline_mode = #tpu.pipeline_mode<synchronous>, transform_indices = @transform_4, window_bounds = array<i64: 1, 128>}, {transform_indices = @transform_5, window_bounds = array<i64: 8, 128>}]} {
    %c0 = arith.constant 0 : index
    %c0_0 = arith.constant 0 : index
    %0 = vector.load %arg1[%c0, %c0_0] : memref<2048x128xbf16, #tpu.memory_space<vmem>>, vector<2048x128xbf16>
    %c0_1 = arith.constant 0 : index
    %c0_2 = arith.constant 0 : index
    %1 = vector.load %arg2[%c0_1, %c0_2] : memref<128x256xbf16, #tpu.memory_space<vmem>>, vector<128x256xbf16>
    %cst = arith.constant dense<0.000000e+00> : vector<2048x256xf32>
    %2 = tpu.matmul %0, %1, %cst {dimension_numbers = #tpu.dot_dimension_numbers<[1], [0], [0], [1], [0, 0, 1, 1], [], []>} : vector<2048x128xbf16>, vector<128x256xbf16>, vector<2048x256xf32> -> vector<2048x256xf32>
    %cst_3 = arith.constant 0.000000e+00 : f32
    %3 = vector.broadcast %cst_3 : f32 to vector<2048x256xf32>
    %4 = arith.maximumf %2, %3 : vector<2048x256xf32>
    %c0_4 = arith.constant 0 : index
    %c0_5 = arith.constant 0 : index
    %5 = vector.load %arg3[%c0_4, %c0_5] : memref<8x2048xf32, #tpu.memory_space<vmem>>, vector<8x2048xf32>
    %cst_6 = arith.constant dense<0.000000e+00> : vector<8x256xf32>
    %6 = tpu.matmul %5, %4, %cst_6 {dimension_numbers = #tpu.dot_dimension_numbers<[1], [0], [0], [1], [0, 0, 1, 1], [], []>} : vector<8x2048xf32>, vector<2048x256xf32>, vector<8x256xf32> -> vector<8x256xf32>
    %c0_7 = arith.constant 0 : index
    %c0_8 = arith.constant 0 : index
    %7 = vector.load %arg4[%c0_7, %c0_8] : memref<256x128xf32, #tpu.memory_space<vmem>>, vector<256x128xf32>
    %cst_9 = arith.constant dense<0.000000e+00> : vector<8x128xf32>
    %8 = tpu.matmul %6, %7, %cst_9 {dimension_numbers = #tpu.dot_dimension_numbers<[1], [0], [0], [1], [0, 0, 1, 1], [], []>} : vector<8x256xf32>, vector<256x128xf32>, vector<8x128xf32> -> vector<8x128xf32>
    %c0_10 = arith.constant 0 : index
    %c0_11 = arith.constant 0 : index
    %9 = vector.load %arg5[%c0_10, %c0_11] : memref<1x128xf32, #tpu.memory_space<vmem>>, vector<1x128xf32>
    %10 = vector.broadcast %9 : vector<1x128xf32> to vector<8x128xf32>
    %11 = arith.addf %8, %10 : vector<8x128xf32>
    %c0_12 = arith.constant 0 : index
    %c0_13 = arith.constant 0 : index
    %12 = vector.load %arg6[%c0_12, %c0_13] : memref<8x128xf32, #tpu.memory_space<vmem>>, vector<8x128xf32>
    tpu.vector_store %arg6[%c0_12, %c0_13], %11 {strides = array<i32>} : memref<8x128xf32, #tpu.memory_space<vmem>>, vector<8x128xf32>,
    return
  }
  func.func @transform_0(%arg0: i32) -> (i32, i32) {
    %c0_i32 = arith.constant 0 : i32
    %c0_i32_0 = arith.constant 0 : i32
    return %arg0, %c0_i32 : i32, i32
  }
  func.func @transform_1(%arg0: i32) -> (i32, i32) {
    %c0_i32 = arith.constant 0 : i32
    %c0_i32_0 = arith.constant 0 : i32
    %c0_i32_1 = arith.constant 0 : i32
    return %c0_i32, %c0_i32_0 : i32, i32
  }
  func.func @transform_2(%arg0: i32) -> (i32, i32) {
    %c0_i32 = arith.constant 0 : i32
    %c0_i32_0 = arith.constant 0 : i32
    %c0_i32_1 = arith.constant 0 : i32
    return %c0_i32, %c0_i32_0 : i32, i32
  }
  func.func @transform_3(%arg0: i32) -> (i32, i32) {
    %c0_i32 = arith.constant 0 : i32
    %c0_i32_0 = arith.constant 0 : i32
    %c0_i32_1 = arith.constant 0 : i32
    return %c0_i32, %c0_i32_0 : i32, i32
  }
  func.func @transform_4(%arg0: i32) -> (i32, i32) {
    %c0_i32 = arith.constant 0 : i32
    %c0_i32_0 = arith.constant 0 : i32
    %c0_i32_1 = arith.constant 0 : i32
    return %c0_i32, %c0_i32_0 : i32, i32
  }
  func.func @transform_5(%arg0: i32) -> (i32, i32) {
    %c0_i32 = arith.constant 0 : i32
    %c0_i32_0 = arith.constant 0 : i32
    return %arg0, %c0_i32 : i32, i32
  }
}

</mosaic_0001>

<llo_original>
// kernel: classification_network_forward.1
$region0: #{classification_network_forward.1}
  #allocation0 [shape = 'u32[]', space=smem, size = 0x4, offset = 0x4, fixed_abs, tag = 'smem constant byte address 0x4 - core index']
  #allocation1 [shape = 'u32[72,128]{1,0:T(1,128)}', space=vmem, size = 0x9000, scoped, tag = 'internal scratch']
  %s0 = inlined_call_operand.vmem [shape: bf16[4096,128], index: 0, kind: input, shape index: {}]
  %s1 = inlined_call_operand.vmem [shape: bf16[128,256], index: 1, kind: input, shape index: {}]
  %s2 = inlined_call_operand.vmem [shape: f32[8,2048], index: 2, kind: input, shape index: {}]
  %s3 = inlined_call_operand.vmem [shape: f32[256,128], index: 3, kind: input, shape index: {}]
  %s4 = inlined_call_operand.vmem [shape: f32[1,128], index: 4, kind: input, shape index: {}]
  %s5 = inlined_call_operand.hbm [shape: f32[16,128], index: 5, kind: output, shape index: {}]
  %s6 = sld [smem:[#allocation0]]
  $region53: #{classification_network_forward.1} parent=0
    _
  %s8 = ssub.s32 1, %s6
  %s9 = scalar_select 0, %s8, %s6
  $region1: #{classification_network_forward.1} parent=0
    #allocation2 [shape = 'u8[8192]{0}', space=vmem, size = 0x2000, scoped, tag = 'output window, operand 0']
    #allocation3 [shape = 's32[2]{0}', space=sflag, size = 0x8, scoped, tag = 'scoped memory for classification_network_forward.1']
    %10 = vsyncpa [#allocation3], 0
    %s11 = scalar_lea.sflag [#allocation3], 1
    %12 = vsyncpa %s11, 0
    loop: start=0, step=1, limit=4
    $region2: #{classification_network_forward.1} parent=1 // loop_pre_header
      _
    $region3: #{classification_network_forward.1} parent=1 // loop_header
      %s14 = sphi 0, %s18
      %p15 = scmp.ge.s32.totalorder %s14, 4
      %s24 = sphi 0, %s26
      %s27 = sphi 0, %s24
      %s28 = sphi 0, %s27
      %s44 = sphi 0, %s28
      %s48 = sphi 0, %s48
      %s50 = sphi 0, %s48
      %s51 = sphi 0, %s50
      %s65 = sphi 0, %s51
      %s69 = sphi 0, %s69
      %s71 = sphi 0, %s69
      %s72 = sphi 0, %s71
      %s86 = sphi 0, %s72
      %s90 = sphi 0, %s90
      %s92 = sphi 0, %s90
      %s93 = sphi 0, %s92
      %s107 = sphi 0, %s93
      %s111 = sphi 0, %s111
      %s113 = sphi 0, %s111
      %s114 = sphi 0, %s113
      %s128 = sphi 0, %s114
      %s134 = sphi 0, %s136
      %s137 = sphi 0, %s134
      %s138 = sphi 0, %s137
      %s154 = sphi 0, %s138
    $region4: #{classification_network_forward.1} parent=1 // loop_header_branch
      %17 = sbr.rel (%p15) target = $region8
    $region5: #{classification_network_forward.1} parent=1 // loop_body
      %s19 = ssub.s32 %s14, 1
      %s20 = ssub.s32 %s14, 2
      %s21 = sadd.s32 %s14, 1
      %s22 = ssub.s32 %s14, %s21
      %p23 = scmp.eq.s32.totalorder %s22, 0
      %s25 = sadd.s32 %s24, 1
      %s26 = scalar_select %p23, %s24, %s25
      %p29 = pneg %p23
      %p30 = scmp.eq.s32.totalorder %s14, 1
      %p31 = por %p29, %p30
      %p32 = scmp.ne.s32.totalorder %s24, %s27
      %p33 = scmp.eq.s32.totalorder %s14, 0
      %p34 = por %p32, %p33
      %p35 = scmp.ne.s32.totalorder %s24, %s27
      %p36 = scmp.eq.s32.totalorder %s19, 1
      %p37 = por %p35, %p36
      %p38 = scmp.ne.s32.totalorder %s27, %s28
      %p39 = scmp.eq.s32.totalorder %s19, 0
      %p40 = por %p38, %p39
      %p41 = scmp.ne.s32.totalorder %s27, %s28
      %p42 = scmp.eq.s32.totalorder %s20, 1
      %p43 = por %p41, %p42
      %p45 = scmp.ne.s32.totalorder %s28, %s44
      %p46 = scmp.eq.s32.totalorder %s20, 0
      %p47 = por %p45, %p46
      %s49 = sadd.s32 %s48, 1
      %p52 = scmp.eq.s32.totalorder %s14, 1
      %p53 = scmp.ne.s32.totalorder %s48, %s50
      %p54 = scmp.eq.s32.totalorder %s14, 0
      %p55 = por %p53, %p54
      %p56 = scmp.ne.s32.totalorder %s48, %s50
      %p57 = scmp.eq.s32.totalorder %s19, 1
      %p58 = por %p56, %p57
      %p59 = scmp.ne.s32.totalorder %s50, %s51
      %p60 = scmp.eq.s32.totalorder %s19, 0
      %p61 = por %p59, %p60
      %p62 = scmp.ne.s32.totalorder %s50, %s51
      %p63 = scmp.eq.s32.totalorder %s20, 1
      %p64 = por %p62, %p63
      %p66 = scmp.ne.s32.totalorder %s51, %s65
      %p67 = scmp.eq.s32.totalorder %s20, 0
      %p68 = por %p66, %p67
      %s70 = sadd.s32 %s69, 1
      %p73 = scmp.eq.s32.totalorder %s14, 1
      %p74 = scmp.ne.s32.totalorder %s69, %s71
      %p75 = scmp.eq.s32.totalorder %s14, 0
      %p76 = por %p74, %p75
      %p77 = scmp.ne.s32.totalorder %s69, %s71
      %p78 = scmp.eq.s32.totalorder %s19, 1
      %p79 = por %p77, %p78
      %p80 = scmp.ne.s32.totalorder %s71, %s72
      %p81 = scmp.eq.s32.totalorder %s19, 0
      %p82 = por %p80, %p81
      %p83 = scmp.ne.s32.totalorder %s71, %s72
      %p84 = scmp.eq.s32.totalorder %s20, 1
      %p85 = por %p83, %p84
      %p87 = scmp.ne.s32.totalorder %s72, %s86
      %p88 = scmp.eq.s32.totalorder %s20, 0
      %p89 = por %p87, %p88
      %s91 = sadd.s32 %s90, 1
      %p94 = scmp.eq.s32.totalorder %s14, 1
      %p95 = scmp.ne.s32.totalorder %s90, %s92
      %p96 = scmp.eq.s32.totalorder %s14, 0
      %p97 = por %p95, %p96
      %p98 = scmp.ne.s32.totalorder %s90, %s92
      %p99 = scmp.eq.s32.totalorder %s19, 1
      %p100 = por %p98, %p99
      %p101 = scmp.ne.s32.totalorder %s92, %s93
      %p102 = scmp.eq.s32.totalorder %s19, 0
      %p103 = por %p101, %p102
      %p104 = scmp.ne.s32.totalorder %s92, %s93
      %p105 = scmp.eq.s32.totalorder %s20, 1
      %p106 = por %p104, %p105
      %p108 = scmp.ne.s32.totalorder %s93, %s107
      %p109 = scmp.eq.s32.totalorder %s20, 0
      %p110 = por %p108, %p109
      %s112 = sadd.s32 %s111, 1
      %p115 = scmp.eq.s32.totalorder %s14, 1
      %p116 = scmp.ne.s32.totalorder %s111, %s113
      %p117 = scmp.eq.s32.totalorder %s14, 0
      %p118 = por %p116, %p117
      %p119 = scmp.ne.s32.totalorder %s111, %s113
      %p120 = scmp.eq.s32.totalorder %s19, 1
      %p121 = por %p119, %p120
      %p122 = scmp.ne.s32.totalorder %s113, %s114
      %p123 = scmp.eq.s32.totalorder %s19, 0
      %p124 = por %p122, %p123
      %p125 = scmp.ne.s32.totalorder %s113, %s114
      %p126 = scmp.eq.s32.totalorder %s20, 1
      %p127 = por %p125, %p126
      %p129 = scmp.ne.s32.totalorder %s114, %s128
      %p130 = scmp.eq.s32.totalorder %s20, 0
      %p131 = por %p129, %p130
      %s132 = ssub.s32 %s14, %s21
      %p133 = scmp.eq.s32.totalorder %s132, 0
      %s135 = sadd.s32 %s134, 1
      %s136 = scalar_select %p133, %s134, %s135
      %p139 = pneg %p133
      %p140 = scmp.eq.s32.totalorder %s14, 1
      %p141 = por %p139, %p140
      %p142 = scmp.ne.s32.totalorder %s134, %s137
      %p143 = scmp.eq.s32.totalorder %s14, 0
      %p144 = por %p142, %p143
      %p145 = scmp.ne.s32.totalorder %s134, %s137
      %p146 = scmp.eq.s32.totalorder %s19, 1
      %p147 = por %p145, %p146
      %p148 = scmp.ne.s32.totalorder %s137, %s138
      %p149 = scmp.eq.s32.totalorder %s19, 0
      %p150 = por %p148, %p149
      %p151 = scmp.ne.s32.totalorder %s137, %s138
      %p152 = scmp.eq.s32.totalorder %s20, 1
      %p153 = por %p151, %p152
      %p155 = scmp.ne.s32.totalorder %s138, %s154
      %p156 = scmp.eq.s32.totalorder %s20, 0
      %p157 = por %p155, %p156
      %p158 = scmp.le.s32.totalorder 1, %s14
      %p159 = scmp.lt.s32.totalorder %s14, 3
      %p160 = pnand %p158, %p159
      %p161 = pneg %p160
      // Predicated region
      $region9: #{classification_network_forward.1} parent=5 // pred_check
        _
      $region10: #{classification_network_forward.1} parent=5 // pred_check_branch
        %163 = sbr.rel (%p160) target = $region12
      $region11: #{classification_network_forward.1} parent=5 // pred_region
        %s164 = ssub.s32 %s14, 1
        // Predicated region
        $region13: #{classification_network_forward.1} parent=11 // pred_check
          %p165 = pneg %p61
        $region14: #{classification_network_forward.1} parent=11 // pred_check_branch
          %167 = sbr.rel (%p165) target = $region16
        $region15: #{classification_network_forward.1} parent=11 // pred_region
          _
        $region16: #{classification_network_forward.1} parent=11 // pred_fallthru
          _
        // Predicated region
        $region17: #{classification_network_forward.1} parent=11 // pred_check
          %p168 = pneg %p82
        $region18: #{classification_network_forward.1} parent=11 // pred_check_branch
          %170 = sbr.rel (%p168) target = $region20
        $region19: #{classification_network_forward.1} parent=11 // pred_region
          _
        $region20: #{classification_network_forward.1} parent=11 // pred_fallthru
          _
        // Predicated region
        $region21: #{classification_network_forward.1} parent=11 // pred_check
          %p171 = pneg %p103
        $region22: #{classification_network_forward.1} parent=11 // pred_check_branch
          %173 = sbr.rel (%p171) target = $region24
        $region23: #{classification_network_forward.1} parent=11 // pred_region
          _
        $region24: #{classification_network_forward.1} parent=11 // pred_fallthru
          _
        // Predicated region
        $region25: #{classification_network_forward.1} parent=11 // pred_check
          %p174 = pneg %p124
        $region26: #{classification_network_forward.1} parent=11 // pred_check_branch
          %176 = sbr.rel (%p174) target = $region28
        $region27: #{classification_network_forward.1} parent=11 // pred_region
          _
        $region28: #{classification_network_forward.1} parent=11 // pred_fallthru
          _
      $region12: #{classification_network_forward.1} parent=5 // pred_fallthru
        _
      %p177 = scmp.lt.s32.totalorder %s14, 2
      // Predicated region
      $region29: #{classification_network_forward.1} parent=5 // pred_check
        %p178 = pneg %p177
      $region30: #{classification_network_forward.1} parent=5 // pred_check_branch
        %180 = sbr.rel (%p178) target = $region32
      $region31: #{classification_network_forward.1} parent=5 // pred_region
        // Predicated region
        $region33: #{classification_network_forward.1} parent=31 // pred_check
          %p181 = pneg %p34
        $region34: #{classification_network_forward.1} parent=31 // pred_check_branch
          %183 = sbr.rel (%p181) target = $region36
        $region35: #{classification_network_forward.1} parent=31 // pred_region
          %s184 = smul.u32 256, %s14
          %p185 = scmp.lt.s32.totalorder %s184, 511
          %s186 = scalar_select %p185, %s184, 511
          %s187 = smul.addr %s186, 4
          %s188 = scalar_lea.vmem %s0, %s187
          %s189 = smul.u32 256, %s14
        $region36: #{classification_network_forward.1} parent=31 // pred_fallthru
          _
      $region32: #{classification_network_forward.1} parent=5 // pred_fallthru
        _
      %p190 = scmp.le.s32.totalorder 1, %s14
      %p191 = scmp.lt.s32.totalorder %s14, 3
      %p192 = pnand %p190, %p191
      %p193 = pneg %p192
      // Predicated region
      $region37: #{classification_network_forward.1} parent=5 // pred_check
        _
      $region38: #{classification_network_forward.1} parent=5 // pred_check_branch
        %195 = sbr.rel (%p192) target = $region40
      $region39: #{classification_network_forward.1} parent=5 // pred_region
        %s196 = ssub.s32 %s14, 1
        %s197 = smul.u32 256, %s19
        %p198 = scmp.lt.s32.totalorder %s197, 511
        %s199 = scalar_select %p198, %s197, 511
        %s200 = smul.addr %s199, 4
        %s201 = scalar_lea.vmem %s0, %s200
        %p202 = pneg %p40
        %p203 = pneg %p37
        %p204 = pneg %p61
        %p205 = pneg %p58
        %p206 = pneg %p82
        %p207 = pneg %p79
        %p208 = pneg %p103
        %p209 = pneg %p100
        %p210 = pneg %p124
        %p211 = pneg %p121
        %p212 = pneg %p150
        %p213 = pneg %p147
        %s214 = sand.u32 %s137, 1
        %s215 = scalar_lea.sflag [#allocation3], %s214
        %s216 = sand.u32 %s137, 1
        %s217 = smul.addr %s216, 8
        %s218 = scalar_lea.vmem [#allocation2], %s217
        %s219 = smul.u32 256, %s19
        %p220 = scmp.lt.s32.totalorder %s219, 511
        %s221 = scalar_select %p220, %s219, 511
        %s222 = smul.addr %s221, 4
        %s223 = scalar_lea.vmem %s0, %s222
        %s224 = smul.u32 256, %s19
        %v225 = vld [vmem:[%s223] sm:$0xf]
        %v226 = vld [vmem:[%s223 + $0x4] sm:$0xf]
        %v227 = vld [vmem:[%s223 + $0x8] sm:$0xf]
        %v228 = vld [vmem:[%s223 + $0xc] sm:$0xf]
        %v229 = vld [vmem:[%s223 + $0x10] sm:$0xf]
        %v230 = vld [vmem:[%s223 + $0x14] sm:$0xf]
        %v231 = vld [vmem:[%s223 + $0x18] sm:$0xf]
        %v232 = vld [vmem:[%s223 + $0x1c] sm:$0xf]
        %v233 = vld [vmem:[%s223 + $0x20] sm:$0xf]
        %v234 = vld [vmem:[%s223 + $0x24] sm:$0xf]
        %v235 = vld [vmem:[%s223 + $0x28] sm:$0xf]
        %v236 = vld [vmem:[%s223 + $0x2c] sm:$0xf]
        %v237 = vld [vmem:[%s223 + $0x30] sm:$0xf]
        %v238 = vld [vmem:[%s223 + $0x34] sm:$0xf]
        %v239 = vld [vmem:[%s223 + $0x38] sm:$0xf]
        %v240 = vld [vmem:[%s223 + $0x3c] sm:$0xf]
        %v241 = vld [vmem:[%s223 + $0x40] sm:$0xf]
        %v242 = vld [vmem:[%s223 + $0x44] sm:$0xf]
        %v243 = vld [vmem:[%s223 + $0x48] sm:$0xf]
        %v244 = vld [vmem:[%s223 + $0x4c] sm:$0xf]
        %v245 = vld [vmem:[%s223 + $0x50] sm:$0xf]
        %v246 = vld [vmem:[%s223 + $0x54] sm:$0xf]
        %v247 = vld [vmem:[%s223 + $0x58] sm:$0xf]
        %v248 = vld [vmem:[%s223 + $0x5c] sm:$0xf]
        %v249 = vld [vmem:[%s223 + $0x60] sm:$0xf]
        %v250 = vld [vmem:[%s223 + $0x64] sm:$0xf]
        %v251 = vld [vmem:[%s223 + $0x68] sm:$0xf]
        %v252 = vld [vmem:[%s223 + $0x6c] sm:$0xf]
        %v253 = vld [vmem:[%s223 + $0x70] sm:$0xf]
        %v254 = vld [vmem:[%s223 + $0x74] sm:$0xf]
        %v255 = vld [vmem:[%s223 + $0x78] sm:$0xf]
        %v256 = vld [vmem:[%s223 + $0x7c] sm:$0xf]
        %v257 = vld [vmem:[%s223 + $0x80] sm:$0xf]
        %v258 = vld [vmem:[%s223 + $0x84] sm:$0xf]
        %v259 = vld [vmem:[%s223 + $0x88] sm:$0xf]
        %v260 = vld [vmem:[%s223 + $0x8c] sm:$0xf]
        %v261 = vld [vmem:[%s223 + $0x90] sm:$0xf]
        %v262 = vld [vmem:[%s223 + $0x94] sm:$0xf]
        %v263 = vld [vmem:[%s223 + $0x98] sm:$0xf]
        %v264 = vld [vmem:[%s223 + $0x9c] sm:$0xf]
        %v265 = vld [vmem:[%s223 + $0xa0] sm:$0xf]
        %v266 = vld [vmem:[%s223 + $0xa4] sm:$0xf]
        %v267 = vld [vmem:[%s223 + $0xa8] sm:$0xf]
        %v268 = vld [vmem:[%s223 + $0xac] sm:$0xf]
        %v269 = vld [vmem:[%s223 + $0xb0] sm:$0xf]
        %v270 = vld [vmem:[%s223 + $0xb4] sm:$0xf]
        %v271 = vld [vmem:[%s223 + $0xb8] sm:$0xf]
        %v272 = vld [vmem:[%s223 + $0xbc] sm:$0xf]
        %v273 = vld [vmem:[%s223 + $0xc0] sm:$0xf]
        %v274 = vld [vmem:[%s223 + $0xc4] sm:$0xf]
        %v275 = vld [vmem:[%s223 + $0xc8] sm:$0xf]
        %v276 = vld [vmem:[%s223 + $0xcc] sm:$0xf]
        %v277 = vld [vmem:[%s223 + $0xd0] sm:$0xf]
        %v278 = vld [vmem:[%s223 + $0xd4] sm:$0xf]
        %v279 = vld [vmem:[%s223 + $0xd8] sm:$0xf]
        %v280 = vld [vmem:[%s223 + $0xdc] sm:$0xf]
        %v281 = vld [vmem:[%s223 + $0xe0] sm:$0xf]
        %v282 = vld [vmem:[%s223 + $0xe4] sm:$0xf]
        %v283 = vld [vmem:[%s223 + $0xe8] sm:$0xf]
        %v284 = vld [vmem:[%s223 + $0xec] sm:$0xf]
        %v285 = vld [vmem:[%s223 + $0xf0] sm:$0xf]
        %v286 = vld [vmem:[%s223 + $0xf4] sm:$0xf]
        %v287 = vld [vmem:[%s223 + $0xf8] sm:$0xf]
        %v288 = vld [vmem:[%s223 + $0xfc] sm:$0xf]
        %v289 = vld [vmem:[%s223 + $0x100] sm:$0xf]
        %v290 = vld [vmem:[%s223 + $0x104] sm:$0xf]
        %v291 = vld [vmem:[%s223 + $0x108] sm:$0xf]
        %v292 = vld [vmem:[%s223 + $0x10c] sm:$0xf]
        %v293 = vld [vmem:[%s223 + $0x110] sm:$0xf]
        %v294 = vld [vmem:[%s223 + $0x114] sm:$0xf]
        %v295 = vld [vmem:[%s223 + $0x118] sm:$0xf]
        %v296 = vld [vmem:[%s223 + $0x11c] sm:$0xf]
        %v297 = vld [vmem:[%s223 + $0x120] sm:$0xf]
        %v298 = vld [vmem:[%s223 + $0x124] sm:$0xf]
        %v299 = vld [vmem:[%s223 + $0x128] sm:$0xf]
        %v300 = vld [vmem:[%s223 + $0x12c] sm:$0xf]
        %v301 = vld [vmem:[%s223 + $0x130] sm:$0xf]
        %v302 = vld [vmem:[%s223 + $0x134] sm:$0xf]
        %v303 = vld [vmem:[%s223 + $0x138] sm:$0xf]
        %v304 = vld [vmem:[%s223 + $0x13c] sm:$0xf]
        %v305 = vld [vmem:[%s223 + $0x140] sm:$0xf]
        %v306 = vld [vmem:[%s223 + $0x144] sm:$0xf]
        %v307 = vld [vmem:[%s223 + $0x148] sm:$0xf]
        %v308 = vld [vmem:[%s223 + $0x14c] sm:$0xf]
        %v309 = vld [vmem:[%s223 + $0x150] sm:$0xf]
        %v310 = vld [vmem:[%s223 + $0x154] sm:$0xf]
        %v311 = vld [vmem:[%s223 + $0x158] sm:$0xf]
        %v312 = vld [vmem:[%s223 + $0x15c] sm:$0xf]
        %v313 = vld [vmem:[%s223 + $0x160] sm:$0xf]
        %v314 = vld [vmem:[%s223 + $0x164] sm:$0xf]
        %v315 = vld [vmem:[%s223 + $0x168] sm:$0xf]
        %v316 = vld [vmem:[%s223 + $0x16c] sm:$0xf]
        %v317 = vld [vmem:[%s223 + $0x170] sm:$0xf]
        %v318 = vld [vmem:[%s223 + $0x174] sm:$0xf]
        %v319 = vld [vmem:[%s223 + $0x178] sm:$0xf]
        %v320 = vld [vmem:[%s223 + $0x17c] sm:$0xf]
        %v321 = vld [vmem:[%s223 + $0x180] sm:$0xf]
        %v322 = vld [vmem:[%s223 + $0x184] sm:$0xf]
        %v323 = vld [vmem:[%s223 + $0x188] sm:$0xf]
        %v324 = vld [vmem:[%s223 + $0x18c] sm:$0xf]
        %v325 = vld [vmem:[%s223 + $0x190] sm:$0xf]
        %v326 = vld [vmem:[%s223 + $0x194] sm:$0xf]
        %v327 = vld [vmem:[%s223 + $0x198] sm:$0xf]
        %v328 = vld [vmem:[%s223 + $0x19c] sm:$0xf]
        %v329 = vld [vmem:[%s223 + $0x1a0] sm:$0xf]
        %v330 = vld [vmem:[%s223 + $0x1a4] sm:$0xf]
        %v331 = vld [vmem:[%s223 + $0x1a8] sm:$0xf]
        %v332 = vld [vmem:[%s223 + $0x1ac] sm:$0xf]
        %v333 = vld [vmem:[%s223 + $0x1b0] sm:$0xf]
        %v334 = vld [vmem:[%s223 + $0x1b4] sm:$0xf]
        %v335 = vld [vmem:[%s223 + $0x1b8] sm:$0xf]
        %v336 = vld [vmem:[%s223 + $0x1bc] sm:$0xf]
        %v337 = vld [vmem:[%s223 + $0x1c0] sm:$0xf]
        %v338 = vld [vmem:[%s223 + $0x1c4] sm:$0xf]
        %v339 = vld [vmem:[%s223 + $0x1c8] sm:$0xf]
        %v340 = vld [vmem:[%s223 + $0x1cc] sm:$0xf]
        %v341 = vld [vmem:[%s223 + $0x1d0] sm:$0xf]
        %v342 = vld [vmem:[%s223 + $0x1d4] sm:$0xf]
        %v343 = vld [vmem:[%s223 + $0x1d8] sm:$0xf]
        %v344 = vld [vmem:[%s223 + $0x1dc] sm:$0xf]
        %v345 = vld [vmem:[%s223 + $0x1e0] sm:$0xf]
        %v346 = vld [vmem:[%s223 + $0x1e4] sm:$0xf]
        %v347 = vld [vmem:[%s223 + $0x1e8] sm:$0xf]
        %v348 = vld [vmem:[%s223 + $0x1ec] sm:$0xf]
        %v349 = vld [vmem:[%s223 + $0x1f0] sm:$0xf]
        %v350 = vld [vmem:[%s223 + $0x1f4] sm:$0xf]
        %v351 = vld [vmem:[%s223 + $0x1f8] sm:$0xf]
        %v352 = vld [vmem:[%s223 + $0x1fc] sm:$0xf]
        %v353 = vld [vmem:[%s223 + $0x200] sm:$0xf]
        %v354 = vld [vmem:[%s223 + $0x204] sm:$0xf]
        %v355 = vld [vmem:[%s223 + $0x208] sm:$0xf]
        %v356 = vld [vmem:[%s223 + $0x20c] sm:$0xf]
        %v357 = vld [vmem:[%s223 + $0x210] sm:$0xf]
        %v358 = vld [vmem:[%s223 + $0x214] sm:$0xf]
        %v359 = vld [vmem:[%s223 + $0x218] sm:$0xf]
        %v360 = vld [vmem:[%s223 + $0x21c] sm:$0xf]
        %v361 = vld [vmem:[%s223 + $0x220] sm:$0xf]
        %v362 = vld [vmem:[%s223 + $0x224] sm:$0xf]
        %v363 = vld [vmem:[%s223 + $0x228] sm:$0xf]
        %v364 = vld [vmem:[%s223 + $0x22c] sm:$0xf]
        %v365 = vld [vmem:[%s223 + $0x230] sm:$0xf]
        %v366 = vld [vmem:[%s223 + $0x234] sm:$0xf]
        %v367 = vld [vmem:[%s223 + $0x238] sm:$0xf]
        %v368 = vld [vmem:[%s223 + $0x23c] sm:$0xf]
        %v369 = vld [vmem:[%s223 + $0x240] sm:$0xf]
        %v370 = vld [vmem:[%s223 + $0x244] sm:$0xf]
        %v371 = vld [vmem:[%s223 + $0x248] sm:$0xf]
        %v372 = vld [vmem:[%s223 + $0x24c] sm:$0xf]
        %v373 = vld [vmem:[%s223 + $0x250] sm:$0xf]
        %v374 = vld [vmem:[%s223 + $0x254] sm:$0xf]
        %v375 = vld [vmem:[%s223 + $0x258] sm:$0xf]
        %v376 = vld [vmem:[%s223 + $0x25c] sm:$0xf]
        %v377 = vld [vmem:[%s223 + $0x260] sm:$0xf]
        %v378 = vld [vmem:[%s223 + $0x264] sm:$0xf]
        %v379 = vld [vmem:[%s223 + $0x268] sm:$0xf]
        %v380 = vld [vmem:[%s223 + $0x26c] sm:$0xf]
        %v381 = vld [vmem:[%s223 + $0x270] sm:$0xf]
        %v382 = vld [vmem:[%s223 + $0x274] sm:$0xf]
        %v383 = vld [vmem:[%s223 + $0x278] sm:$0xf]
        %v384 = vld [vmem:[%s223 + $0x27c] sm:$0xf]
        %v385 = vld [vmem:[%s223 + $0x280] sm:$0xf]
        %v386 = vld [vmem:[%s223 + $0x284] sm:$0xf]
        %v387 = vld [vmem:[%s223 + $0x288] sm:$0xf]
        %v388 = vld [vmem:[%s223 + $0x28c] sm:$0xf]
        %v389 = vld [vmem:[%s223 + $0x290] sm:$0xf]
        %v390 = vld [vmem:[%s223 + $0x294] sm:$0xf]
        %v391 = vld [vmem:[%s223 + $0x298] sm:$0xf]
        %v392 = vld [vmem:[%s223 + $0x29c] sm:$0xf]
        %v393 = vld [vmem:[%s223 + $0x2a0] sm:$0xf]
        %v394 = vld [vmem:[%s223 + $0x2a4] sm:$0xf]
        %v395 = vld [vmem:[%s223 + $0x2a8] sm:$0xf]
        %v396 = vld [vmem:[%s223 + $0x2ac] sm:$0xf]
        %v397 = vld [vmem:[%s223 + $0x2b0] sm:$0xf]
        %v398 = vld [vmem:[%s223 + $0x2b4] sm:$0xf]
        %v399 = vld [vmem:[%s223 + $0x2b8] sm:$0xf]
        %v400 = vld [vmem:[%s223 + $0x2bc] sm:$0xf]
        %v401 = vld [vmem:[%s223 + $0x2c0] sm:$0xf]
        %v402 = vld [vmem:[%s223 + $0x2c4] sm:$0xf]
        %v403 = vld [vmem:[%s223 + $0x2c8] sm:$0xf]
        %v404 = vld [vmem:[%s223 + $0x2cc] sm:$0xf]
        %v405 = vld [vmem:[%s223 + $0x2d0] sm:$0xf]
        %v406 = vld [vmem:[%s223 + $0x2d4] sm:$0xf]
        %v407 = vld [vmem:[%s223 + $0x2d8] sm:$0xf]
        %v408 = vld [vmem:[%s223 + $0x2dc] sm:$0xf]
        %v409 = vld [vmem:[%s223 + $0x2e0] sm:$0xf]
        %v410 = vld [vmem:[%s223 + $0x2e4] sm:$0xf]
        %v411 = vld [vmem:[%s223 + $0x2e8] sm:$0xf]
        %v412 = vld [vmem:[%s223 + $0x2ec] sm:$0xf]
        %v413 = vld [vmem:[%s223 + $0x2f0] sm:$0xf]
        %v414 = vld [vmem:[%s223 + $0x2f4] sm:$0xf]
        %v415 = vld [vmem:[%s223 + $0x2f8] sm:$0xf]
        %v416 = vld [vmem:[%s223 + $0x2fc] sm:$0xf]
        %v417 = vld [vmem:[%s223 + $0x300] sm:$0xf]
        %v418 = vld [vmem:[%s223 + $0x304] sm:$0xf]
        %v419 = vld [vmem:[%s223 + $0x308] sm:$0xf]
        %v420 = vld [vmem:[%s223 + $0x30c] sm:$0xf]
        %v421 = vld [vmem:[%s223 + $0x310] sm:$0xf]
        %v422 = vld [vmem:[%s223 + $0x314] sm:$0xf]
        %v423 = vld [vmem:[%s223 + $0x318] sm:$0xf]
        %v424 = vld [vmem:[%s223 + $0x31c] sm:$0xf]
        %v425 = vld [vmem:[%s223 + $0x320] sm:$0xf]
        %v426 = vld [vmem:[%s223 + $0x324] sm:$0xf]
        %v427 = vld [vmem:[%s223 + $0x328] sm:$0xf]
        %v428 = vld [vmem:[%s223 + $0x32c] sm:$0xf]
        %v429 = vld [vmem:[%s223 + $0x330] sm:$0xf]
        %v430 = vld [vmem:[%s223 + $0x334] sm:$0xf]
        %v431 = vld [vmem:[%s223 + $0x338] sm:$0xf]
        %v432 = vld [vmem:[%s223 + $0x33c] sm:$0xf]
        %v433 = vld [vmem:[%s223 + $0x340] sm:$0xf]
        %v434 = vld [vmem:[%s223 + $0x344] sm:$0xf]
        %v435 = vld [vmem:[%s223 + $0x348] sm:$0xf]
        %v436 = vld [vmem:[%s223 + $0x34c] sm:$0xf]
        %v437 = vld [vmem:[%s223 + $0x350] sm:$0xf]
        %v438 = vld [vmem:[%s223 + $0x354] sm:$0xf]
        %v439 = vld [vmem:[%s223 + $0x358] sm:$0xf]
        %v440 = vld [vmem:[%s223 + $0x35c] sm:$0xf]
        %v441 = vld [vmem:[%s223 + $0x360] sm:$0xf]
        %v442 = vld [vmem:[%s223 + $0x364] sm:$0xf]
        %v443 = vld [vmem:[%s223 + $0x368] sm:$0xf]
        %v444 = vld [vmem:[%s223 + $0x36c] sm:$0xf]
        %v445 = vld [vmem:[%s223 + $0x370] sm:$0xf]
        %v446 = vld [vmem:[%s223 + $0x374] sm:$0xf]
        %v447 = vld [vmem:[%s223 + $0x378] sm:$0xf]
        %v448 = vld [vmem:[%s223 + $0x37c] sm:$0xf]
        %v449 = vld [vmem:[%s223 + $0x380] sm:$0xf]
        %v450 = vld [vmem:[%s223 + $0x384] sm:$0xf]
        %v451 = vld [vmem:[%s223 + $0x388] sm:$0xf]
        %v452 = vld [vmem:[%s223 + $0x38c] sm:$0xf]
        %v453 = vld [vmem:[%s223 + $0x390] sm:$0xf]
        %v454 = vld [vmem:[%s223 + $0x394] sm:$0xf]
        %v455 = vld [vmem:[%s223 + $0x398] sm:$0xf]
        %v456 = vld [vmem:[%s223 + $0x39c] sm:$0xf]
        %v457 = vld [vmem:[%s223 + $0x3a0] sm:$0xf]
        %v458 = vld [vmem:[%s223 + $0x3a4] sm:$0xf]
        %v459 = vld [vmem:[%s223 + $0x3a8] sm:$0xf]
        %v460 = vld [vmem:[%s223 + $0x3ac] sm:$0xf]
        %v461 = vld [vmem:[%s223 + $0x3b0] sm:$0xf]
        %v462 = vld [vmem:[%s223 + $0x3b4] sm:$0xf]
        %v463 = vld [vmem:[%s223 + $0x3b8] sm:$0xf]
        %v464 = vld [vmem:[%s223 + $0x3bc] sm:$0xf]
        %v465 = vld [vmem:[%s223 + $0x3c0] sm:$0xf]
        %v466 = vld [vmem:[%s223 + $0x3c4] sm:$0xf]
        %v467 = vld [vmem:[%s223 + $0x3c8] sm:$0xf]
        %v468 = vld [vmem:[%s223 + $0x3cc] sm:$0xf]
        %v469 = vld [vmem:[%s223 + $0x3d0] sm:$0xf]
        %v470 = vld [vmem:[%s223 + $0x3d4] sm:$0xf]
        %v471 = vld [vmem:[%s223 + $0x3d8] sm:$0xf]
        %v472 = vld [vmem:[%s223 + $0x3dc] sm:$0xf]
        %v473 = vld [vmem:[%s223 + $0x3e0] sm:$0xf]
        %v474 = vld [vmem:[%s223 + $0x3e4] sm:$0xf]
        %v475 = vld [vmem:[%s223 + $0x3e8] sm:$0xf]
        %v476 = vld [vmem:[%s223 + $0x3ec] sm:$0xf]
        %v477 = vld [vmem:[%s223 + $0x3f0] sm:$0xf]
        %v478 = vld [vmem:[%s223 + $0x3f4] sm:$0xf]
        %v479 = vld [vmem:[%s223 + $0x3f8] sm:$0xf]
        %v480 = vld [vmem:[%s223 + $0x3fc] sm:$0xf]
        %v481 = vld [vmem:[%s1] sm:$0xff]
        %v482 = vld [vmem:[%s1 + $0x8] sm:$0xff]
        %v483 = vld [vmem:[%s1 + $0x10] sm:$0xff]
        %v484 = vld [vmem:[%s1 + $0x18] sm:$0xff]
        %v485 = vld [vmem:[%s1 + $0x20] sm:$0xff]
        %v486 = vld [vmem:[%s1 + $0x28] sm:$0xff]
        %v487 = vld [vmem:[%s1 + $0x30] sm:$0xff]
        %v488 = vld [vmem:[%s1 + $0x38] sm:$0xff]
        %v489 = vld [vmem:[%s1 + $0x40] sm:$0xff]
        %v490 = vld [vmem:[%s1 + $0x48] sm:$0xff]
        %v491 = vld [vmem:[%s1 + $0x50] sm:$0xff]
        %v492 = vld [vmem:[%s1 + $0x58] sm:$0xff]
        %v493 = vld [vmem:[%s1 + $0x60] sm:$0xff]
        %v494 = vld [vmem:[%s1 + $0x68] sm:$0xff]
        %v495 = vld [vmem:[%s1 + $0x70] sm:$0xff]
        %v496 = vld [vmem:[%s1 + $0x78] sm:$0xff]
        %v753 = vunpack.c.l.b16 %v225
        %v754 = vunpack.c.l.b16 %v226
        %v755 = vunpack.c.l.b16 %v227
        %v756 = vunpack.c.l.b16 %v228
        %v757 = vunpack.c.l.b16 %v229
        %v758 = vunpack.c.l.b16 %v230
        %v759 = vunpack.c.l.b16 %v231
        %v760 = vunpack.c.l.b16 %v232
        %v761 = vunpack.c.l.b16 %v233
        %v762 = vunpack.c.l.b16 %v234
        %v763 = vunpack.c.l.b16 %v235
        %v764 = vunpack.c.l.b16 %v236
        %v765 = vunpack.c.l.b16 %v237
        %v766 = vunpack.c.l.b16 %v238
        %v767 = vunpack.c.l.b16 %v239
        %v768 = vunpack.c.l.b16 %v240
        %v769 = vunpack.c.l.b16 %v241
        %v770 = vunpack.c.l.b16 %v242
        %v771 = vunpack.c.l.b16 %v243
        %v772 = vunpack.c.l.b16 %v244
        %v773 = vunpack.c.l.b16 %v245
        %v774 = vunpack.c.l.b16 %v246
        %v775 = vunpack.c.l.b16 %v247
        %v776 = vunpack.c.l.b16 %v248
        %v777 = vunpack.c.l.b16 %v249
        %v778 = vunpack.c.l.b16 %v250
        %v779 = vunpack.c.l.b16 %v251
        %v780 = vunpack.c.l.b16 %v252
        %v781 = vunpack.c.l.b16 %v253
        %v782 = vunpack.c.l.b16 %v254
        %v783 = vunpack.c.l.b16 %v255
        %v784 = vunpack.c.l.b16 %v256
        %v785 = vunpack.c.l.b16 %v257
        %v786 = vunpack.c.l.b16 %v258
        %v787 = vunpack.c.l.b16 %v259
        %v788 = vunpack.c.l.b16 %v260
        %v789 = vunpack.c.l.b16 %v261
        %v790 = vunpack.c.l.b16 %v262
        %v791 = vunpack.c.l.b16 %v263
        %v792 = vunpack.c.l.b16 %v264
        %v793 = vunpack.c.l.b16 %v265
        %v794 = vunpack.c.l.b16 %v266
        %v795 = vunpack.c.l.b16 %v267
        %v796 = vunpack.c.l.b16 %v268
        %v797 = vunpack.c.l.b16 %v269
        %v798 = vunpack.c.l.b16 %v270
        %v799 = vunpack.c.l.b16 %v271
        %v800 = vunpack.c.l.b16 %v272
        %v801 = vunpack.c.l.b16 %v273
        %v802 = vunpack.c.l.b16 %v274
        %v803 = vunpack.c.l.b16 %v275
        %v804 = vunpack.c.l.b16 %v276
        %v805 = vunpack.c.l.b16 %v277
        %v806 = vunpack.c.l.b16 %v278
        %v807 = vunpack.c.l.b16 %v279
        %v808 = vunpack.c.l.b16 %v280
        %v809 = vunpack.c.l.b16 %v281
        %v810 = vunpack.c.l.b16 %v282
        %v811 = vunpack.c.l.b16 %v283
        %v812 = vunpack.c.l.b16 %v284
        %v813 = vunpack.c.l.b16 %v285
        %v814 = vunpack.c.l.b16 %v286
        %v815 = vunpack.c.l.b16 %v287
        %v816 = vunpack.c.l.b16 %v288
        %v817 = vunpack.c.l.b16 %v289
        %v818 = vunpack.c.l.b16 %v290
        %v819 = vunpack.c.l.b16 %v291
        %v820 = vunpack.c.l.b16 %v292
        %v821 = vunpack.c.l.b16 %v293
        %v822 = vunpack.c.l.b16 %v294
        %v823 = vunpack.c.l.b16 %v295
        %v824 = vunpack.c.l.b16 %v296
        %v825 = vunpack.c.l.b16 %v297
        %v826 = vunpack.c.l.b16 %v298
        %v827 = vunpack.c.l.b16 %v299
        %v828 = vunpack.c.l.b16 %v300
        %v829 = vunpack.c.l.b16 %v301
        %v830 = vunpack.c.l.b16 %v302
        %v831 = vunpack.c.l.b16 %v303
        %v832 = vunpack.c.l.b16 %v304
        %v833 = vunpack.c.l.b16 %v305
        %v834 = vunpack.c.l.b16 %v306
        %v835 = vunpack.c.l.b16 %v307
        %v836 = vunpack.c.l.b16 %v308
        %v837 = vunpack.c.l.b16 %v309
        %v838 = vunpack.c.l.b16 %v310
        %v839 = vunpack.c.l.b16 %v311
        %v840 = vunpack.c.l.b16 %v312
        %v841 = vunpack.c.l.b16 %v313
        %v842 = vunpack.c.l.b16 %v314
        %v843 = vunpack.c.l.b16 %v315
        %v844 = vunpack.c.l.b16 %v316
        %v845 = vunpack.c.l.b16 %v317
        %v846 = vunpack.c.l.b16 %v318
        %v847 = vunpack.c.l.b16 %v319
        %v848 = vunpack.c.l.b16 %v320
        %v849 = vunpack.c.l.b16 %v321
        %v850 = vunpack.c.l.b16 %v322
        %v851 = vunpack.c.l.b16 %v323
        %v852 = vunpack.c.l.b16 %v324
        %v853 = vunpack.c.l.b16 %v325
        %v854 = vunpack.c.l.b16 %v326
        %v855 = vunpack.c.l.b16 %v327
        %v856 = vunpack.c.l.b16 %v328
        %v857 = vunpack.c.l.b16 %v329
        %v858 = vunpack.c.l.b16 %v330
        %v859 = vunpack.c.l.b16 %v331
        %v860 = vunpack.c.l.b16 %v332
        %v861 = vunpack.c.l.b16 %v333
        %v862 = vunpack.c.l.b16 %v334
        %v863 = vunpack.c.l.b16 %v335
        %v864 = vunpack.c.l.b16 %v336
        %v865 = vunpack.c.l.b16 %v337
        %v866 = vunpack.c.l.b16 %v338
        %v867 = vunpack.c.l.b16 %v339
        %v868 = vunpack.c.l.b16 %v340
        %v869 = vunpack.c.l.b16 %v341
        %v870 = vunpack.c.l.b16 %v342
        %v871 = vunpack.c.l.b16 %v343
        %v872 = vunpack.c.l.b16 %v344
        %v873 = vunpack.c.l.b16 %v345
        %v874 = vunpack.c.l.b16 %v346
        %v875 = vunpack.c.l.b16 %v347
        %v876 = vunpack.c.l.b16 %v348
        %v877 = vunpack.c.l.b16 %v349
        %v878 = vunpack.c.l.b16 %v350
        %v879 = vunpack.c.l.b16 %v351
        %v880 = vunpack.c.l.b16 %v352
        %v881 = vunpack.c.l.b16 %v353
        %v882 = vunpack.c.l.b16 %v354
        %v883 = vunpack.c.l.b16 %v355
        %v884 = vunpack.c.l.b16 %v356
        %v885 = vunpack.c.l.b16 %v357
        %v886 = vunpack.c.l.b16 %v358
        %v887 = vunpack.c.l.b16 %v359
        %v888 = vunpack.c.l.b16 %v360
        %v889 = vunpack.c.l.b16 %v361
        %v890 = vunpack.c.l.b16 %v362
        %v891 = vunpack.c.l.b16 %v363
        %v892 = vunpack.c.l.b16 %v364
        %v893 = vunpack.c.l.b16 %v365
        %v894 = vunpack.c.l.b16 %v366
        %v895 = vunpack.c.l.b16 %v367
        %v896 = vunpack.c.l.b16 %v368
        %v897 = vunpack.c.l.b16 %v369
        %v898 = vunpack.c.l.b16 %v370
        %v899 = vunpack.c.l.b16 %v371
        %v900 = vunpack.c.l.b16 %v372
        %v901 = vunpack.c.l.b16 %v373
        %v902 = vunpack.c.l.b16 %v374
        %v903 = vunpack.c.l.b16 %v375
        %v904 = vunpack.c.l.b16 %v376
        %v905 = vunpack.c.l.b16 %v377
        %v906 = vunpack.c.l.b16 %v378
        %v907 = vunpack.c.l.b16 %v379
        %v908 = vunpack.c.l.b16 %v380
        %v909 = vunpack.c.l.b16 %v381
        %v910 = vunpack.c.l.b16 %v382
        %v911 = vunpack.c.l.b16 %v383
        %v912 = vunpack.c.l.b16 %v384
        %v913 = vunpack.c.l.b16 %v385
        %v914 = vunpack.c.l.b16 %v386
        %v915 = vunpack.c.l.b16 %v387
        %v916 = vunpack.c.l.b16 %v388
        %v917 = vunpack.c.l.b16 %v389
        %v918 = vunpack.c.l.b16 %v390
        %v919 = vunpack.c.l.b16 %v391
        %v920 = vunpack.c.l.b16 %v392
        %v921 = vunpack.c.l.b16 %v393
        %v922 = vunpack.c.l.b16 %v394
        %v923 = vunpack.c.l.b16 %v395
        %v924 = vunpack.c.l.b16 %v396
        %v925 = vunpack.c.l.b16 %v397
        %v926 = vunpack.c.l.b16 %v398
        %v927 = vunpack.c.l.b16 %v399
        %v928 = vunpack.c.l.b16 %v400
        %v929 = vunpack.c.l.b16 %v401
        %v930 = vunpack.c.l.b16 %v402
        %v931 = vunpack.c.l.b16 %v403
        %v932 = vunpack.c.l.b16 %v404
        %v933 = vunpack.c.l.b16 %v405
        %v934 = vunpack.c.l.b16 %v406
        %v935 = vunpack.c.l.b16 %v407
        %v936 = vunpack.c.l.b16 %v408
        %v937 = vunpack.c.l.b16 %v409
        %v938 = vunpack.c.l.b16 %v410
        %v939 = vunpack.c.l.b16 %v411
        %v940 = vunpack.c.l.b16 %v412
        %v941 = vunpack.c.l.b16 %v413
        %v942 = vunpack.c.l.b16 %v414
        %v943 = vunpack.c.l.b16 %v415
        %v944 = vunpack.c.l.b16 %v416
        %v945 = vunpack.c.l.b16 %v417
        %v946 = vunpack.c.l.b16 %v418
        %v947 = vunpack.c.l.b16 %v419
        %v948 = vunpack.c.l.b16 %v420
        %v949 = vunpack.c.l.b16 %v421
        %v950 = vunpack.c.l.b16 %v422
        %v951 = vunpack.c.l.b16 %v423
        %v952 = vunpack.c.l.b16 %v424
        %v953 = vunpack.c.l.b16 %v425
        %v954 = vunpack.c.l.b16 %v426
        %v955 = vunpack.c.l.b16 %v427
        %v956 = vunpack.c.l.b16 %v428
        %v957 = vunpack.c.l.b16 %v429
        %v958 = vunpack.c.l.b16 %v430
        %v959 = vunpack.c.l.b16 %v431
        %v960 = vunpack.c.l.b16 %v432
        %v961 = vunpack.c.l.b16 %v433
        %v962 = vunpack.c.l.b16 %v434
        %v963 = vunpack.c.l.b16 %v435
        %v964 = vunpack.c.l.b16 %v436
        %v965 = vunpack.c.l.b16 %v437
        %v966 = vunpack.c.l.b16 %v438
        %v967 = vunpack.c.l.b16 %v439
        %v968 = vunpack.c.l.b16 %v440
        %v969 = vunpack.c.l.b16 %v441
        %v970 = vunpack.c.l.b16 %v442
        %v971 = vunpack.c.l.b16 %v443
        %v972 = vunpack.c.l.b16 %v444
        %v973 = vunpack.c.l.b16 %v445
        %v974 = vunpack.c.l.b16 %v446
        %v975 = vunpack.c.l.b16 %v447
        %v976 = vunpack.c.l.b16 %v448
        %v977 = vunpack.c.l.b16 %v449
        %v978 = vunpack.c.l.b16 %v450
        %v979 = vunpack.c.l.b16 %v451
        %v980 = vunpack.c.l.b16 %v452
        %v981 = vunpack.c.l.b16 %v453
        %v982 = vunpack.c.l.b16 %v454
        %v983 = vunpack.c.l.b16 %v455
        %v984 = vunpack.c.l.b16 %v456
        %v985 = vunpack.c.l.b16 %v457
        %v986 = vunpack.c.l.b16 %v458
        %v987 = vunpack.c.l.b16 %v459
        %v988 = vunpack.c.l.b16 %v460
        %v989 = vunpack.c.l.b16 %v461
        %v990 = vunpack.c.l.b16 %v462
        %v991 = vunpack.c.l.b16 %v463
        %v992 = vunpack.c.l.b16 %v464
        %v993 = vunpack.c.l.b16 %v465
        %v994 = vunpack.c.l.b16 %v466
        %v995 = vunpack.c.l.b16 %v467
        %v996 = vunpack.c.l.b16 %v468
        %v997 = vunpack.c.l.b16 %v469
        %v998 = vunpack.c.l.b16 %v470
        %v999 = vunpack.c.l.b16 %v471
        %v1000 = vunpack.c.l.b16 %v472
        %v1001 = vunpack.c.l.b16 %v473
        %v1002 = vunpack.c.l.b16 %v474
        %v1003 = vunpack.c.l.b16 %v475
        %v1004 = vunpack.c.l.b16 %v476
        %v1005 = vunpack.c.l.b16 %v477
        %v1006 = vunpack.c.l.b16 %v478
        %v1007 = vunpack.c.l.b16 %v479
        %v1008 = vunpack.c.l.b16 %v480
        %v1009 = vpack.c.b16 %v754, %v753
        %v1010 = vpack.c.b16 %v756, %v755
        %v1011 = vpack.c.b16 %v758, %v757
        %v1012 = vpack.c.b16 %v760, %v759
        %v1013 = vpack.c.b16 %v762, %v761
        %v1014 = vpack.c.b16 %v764, %v763
        %v1015 = vpack.c.b16 %v766, %v765
        %v1016 = vpack.c.b16 %v768, %v767
        %v1017 = vpack.c.b16 %v770, %v769
        %v1018 = vpack.c.b16 %v772, %v771
        %v1019 = vpack.c.b16 %v774, %v773
        %v1020 = vpack.c.b16 %v776, %v775
        %v1021 = vpack.c.b16 %v778, %v777
        %v1022 = vpack.c.b16 %v780, %v779
        %v1023 = vpack.c.b16 %v782, %v781
        %v1024 = vpack.c.b16 %v784, %v783
        %v1025 = vpack.c.b16 %v786, %v785
        %v1026 = vpack.c.b16 %v788, %v787
        %v1027 = vpack.c.b16 %v790, %v789
        %v1028 = vpack.c.b16 %v792, %v791
        %v1029 = vpack.c.b16 %v794, %v793
        %v1030 = vpack.c.b16 %v796, %v795
        %v1031 = vpack.c.b16 %v798, %v797
        %v1032 = vpack.c.b16 %v800, %v799
        %v1033 = vpack.c.b16 %v802, %v801
        %v1034 = vpack.c.b16 %v804, %v803
        %v1035 = vpack.c.b16 %v806, %v805
        %v1036 = vpack.c.b16 %v808, %v807
        %v1037 = vpack.c.b16 %v810, %v809
        %v1038 = vpack.c.b16 %v812, %v811
        %v1039 = vpack.c.b16 %v814, %v813
        %v1040 = vpack.c.b16 %v816, %v815
        %v1041 = vpack.c.b16 %v818, %v817
        %v1042 = vpack.c.b16 %v820, %v819
        %v1043 = vpack.c.b16 %v822, %v821
        %v1044 = vpack.c.b16 %v824, %v823
        %v1045 = vpack.c.b16 %v826, %v825
        %v1046 = vpack.c.b16 %v828, %v827
        %v1047 = vpack.c.b16 %v830, %v829
        %v1048 = vpack.c.b16 %v832, %v831
        %v1049 = vpack.c.b16 %v834, %v833
        %v1050 = vpack.c.b16 %v836, %v835
        %v1051 = vpack.c.b16 %v838, %v837
        %v1052 = vpack.c.b16 %v840, %v839
        %v1053 = vpack.c.b16 %v842, %v841
        %v1054 = vpack.c.b16 %v844, %v843
        %v1055 = vpack.c.b16 %v846, %v845
        %v1056 = vpack.c.b16 %v848, %v847
        %v1057 = vpack.c.b16 %v850, %v849
        %v1058 = vpack.c.b16 %v852, %v851
        %v1059 = vpack.c.b16 %v854, %v853
        %v1060 = vpack.c.b16 %v856, %v855
        %v1061 = vpack.c.b16 %v858, %v857
        %v1062 = vpack.c.b16 %v860, %v859
        %v1063 = vpack.c.b16 %v862, %v861
        %v1064 = vpack.c.b16 %v864, %v863
        %v1065 = vpack.c.b16 %v866, %v865
        %v1066 = vpack.c.b16 %v868, %v867
        %v1067 = vpack.c.b16 %v870, %v869
        %v1068 = vpack.c.b16 %v872, %v871
        %v1069 = vpack.c.b16 %v874, %v873
        %v1070 = vpack.c.b16 %v876, %v875
        %v1071 = vpack.c.b16 %v878, %v877
        %v1072 = vpack.c.b16 %v880, %v879
        %v1073 = vpack.c.b16 %v882, %v881
        %v1074 = vpack.c.b16 %v884, %v883
        %v1075 = vpack.c.b16 %v886, %v885
        %v1076 = vpack.c.b16 %v888, %v887
        %v1077 = vpack.c.b16 %v890, %v889
        %v1078 = vpack.c.b16 %v892, %v891
        %v1079 = vpack.c.b16 %v894, %v893
        %v1080 = vpack.c.b16 %v896, %v895
        %v1081 = vpack.c.b16 %v898, %v897
        %v1082 = vpack.c.b16 %v900, %v899
        %v1083 = vpack.c.b16 %v902, %v901
        %v1084 = vpack.c.b16 %v904, %v903
        %v1085 = vpack.c.b16 %v906, %v905
        %v1086 = vpack.c.b16 %v908, %v907
        %v1087 = vpack.c.b16 %v910, %v909
        %v1088 = vpack.c.b16 %v912, %v911
        %v1089 = vpack.c.b16 %v914, %v913
        %v1090 = vpack.c.b16 %v916, %v915
        %v1091 = vpack.c.b16 %v918, %v917
        %v1092 = vpack.c.b16 %v920, %v919
        %v1093 = vpack.c.b16 %v922, %v921
        %v1094 = vpack.c.b16 %v924, %v923
        %v1095 = vpack.c.b16 %v926, %v925
        %v1096 = vpack.c.b16 %v928, %v927
        %v1097 = vpack.c.b16 %v930, %v929
        %v1098 = vpack.c.b16 %v932, %v931
        %v1099 = vpack.c.b16 %v934, %v933
        %v1100 = vpack.c.b16 %v936, %v935
        %v1101 = vpack.c.b16 %v938, %v937
        %v1102 = vpack.c.b16 %v940, %v939
        %v1103 = vpack.c.b16 %v942, %v941
        %v1104 = vpack.c.b16 %v944, %v943
        %v1105 = vpack.c.b16 %v946, %v945
        %v1106 = vpack.c.b16 %v948, %v947
        %v1107 = vpack.c.b16 %v950, %v949
        %v1108 = vpack.c.b16 %v952, %v951
        %v1109 = vpack.c.b16 %v954, %v953
        %v1110 = vpack.c.b16 %v956, %v955
        %v1111 = vpack.c.b16 %v958, %v957
        %v1112 = vpack.c.b16 %v960, %v959
        %v1113 = vpack.c.b16 %v962, %v961
        %v1114 = vpack.c.b16 %v964, %v963
        %v1115 = vpack.c.b16 %v966, %v965
        %v1116 = vpack.c.b16 %v968, %v967
        %v1117 = vpack.c.b16 %v970, %v969
        %v1118 = vpack.c.b16 %v972, %v971
        %v1119 = vpack.c.b16 %v974, %v973
        %v1120 = vpack.c.b16 %v976, %v975
        %v1121 = vpack.c.b16 %v978, %v977
        %v1122 = vpack.c.b16 %v980, %v979
        %v1123 = vpack.c.b16 %v982, %v981
        %v1124 = vpack.c.b16 %v984, %v983
        %v1125 = vpack.c.b16 %v986, %v985
        %v1126 = vpack.c.b16 %v988, %v987
        %v1127 = vpack.c.b16 %v990, %v989
        %v1128 = vpack.c.b16 %v992, %v991
        %v1129 = vpack.c.b16 %v994, %v993
        %v1130 = vpack.c.b16 %v996, %v995
        %v1131 = vpack.c.b16 %v998, %v997
        %v1132 = vpack.c.b16 %v1000, %v999
        %v1133 = vpack.c.b16 %v1002, %v1001
        %v1134 = vpack.c.b16 %v1004, %v1003
        %v1135 = vpack.c.b16 %v1006, %v1005
        %v1136 = vpack.c.b16 %v1008, %v1007
        %v1281 = vunpack.c.l.b16 %v481
        %v1282 = vunpack.c.h.b16 %v481
        %v1283 = vunpack.c.l.b16 %v482
        %v1284 = vunpack.c.h.b16 %v482
        %v1285 = vunpack.c.l.b16 %v483
        %v1286 = vunpack.c.h.b16 %v483
        %v1287 = vunpack.c.l.b16 %v484
        %v1288 = vunpack.c.h.b16 %v484
        %v1289 = vunpack.c.l.b16 %v485
        %v1290 = vunpack.c.h.b16 %v485
        %v1291 = vunpack.c.l.b16 %v486
        %v1292 = vunpack.c.h.b16 %v486
        %v1293 = vunpack.c.l.b16 %v487
        %v1294 = vunpack.c.h.b16 %v487
        %v1295 = vunpack.c.l.b16 %v488
        %v1296 = vunpack.c.h.b16 %v488
        %v1297 = vunpack.c.l.b16 %v489
        %v1298 = vunpack.c.h.b16 %v489
        %v1299 = vunpack.c.l.b16 %v490
        %v1300 = vunpack.c.h.b16 %v490
        %v1301 = vunpack.c.l.b16 %v491
        %v1302 = vunpack.c.h.b16 %v491
        %v1303 = vunpack.c.l.b16 %v492
        %v1304 = vunpack.c.h.b16 %v492
        %v1305 = vunpack.c.l.b16 %v493
        %v1306 = vunpack.c.h.b16 %v493
        %v1307 = vunpack.c.l.b16 %v494
        %v1308 = vunpack.c.h.b16 %v494
        %v1309 = vunpack.c.l.b16 %v495
        %v1310 = vunpack.c.h.b16 %v495
        %v1311 = vunpack.c.l.b16 %v496
        %v1312 = vunpack.c.h.b16 %v496
        %v1313 = vpack.c.b16 %v1283, %v1281
        %v1314 = vpack.c.b16 %v1284, %v1282
        %v1315 = vpack.c.b16 %v1287, %v1285
        %v1316 = vpack.c.b16 %v1288, %v1286
        %v1317 = vpack.c.b16 %v1291, %v1289
        %v1318 = vpack.c.b16 %v1292, %v1290
        %v1319 = vpack.c.b16 %v1295, %v1293
        %v1320 = vpack.c.b16 %v1296, %v1294
        %v1321 = vpack.c.b16 %v1299, %v1297
        %v1322 = vpack.c.b16 %v1300, %v1298
        %v1323 = vpack.c.b16 %v1303, %v1301
        %v1324 = vpack.c.b16 %v1304, %v1302
        %v1325 = vpack.c.b16 %v1307, %v1305
        %v1326 = vpack.c.b16 %v1308, %v1306
        %v1327 = vpack.c.b16 %v1311, %v1309
        %v1328 = vpack.c.b16 %v1312, %v1310
        %1345 = vmatpush.bf16.msra.mxu0 %v1327
        %1346 = vmatpush.bf16.msra.mxu0 %v1325
        %1347 = vmatpush.bf16.msra.mxu0 %v1323
        %1348 = vmatpush.bf16.msra.mxu0 %v1321
        %1349 = vmatpush.bf16.msra.mxu0 %v1319
        %1350 = vmatpush.bf16.msra.mxu0 %v1317
        %1351 = vmatpush.bf16.msra.mxu0 %v1315
        %1352 = vmatpush.bf16.msra.mxu0 %v1313
        %1353 = vmatmul.bf16.gmra.mxu0 %v1009
        %v1354 = vpop.f32.mrf.mxu0
        %v1355 = vadd.f32 0.0, %v1354
        %v1356 = vpop.f32.mrf.mxu0
        %v1357 = vadd.f32 0.0, %v1356
        %1358 = vmatmul.bf16.gmra.mxu0 %v1010
        %v1359 = vpop.f32.mrf.mxu0
        %v1360 = vadd.f32 0.0, %v1359
        %v1361 = vpop.f32.mrf.mxu0
        %v1362 = vadd.f32 0.0, %v1361
        %1363 = vmatmul.bf16.gmra.mxu0 %v1011
        %v1364 = vpop.f32.mrf.mxu0
        %v1365 = vadd.f32 0.0, %v1364
        %v1366 = vpop.f32.mrf.mxu0
        %v1367 = vadd.f32 0.0, %v1366
        %1368 = vmatmul.bf16.gmra.mxu0 %v1012
        %v1369 = vpop.f32.mrf.mxu0
        %v1370 = vadd.f32 0.0, %v1369
        %v1371 = vpop.f32.mrf.mxu0
        %v1372 = vadd.f32 0.0, %v1371
        %1373 = vmatmul.bf16.gmra.mxu0 %v1013
        %v1374 = vpop.f32.mrf.mxu0
        %v1375 = vadd.f32 0.0, %v1374
        %v1376 = vpop.f32.mrf.mxu0
        %v1377 = vadd.f32 0.0, %v1376
        %1378 = vmatmul.bf16.gmra.mxu0 %v1014
        %v1379 = vpop.f32.mrf.mxu0
        %v1380 = vadd.f32 0.0, %v1379
        %v1381 = vpop.f32.mrf.mxu0
        %v1382 = vadd.f32 0.0, %v1381
        %1383 = vmatmul.bf16.gmra.mxu0 %v1015
        %v1384 = vpop.f32.mrf.mxu0
        %v1385 = vadd.f32 0.0, %v1384
        %v1386 = vpop.f32.mrf.mxu0
        %v1387 = vadd.f32 0.0, %v1386
        %1388 = vmatmul.bf16.gmra.mxu0 %v1016
        %v1389 = vpop.f32.mrf.mxu0
        %v1390 = vadd.f32 0.0, %v1389
        %v1391 = vpop.f32.mrf.mxu0
        %v1392 = vadd.f32 0.0, %v1391
        %1393 = vmatmul.bf16.gmra.mxu0 %v1017
        %v1394 = vpop.f32.mrf.mxu0
        %v1395 = vadd.f32 0.0, %v1394
        %v1396 = vpop.f32.mrf.mxu0
        %v1397 = vadd.f32 0.0, %v1396
        %1398 = vmatmul.bf16.gmra.mxu0 %v1018
        %v1399 = vpop.f32.mrf.mxu0
        %v1400 = vadd.f32 0.0, %v1399
        %v1401 = vpop.f32.mrf.mxu0
        %v1402 = vadd.f32 0.0, %v1401
        %1403 = vmatmul.bf16.gmra.mxu0 %v1019
        %v1404 = vpop.f32.mrf.mxu0
        %v1405 = vadd.f32 0.0, %v1404
        %v1406 = vpop.f32.mrf.mxu0
        %v1407 = vadd.f32 0.0, %v1406
        %1408 = vmatmul.bf16.gmra.mxu0 %v1020
        %v1409 = vpop.f32.mrf.mxu0
        %v1410 = vadd.f32 0.0, %v1409
        %v1411 = vpop.f32.mrf.mxu0
        %v1412 = vadd.f32 0.0, %v1411
        %1413 = vmatmul.bf16.gmra.mxu0 %v1021
        %v1414 = vpop.f32.mrf.mxu0
        %v1415 = vadd.f32 0.0, %v1414
        %v1416 = vpop.f32.mrf.mxu0
        %v1417 = vadd.f32 0.0, %v1416
        %1418 = vmatmul.bf16.gmra.mxu0 %v1022
        %v1419 = vpop.f32.mrf.mxu0
        %v1420 = vadd.f32 0.0, %v1419
        %v1421 = vpop.f32.mrf.mxu0
        %v1422 = vadd.f32 0.0, %v1421
        %1423 = vmatmul.bf16.gmra.mxu0 %v1023
        %v1424 = vpop.f32.mrf.mxu0
        %v1425 = vadd.f32 0.0, %v1424
        %v1426 = vpop.f32.mrf.mxu0
        %v1427 = vadd.f32 0.0, %v1426
        %1428 = vmatmul.bf16.gmra.mxu0 %v1024
        %v1429 = vpop.f32.mrf.mxu0
        %v1430 = vadd.f32 0.0, %v1429
        %v1431 = vpop.f32.mrf.mxu0
        %v1432 = vadd.f32 0.0, %v1431
        %1433 = vmatmul.bf16.gmra.mxu0 %v1025
        %v1434 = vpop.f32.mrf.mxu0
        %v1435 = vadd.f32 0.0, %v1434
        %v1436 = vpop.f32.mrf.mxu0
        %v1437 = vadd.f32 0.0, %v1436
        %1438 = vmatmul.bf16.gmra.mxu0 %v1026
        %v1439 = vpop.f32.mrf.mxu0
        %v1440 = vadd.f32 0.0, %v1439
        %v1441 = vpop.f32.mrf.mxu0
        %v1442 = vadd.f32 0.0, %v1441
        %1443 = vmatmul.bf16.gmra.mxu0 %v1027
        %v1444 = vpop.f32.mrf.mxu0
        %v1445 = vadd.f32 0.0, %v1444
        %v1446 = vpop.f32.mrf.mxu0
        %v1447 = vadd.f32 0.0, %v1446
        %1448 = vmatmul.bf16.gmra.mxu0 %v1028
        %v1449 = vpop.f32.mrf.mxu0
        %v1450 = vadd.f32 0.0, %v1449
        %v1451 = vpop.f32.mrf.mxu0
        %v1452 = vadd.f32 0.0, %v1451
        %1453 = vmatmul.bf16.gmra.mxu0 %v1029
        %v1454 = vpop.f32.mrf.mxu0
        %v1455 = vadd.f32 0.0, %v1454
        %v1456 = vpop.f32.mrf.mxu0
        %v1457 = vadd.f32 0.0, %v1456
        %1458 = vmatmul.bf16.gmra.mxu0 %v1030
        %v1459 = vpop.f32.mrf.mxu0
        %v1460 = vadd.f32 0.0, %v1459
        %v1461 = vpop.f32.mrf.mxu0
        %v1462 = vadd.f32 0.0, %v1461
        %1463 = vmatmul.bf16.gmra.mxu0 %v1031
        %v1464 = vpop.f32.mrf.mxu0
        %v1465 = vadd.f32 0.0, %v1464
        %v1466 = vpop.f32.mrf.mxu0
        %v1467 = vadd.f32 0.0, %v1466
        %1468 = vmatmul.bf16.gmra.mxu0 %v1032
        %v1469 = vpop.f32.mrf.mxu0
        %v1470 = vadd.f32 0.0, %v1469
        %v1471 = vpop.f32.mrf.mxu0
        %v1472 = vadd.f32 0.0, %v1471
        %1473 = vmatmul.bf16.gmra.mxu0 %v1033
        %v1474 = vpop.f32.mrf.mxu0
        %v1475 = vadd.f32 0.0, %v1474
        %v1476 = vpop.f32.mrf.mxu0
        %v1477 = vadd.f32 0.0, %v1476
        %1478 = vmatmul.bf16.gmra.mxu0 %v1034
        %v1479 = vpop.f32.mrf.mxu0
        %v1480 = vadd.f32 0.0, %v1479
        %v1481 = vpop.f32.mrf.mxu0
        %v1482 = vadd.f32 0.0, %v1481
        %1483 = vmatmul.bf16.gmra.mxu0 %v1035
        %v1484 = vpop.f32.mrf.mxu0
        %v1485 = vadd.f32 0.0, %v1484
        %v1486 = vpop.f32.mrf.mxu0
        %v1487 = vadd.f32 0.0, %v1486
        %1488 = vmatmul.bf16.gmra.mxu0 %v1036
        %v1489 = vpop.f32.mrf.mxu0
        %v1490 = vadd.f32 0.0, %v1489
        %v1491 = vpop.f32.mrf.mxu0
        %v1492 = vadd.f32 0.0, %v1491
        %1493 = vmatmul.bf16.gmra.mxu0 %v1037
        %v1494 = vpop.f32.mrf.mxu0
        %v1495 = vadd.f32 0.0, %v1494
        %v1496 = vpop.f32.mrf.mxu0
        %v1497 = vadd.f32 0.0, %v1496
        %1498 = vmatmul.bf16.gmra.mxu0 %v1038
        %v1499 = vpop.f32.mrf.mxu0
        %v1500 = vadd.f32 0.0, %v1499
        %v1501 = vpop.f32.mrf.mxu0
        %v1502 = vadd.f32 0.0, %v1501
        %1503 = vmatmul.bf16.gmra.mxu0 %v1039
        %v1504 = vpop.f32.mrf.mxu0
        %v1505 = vadd.f32 0.0, %v1504
        %v1506 = vpop.f32.mrf.mxu0
        %v1507 = vadd.f32 0.0, %v1506
        %1508 = vmatmul.bf16.gmra.mxu0 %v1040
        %v1509 = vpop.f32.mrf.mxu0
        %v1510 = vadd.f32 0.0, %v1509
        %v1511 = vpop.f32.mrf.mxu0
        %v1512 = vadd.f32 0.0, %v1511
        %1513 = vmatmul.bf16.gmra.mxu0 %v1041
        %v1514 = vpop.f32.mrf.mxu0
        %v1515 = vadd.f32 0.0, %v1514
        %v1516 = vpop.f32.mrf.mxu0
        %v1517 = vadd.f32 0.0, %v1516
        %1518 = vmatmul.bf16.gmra.mxu0 %v1042
        %v1519 = vpop.f32.mrf.mxu0
        %v1520 = vadd.f32 0.0, %v1519
        %v1521 = vpop.f32.mrf.mxu0
        %v1522 = vadd.f32 0.0, %v1521
        %1523 = vmatmul.bf16.gmra.mxu0 %v1043
        %v1524 = vpop.f32.mrf.mxu0
        %v1525 = vadd.f32 0.0, %v1524
        %v1526 = vpop.f32.mrf.mxu0
        %v1527 = vadd.f32 0.0, %v1526
        %1528 = vmatmul.bf16.gmra.mxu0 %v1044
        %v1529 = vpop.f32.mrf.mxu0
        %v1530 = vadd.f32 0.0, %v1529
        %v1531 = vpop.f32.mrf.mxu0
        %v1532 = vadd.f32 0.0, %v1531
        %1533 = vmatmul.bf16.gmra.mxu0 %v1045
        %v1534 = vpop.f32.mrf.mxu0
        %v1535 = vadd.f32 0.0, %v1534
        %v1536 = vpop.f32.mrf.mxu0
        %v1537 = vadd.f32 0.0, %v1536
        %1538 = vmatmul.bf16.gmra.mxu0 %v1046
        %v1539 = vpop.f32.mrf.mxu0
        %v1540 = vadd.f32 0.0, %v1539
        %v1541 = vpop.f32.mrf.mxu0
        %v1542 = vadd.f32 0.0, %v1541
        %1543 = vmatmul.bf16.gmra.mxu0 %v1047
        %v1544 = vpop.f32.mrf.mxu0
        %v1545 = vadd.f32 0.0, %v1544
        %v1546 = vpop.f32.mrf.mxu0
        %v1547 = vadd.f32 0.0, %v1546
        %1548 = vmatmul.bf16.gmra.mxu0 %v1048
        %v1549 = vpop.f32.mrf.mxu0
        %v1550 = vadd.f32 0.0, %v1549
        %v1551 = vpop.f32.mrf.mxu0
        %v1552 = vadd.f32 0.0, %v1551
        %1553 = vmatmul.bf16.gmra.mxu0 %v1049
        %v1554 = vpop.f32.mrf.mxu0
        %v1555 = vadd.f32 0.0, %v1554
        %v1556 = vpop.f32.mrf.mxu0
        %v1557 = vadd.f32 0.0, %v1556
        %1558 = vmatmul.bf16.gmra.mxu0 %v1050
        %v1559 = vpop.f32.mrf.mxu0
        %v1560 = vadd.f32 0.0, %v1559
        %v1561 = vpop.f32.mrf.mxu0
        %v1562 = vadd.f32 0.0, %v1561
        %1563 = vmatmul.bf16.gmra.mxu0 %v1051
        %v1564 = vpop.f32.mrf.mxu0
        %v1565 = vadd.f32 0.0, %v1564
        %v1566 = vpop.f32.mrf.mxu0
        %v1567 = vadd.f32 0.0, %v1566
        %1568 = vmatmul.bf16.gmra.mxu0 %v1052
        %v1569 = vpop.f32.mrf.mxu0
        %v1570 = vadd.f32 0.0, %v1569
        %v1571 = vpop.f32.mrf.mxu0
        %v1572 = vadd.f32 0.0, %v1571
        %1573 = vmatmul.bf16.gmra.mxu0 %v1053
        %v1574 = vpop.f32.mrf.mxu0
        %v1575 = vadd.f32 0.0, %v1574
        %v1576 = vpop.f32.mrf.mxu0
        %v1577 = vadd.f32 0.0, %v1576
        %1578 = vmatmul.bf16.gmra.mxu0 %v1054
        %v1579 = vpop.f32.mrf.mxu0
        %v1580 = vadd.f32 0.0, %v1579
        %v1581 = vpop.f32.mrf.mxu0
        %v1582 = vadd.f32 0.0, %v1581
        %1583 = vmatmul.bf16.gmra.mxu0 %v1055
        %v1584 = vpop.f32.mrf.mxu0
        %v1585 = vadd.f32 0.0, %v1584
        %v1586 = vpop.f32.mrf.mxu0
        %v1587 = vadd.f32 0.0, %v1586
        %1588 = vmatmul.bf16.gmra.mxu0 %v1056
        %v1589 = vpop.f32.mrf.mxu0
        %v1590 = vadd.f32 0.0, %v1589
        %v1591 = vpop.f32.mrf.mxu0
        %v1592 = vadd.f32 0.0, %v1591
        %1593 = vmatmul.bf16.gmra.mxu0 %v1057
        %v1594 = vpop.f32.mrf.mxu0
        %v1595 = vadd.f32 0.0, %v1594
        %v1596 = vpop.f32.mrf.mxu0
        %v1597 = vadd.f32 0.0, %v1596
        %1598 = vmatmul.bf16.gmra.mxu0 %v1058
        %v1599 = vpop.f32.mrf.mxu0
        %v1600 = vadd.f32 0.0, %v1599
        %v1601 = vpop.f32.mrf.mxu0
        %v1602 = vadd.f32 0.0, %v1601
        %1603 = vmatmul.bf16.gmra.mxu0 %v1059
        %v1604 = vpop.f32.mrf.mxu0
        %v1605 = vadd.f32 0.0, %v1604
        %v1606 = vpop.f32.mrf.mxu0
        %v1607 = vadd.f32 0.0, %v1606
        %1608 = vmatmul.bf16.gmra.mxu0 %v1060
        %v1609 = vpop.f32.mrf.mxu0
        %v1610 = vadd.f32 0.0, %v1609
        %v1611 = vpop.f32.mrf.mxu0
        %v1612 = vadd.f32 0.0, %v1611
        %1613 = vmatmul.bf16.gmra.mxu0 %v1061
        %v1614 = vpop.f32.mrf.mxu0
        %v1615 = vadd.f32 0.0, %v1614
        %v1616 = vpop.f32.mrf.mxu0
        %v1617 = vadd.f32 0.0, %v1616
        %1618 = vmatmul.bf16.gmra.mxu0 %v1062
        %v1619 = vpop.f32.mrf.mxu0
        %v1620 = vadd.f32 0.0, %v1619
        %v1621 = vpop.f32.mrf.mxu0
        %v1622 = vadd.f32 0.0, %v1621
        %1623 = vmatmul.bf16.gmra.mxu0 %v1063
        %v1624 = vpop.f32.mrf.mxu0
        %v1625 = vadd.f32 0.0, %v1624
        %v1626 = vpop.f32.mrf.mxu0
        %v1627 = vadd.f32 0.0, %v1626
        %1628 = vmatmul.bf16.gmra.mxu0 %v1064
        %v1629 = vpop.f32.mrf.mxu0
        %v1630 = vadd.f32 0.0, %v1629
        %v1631 = vpop.f32.mrf.mxu0
        %v1632 = vadd.f32 0.0, %v1631
        %1633 = vmatmul.bf16.gmra.mxu0 %v1065
        %v1634 = vpop.f32.mrf.mxu0
        %v1635 = vadd.f32 0.0, %v1634
        %v1636 = vpop.f32.mrf.mxu0
        %v1637 = vadd.f32 0.0, %v1636
        %1638 = vmatmul.bf16.gmra.mxu0 %v1066
        %v1639 = vpop.f32.mrf.mxu0
        %v1640 = vadd.f32 0.0, %v1639
        %v1641 = vpop.f32.mrf.mxu0
        %v1642 = vadd.f32 0.0, %v1641
        %1643 = vmatmul.bf16.gmra.mxu0 %v1067
        %v1644 = vpop.f32.mrf.mxu0
        %v1645 = vadd.f32 0.0, %v1644
        %v1646 = vpop.f32.mrf.mxu0
        %v1647 = vadd.f32 0.0, %v1646
        %1648 = vmatmul.bf16.gmra.mxu0 %v1068
        %v1649 = vpop.f32.mrf.mxu0
        %v1650 = vadd.f32 0.0, %v1649
        %v1651 = vpop.f32.mrf.mxu0
        %v1652 = vadd.f32 0.0, %v1651
        %1653 = vmatmul.bf16.gmra.mxu0 %v1069
        %v1654 = vpop.f32.mrf.mxu0
        %v1655 = vadd.f32 0.0, %v1654
        %v1656 = vpop.f32.mrf.mxu0
        %v1657 = vadd.f32 0.0, %v1656
        %1658 = vmatmul.bf16.gmra.mxu0 %v1070
        %v1659 = vpop.f32.mrf.mxu0
        %v1660 = vadd.f32 0.0, %v1659
        %v1661 = vpop.f32.mrf.mxu0
        %v1662 = vadd.f32 0.0, %v1661
        %1663 = vmatmul.bf16.gmra.mxu0 %v1071
        %v1664 = vpop.f32.mrf.mxu0
        %v1665 = vadd.f32 0.0, %v1664
        %v1666 = vpop.f32.mrf.mxu0
        %v1667 = vadd.f32 0.0, %v1666
        %1668 = vmatmul.bf16.gmra.mxu0 %v1072
        %v1669 = vpop.f32.mrf.mxu0
        %v1670 = vadd.f32 0.0, %v1669
        %v1671 = vpop.f32.mrf.mxu0
        %v1672 = vadd.f32 0.0, %v1671
        %1673 = vmatmul.bf16.gmra.mxu0 %v1073
        %v1674 = vpop.f32.mrf.mxu0
        %v1675 = vadd.f32 0.0, %v1674
        %v1676 = vpop.f32.mrf.mxu0
        %v1677 = vadd.f32 0.0, %v1676
        %1678 = vmatmul.bf16.gmra.mxu0 %v1074
        %v1679 = vpop.f32.mrf.mxu0
        %v1680 = vadd.f32 0.0, %v1679
        %v1681 = vpop.f32.mrf.mxu0
        %v1682 = vadd.f32 0.0, %v1681
        %1683 = vmatmul.bf16.gmra.mxu0 %v1075
        %v1684 = vpop.f32.mrf.mxu0
        %v1685 = vadd.f32 0.0, %v1684
        %v1686 = vpop.f32.mrf.mxu0
        %v1687 = vadd.f32 0.0, %v1686
        %1688 = vmatmul.bf16.gmra.mxu0 %v1076
        %v1689 = vpop.f32.mrf.mxu0
        %v1690 = vadd.f32 0.0, %v1689
        %v1691 = vpop.f32.mrf.mxu0
        %v1692 = vadd.f32 0.0, %v1691
        %1693 = vmatmul.bf16.gmra.mxu0 %v1077
        %v1694 = vpop.f32.mrf.mxu0
        %v1695 = vadd.f32 0.0, %v1694
        %v1696 = vpop.f32.mrf.mxu0
        %v1697 = vadd.f32 0.0, %v1696
        %1698 = vmatmul.bf16.gmra.mxu0 %v1078
        %v1699 = vpop.f32.mrf.mxu0
        %v1700 = vadd.f32 0.0, %v1699
        %v1701 = vpop.f32.mrf.mxu0
        %v1702 = vadd.f32 0.0, %v1701
        %1703 = vmatmul.bf16.gmra.mxu0 %v1079
        %v1704 = vpop.f32.mrf.mxu0
        %v1705 = vadd.f32 0.0, %v1704
        %v1706 = vpop.f32.mrf.mxu0
        %v1707 = vadd.f32 0.0, %v1706
        %1708 = vmatmul.bf16.gmra.mxu0 %v1080
        %v1709 = vpop.f32.mrf.mxu0
        %v1710 = vadd.f32 0.0, %v1709
        %v1711 = vpop.f32.mrf.mxu0
        %v1712 = vadd.f32 0.0, %v1711
        %1713 = vmatmul.bf16.gmra.mxu0 %v1081
        %v1714 = vpop.f32.mrf.mxu0
        %v1715 = vadd.f32 0.0, %v1714
        %v1716 = vpop.f32.mrf.mxu0
        %v1717 = vadd.f32 0.0, %v1716
        %1718 = vmatmul.bf16.gmra.mxu0 %v1082
        %v1719 = vpop.f32.mrf.mxu0
        %v1720 = vadd.f32 0.0, %v1719
        %v1721 = vpop.f32.mrf.mxu0
        %v1722 = vadd.f32 0.0, %v1721
        %1723 = vmatmul.bf16.gmra.mxu0 %v1083
        %v1724 = vpop.f32.mrf.mxu0
        %v1725 = vadd.f32 0.0, %v1724
        %v1726 = vpop.f32.mrf.mxu0
        %v1727 = vadd.f32 0.0, %v1726
        %1728 = vmatmul.bf16.gmra.mxu0 %v1084
        %v1729 = vpop.f32.mrf.mxu0
        %v1730 = vadd.f32 0.0, %v1729
        %v1731 = vpop.f32.mrf.mxu0
        %v1732 = vadd.f32 0.0, %v1731
        %1733 = vmatmul.bf16.gmra.mxu0 %v1085
        %v1734 = vpop.f32.mrf.mxu0
        %v1735 = vadd.f32 0.0, %v1734
        %v1736 = vpop.f32.mrf.mxu0
        %v1737 = vadd.f32 0.0, %v1736
        %1738 = vmatmul.bf16.gmra.mxu0 %v1086
        %v1739 = vpop.f32.mrf.mxu0
        %v1740 = vadd.f32 0.0, %v1739
        %v1741 = vpop.f32.mrf.mxu0
        %v1742 = vadd.f32 0.0, %v1741
        %1743 = vmatmul.bf16.gmra.mxu0 %v1087
        %v1744 = vpop.f32.mrf.mxu0
        %v1745 = vadd.f32 0.0, %v1744
        %v1746 = vpop.f32.mrf.mxu0
        %v1747 = vadd.f32 0.0, %v1746
        %1748 = vmatmul.bf16.gmra.mxu0 %v1088
        %v1749 = vpop.f32.mrf.mxu0
        %v1750 = vadd.f32 0.0, %v1749
        %v1751 = vpop.f32.mrf.mxu0
        %v1752 = vadd.f32 0.0, %v1751
        %1753 = vmatmul.bf16.gmra.mxu0 %v1089
        %v1754 = vpop.f32.mrf.mxu0
        %v1755 = vadd.f32 0.0, %v1754
        %v1756 = vpop.f32.mrf.mxu0
        %v1757 = vadd.f32 0.0, %v1756
        %1758 = vmatmul.bf16.gmra.mxu0 %v1090
        %v1759 = vpop.f32.mrf.mxu0
        %v1760 = vadd.f32 0.0, %v1759
        %v1761 = vpop.f32.mrf.mxu0
        %v1762 = vadd.f32 0.0, %v1761
        %1763 = vmatmul.bf16.gmra.mxu0 %v1091
        %v1764 = vpop.f32.mrf.mxu0
        %v1765 = vadd.f32 0.0, %v1764
        %v1766 = vpop.f32.mrf.mxu0
        %v1767 = vadd.f32 0.0, %v1766
        %1768 = vmatmul.bf16.gmra.mxu0 %v1092
        %v1769 = vpop.f32.mrf.mxu0
        %v1770 = vadd.f32 0.0, %v1769
        %v1771 = vpop.f32.mrf.mxu0
        %v1772 = vadd.f32 0.0, %v1771
        %1773 = vmatmul.bf16.gmra.mxu0 %v1093
        %v1774 = vpop.f32.mrf.mxu0
        %v1775 = vadd.f32 0.0, %v1774
        %v1776 = vpop.f32.mrf.mxu0
        %v1777 = vadd.f32 0.0, %v1776
        %1778 = vmatmul.bf16.gmra.mxu0 %v1094
        %v1779 = vpop.f32.mrf.mxu0
        %v1780 = vadd.f32 0.0, %v1779
        %v1781 = vpop.f32.mrf.mxu0
        %v1782 = vadd.f32 0.0, %v1781
        %1783 = vmatmul.bf16.gmra.mxu0 %v1095
        %v1784 = vpop.f32.mrf.mxu0
        %v1785 = vadd.f32 0.0, %v1784
        %v1786 = vpop.f32.mrf.mxu0
        %v1787 = vadd.f32 0.0, %v1786
        %1788 = vmatmul.bf16.gmra.mxu0 %v1096
        %v1789 = vpop.f32.mrf.mxu0
        %v1790 = vadd.f32 0.0, %v1789
        %v1791 = vpop.f32.mrf.mxu0
        %v1792 = vadd.f32 0.0, %v1791
        %1793 = vmatmul.bf16.gmra.mxu0 %v1097
        %v1794 = vpop.f32.mrf.mxu0
        %v1795 = vadd.f32 0.0, %v1794
        %v1796 = vpop.f32.mrf.mxu0
        %v1797 = vadd.f32 0.0, %v1796
        %1798 = vmatmul.bf16.gmra.mxu0 %v1098
        %v1799 = vpop.f32.mrf.mxu0
        %v1800 = vadd.f32 0.0, %v1799
        %v1801 = vpop.f32.mrf.mxu0
        %v1802 = vadd.f32 0.0, %v1801
        %1803 = vmatmul.bf16.gmra.mxu0 %v1099
        %v1804 = vpop.f32.mrf.mxu0
        %v1805 = vadd.f32 0.0, %v1804
        %v1806 = vpop.f32.mrf.mxu0
        %v1807 = vadd.f32 0.0, %v1806
        %1808 = vmatmul.bf16.gmra.mxu0 %v1100
        %v1809 = vpop.f32.mrf.mxu0
        %v1810 = vadd.f32 0.0, %v1809
        %v1811 = vpop.f32.mrf.mxu0
        %v1812 = vadd.f32 0.0, %v1811
        %1813 = vmatmul.bf16.gmra.mxu0 %v1101
        %v1814 = vpop.f32.mrf.mxu0
        %v1815 = vadd.f32 0.0, %v1814
        %v1816 = vpop.f32.mrf.mxu0
        %v1817 = vadd.f32 0.0, %v1816
        %1818 = vmatmul.bf16.gmra.mxu0 %v1102
        %v1819 = vpop.f32.mrf.mxu0
        %v1820 = vadd.f32 0.0, %v1819
        %v1821 = vpop.f32.mrf.mxu0
        %v1822 = vadd.f32 0.0, %v1821
        %1823 = vmatmul.bf16.gmra.mxu0 %v1103
        %v1824 = vpop.f32.mrf.mxu0
        %v1825 = vadd.f32 0.0, %v1824
        %v1826 = vpop.f32.mrf.mxu0
        %v1827 = vadd.f32 0.0, %v1826
        %1828 = vmatmul.bf16.gmra.mxu0 %v1104
        %v1829 = vpop.f32.mrf.mxu0
        %v1830 = vadd.f32 0.0, %v1829
        %v1831 = vpop.f32.mrf.mxu0
        %v1832 = vadd.f32 0.0, %v1831
        %1833 = vmatmul.bf16.gmra.mxu0 %v1105
        %v1834 = vpop.f32.mrf.mxu0
        %v1835 = vadd.f32 0.0, %v1834
        %v1836 = vpop.f32.mrf.mxu0
        %v1837 = vadd.f32 0.0, %v1836
        %1838 = vmatmul.bf16.gmra.mxu0 %v1106
        %v1839 = vpop.f32.mrf.mxu0
        %v1840 = vadd.f32 0.0, %v1839
        %v1841 = vpop.f32.mrf.mxu0
        %v1842 = vadd.f32 0.0, %v1841
        %1843 = vmatmul.bf16.gmra.mxu0 %v1107
        %v1844 = vpop.f32.mrf.mxu0
        %v1845 = vadd.f32 0.0, %v1844
        %v1846 = vpop.f32.mrf.mxu0
        %v1847 = vadd.f32 0.0, %v1846
        %1848 = vmatmul.bf16.gmra.mxu0 %v1108
        %v1849 = vpop.f32.mrf.mxu0
        %v1850 = vadd.f32 0.0, %v1849
        %v1851 = vpop.f32.mrf.mxu0
        %v1852 = vadd.f32 0.0, %v1851
        %1853 = vmatmul.bf16.gmra.mxu0 %v1109
        %v1854 = vpop.f32.mrf.mxu0
        %v1855 = vadd.f32 0.0, %v1854
        %v1856 = vpop.f32.mrf.mxu0
        %v1857 = vadd.f32 0.0, %v1856
        %1858 = vmatmul.bf16.gmra.mxu0 %v1110
        %v1859 = vpop.f32.mrf.mxu0
        %v1860 = vadd.f32 0.0, %v1859
        %v1861 = vpop.f32.mrf.mxu0
        %v1862 = vadd.f32 0.0, %v1861
        %1863 = vmatmul.bf16.gmra.mxu0 %v1111
        %v1864 = vpop.f32.mrf.mxu0
        %v1865 = vadd.f32 0.0, %v1864
        %v1866 = vpop.f32.mrf.mxu0
        %v1867 = vadd.f32 0.0, %v1866
        %1868 = vmatmul.bf16.gmra.mxu0 %v1112
        %v1869 = vpop.f32.mrf.mxu0
        %v1870 = vadd.f32 0.0, %v1869
        %v1871 = vpop.f32.mrf.mxu0
        %v1872 = vadd.f32 0.0, %v1871
        %1873 = vmatmul.bf16.gmra.mxu0 %v1113
        %v1874 = vpop.f32.mrf.mxu0
        %v1875 = vadd.f32 0.0, %v1874
        %v1876 = vpop.f32.mrf.mxu0
        %v1877 = vadd.f32 0.0, %v1876
        %1878 = vmatmul.bf16.gmra.mxu0 %v1114
        %v1879 = vpop.f32.mrf.mxu0
        %v1880 = vadd.f32 0.0, %v1879
        %v1881 = vpop.f32.mrf.mxu0
        %v1882 = vadd.f32 0.0, %v1881
        %1883 = vmatmul.bf16.gmra.mxu0 %v1115
        %v1884 = vpop.f32.mrf.mxu0
        %v1885 = vadd.f32 0.0, %v1884
        %v1886 = vpop.f32.mrf.mxu0
        %v1887 = vadd.f32 0.0, %v1886
        %1888 = vmatmul.bf16.gmra.mxu0 %v1116
        %v1889 = vpop.f32.mrf.mxu0
        %v1890 = vadd.f32 0.0, %v1889
        %v1891 = vpop.f32.mrf.mxu0
        %v1892 = vadd.f32 0.0, %v1891
        %1893 = vmatmul.bf16.gmra.mxu0 %v1117
        %v1894 = vpop.f32.mrf.mxu0
        %v1895 = vadd.f32 0.0, %v1894
        %v1896 = vpop.f32.mrf.mxu0
        %v1897 = vadd.f32 0.0, %v1896
        %1898 = vmatmul.bf16.gmra.mxu0 %v1118
        %v1899 = vpop.f32.mrf.mxu0
        %v1900 = vadd.f32 0.0, %v1899
        %v1901 = vpop.f32.mrf.mxu0
        %v1902 = vadd.f32 0.0, %v1901
        %1903 = vmatmul.bf16.gmra.mxu0 %v1119
        %v1904 = vpop.f32.mrf.mxu0
        %v1905 = vadd.f32 0.0, %v1904
        %v1906 = vpop.f32.mrf.mxu0
        %v1907 = vadd.f32 0.0, %v1906
        %1908 = vmatmul.bf16.gmra.mxu0 %v1120
        %v1909 = vpop.f32.mrf.mxu0
        %v1910 = vadd.f32 0.0, %v1909
        %v1911 = vpop.f32.mrf.mxu0
        %v1912 = vadd.f32 0.0, %v1911
        %1913 = vmatmul.bf16.gmra.mxu0 %v1121
        %v1914 = vpop.f32.mrf.mxu0
        %v1915 = vadd.f32 0.0, %v1914
        %v1916 = vpop.f32.mrf.mxu0
        %v1917 = vadd.f32 0.0, %v1916
        %1918 = vmatmul.bf16.gmra.mxu0 %v1122
        %v1919 = vpop.f32.mrf.mxu0
        %v1920 = vadd.f32 0.0, %v1919
        %v1921 = vpop.f32.mrf.mxu0
        %v1922 = vadd.f32 0.0, %v1921
        %1923 = vmatmul.bf16.gmra.mxu0 %v1123
        %v1924 = vpop.f32.mrf.mxu0
        %v1925 = vadd.f32 0.0, %v1924
        %v1926 = vpop.f32.mrf.mxu0
        %v1927 = vadd.f32 0.0, %v1926
        %1928 = vmatmul.bf16.gmra.mxu0 %v1124
        %v1929 = vpop.f32.mrf.mxu0
        %v1930 = vadd.f32 0.0, %v1929
        %v1931 = vpop.f32.mrf.mxu0
        %v1932 = vadd.f32 0.0, %v1931
        %1933 = vmatmul.bf16.gmra.mxu0 %v1125
        %v1934 = vpop.f32.mrf.mxu0
        %v1935 = vadd.f32 0.0, %v1934
        %v1936 = vpop.f32.mrf.mxu0
        %v1937 = vadd.f32 0.0, %v1936
        %1938 = vmatmul.bf16.gmra.mxu0 %v1126
        %v1939 = vpop.f32.mrf.mxu0
        %v1940 = vadd.f32 0.0, %v1939
        %v1941 = vpop.f32.mrf.mxu0
        %v1942 = vadd.f32 0.0, %v1941
        %1943 = vmatmul.bf16.gmra.mxu0 %v1127
        %v1944 = vpop.f32.mrf.mxu0
        %v1945 = vadd.f32 0.0, %v1944
        %v1946 = vpop.f32.mrf.mxu0
        %v1947 = vadd.f32 0.0, %v1946
        %1948 = vmatmul.bf16.gmra.mxu0 %v1128
        %v1949 = vpop.f32.mrf.mxu0
        %v1950 = vadd.f32 0.0, %v1949
        %v1951 = vpop.f32.mrf.mxu0
        %v1952 = vadd.f32 0.0, %v1951
        %1953 = vmatmul.bf16.gmra.mxu0 %v1129
        %v1954 = vpop.f32.mrf.mxu0
        %v1955 = vadd.f32 0.0, %v1954
        %v1956 = vpop.f32.mrf.mxu0
        %v1957 = vadd.f32 0.0, %v1956
        %1958 = vmatmul.bf16.gmra.mxu0 %v1130
        %v1959 = vpop.f32.mrf.mxu0
        %v1960 = vadd.f32 0.0, %v1959
        %v1961 = vpop.f32.mrf.mxu0
        %v1962 = vadd.f32 0.0, %v1961
        %1963 = vmatmul.bf16.gmra.mxu0 %v1131
        %v1964 = vpop.f32.mrf.mxu0
        %v1965 = vadd.f32 0.0, %v1964
        %v1966 = vpop.f32.mrf.mxu0
        %v1967 = vadd.f32 0.0, %v1966
        %1968 = vmatmul.bf16.gmra.mxu0 %v1132
        %v1969 = vpop.f32.mrf.mxu0
        %v1970 = vadd.f32 0.0, %v1969
        %v1971 = vpop.f32.mrf.mxu0
        %v1972 = vadd.f32 0.0, %v1971
        %1973 = vmatmul.bf16.gmra.mxu0 %v1133
        %v1974 = vpop.f32.mrf.mxu0
        %v1975 = vadd.f32 0.0, %v1974
        %v1976 = vpop.f32.mrf.mxu0
        %v1977 = vadd.f32 0.0, %v1976
        %1978 = vmatmul.bf16.gmra.mxu0 %v1134
        %v1979 = vpop.f32.mrf.mxu0
        %v1980 = vadd.f32 0.0, %v1979
        %v1981 = vpop.f32.mrf.mxu0
        %v1982 = vadd.f32 0.0, %v1981
        %1983 = vmatmul.bf16.gmra.mxu0 %v1135
        %v1984 = vpop.f32.mrf.mxu0
        %v1985 = vadd.f32 0.0, %v1984
        %v1986 = vpop.f32.mrf.mxu0
        %v1987 = vadd.f32 0.0, %v1986
        %1988 = vmatmul.bf16.gmra.mxu0 %v1136
        %v1989 = vpop.f32.mrf.mxu0
        %v1990 = vadd.f32 0.0, %v1989
        %v1991 = vpop.f32.mrf.mxu0
        %v1992 = vadd.f32 0.0, %v1991
        %1993 = vdwg.mxu0
        %1994 = vmatpush.bf16.msra.mxu0 %v1328
        %1995 = vmatpush.bf16.msra.mxu0 %v1326
        %1996 = vmatpush.bf16.msra.mxu0 %v1324
        %1997 = vmatpush.bf16.msra.mxu0 %v1322
        %1998 = vmatpush.bf16.msra.mxu0 %v1320
        %1999 = vmatpush.bf16.msra.mxu0 %v1318
        %2000 = vmatpush.bf16.msra.mxu0 %v1316
        %2001 = vmatpush.bf16.msra.mxu0 %v1314
        %2002 = vmatmul.bf16.gmra.mxu0 %v1009
        %v2003 = vpop.f32.mrf.mxu0
        %v2004 = vadd.f32 0.0, %v2003
        %v2005 = vpop.f32.mrf.mxu0
        %v2006 = vadd.f32 0.0, %v2005
        %2007 = vmatmul.bf16.gmra.mxu0 %v1010
        %v2008 = vpop.f32.mrf.mxu0
        %v2009 = vadd.f32 0.0, %v2008
        %v2010 = vpop.f32.mrf.mxu0
        %v2011 = vadd.f32 0.0, %v2010
        %2012 = vmatmul.bf16.gmra.mxu0 %v1011
        %v2013 = vpop.f32.mrf.mxu0
        %v2014 = vadd.f32 0.0, %v2013
        %v2015 = vpop.f32.mrf.mxu0
        %v2016 = vadd.f32 0.0, %v2015
        %2017 = vmatmul.bf16.gmra.mxu0 %v1012
        %v2018 = vpop.f32.mrf.mxu0
        %v2019 = vadd.f32 0.0, %v2018
        %v2020 = vpop.f32.mrf.mxu0
        %v2021 = vadd.f32 0.0, %v2020
        %2022 = vmatmul.bf16.gmra.mxu0 %v1013
        %v2023 = vpop.f32.mrf.mxu0
        %v2024 = vadd.f32 0.0, %v2023
        %v2025 = vpop.f32.mrf.mxu0
        %v2026 = vadd.f32 0.0, %v2025
        %2027 = vmatmul.bf16.gmra.mxu0 %v1014
        %v2028 = vpop.f32.mrf.mxu0
        %v2029 = vadd.f32 0.0, %v2028
        %v2030 = vpop.f32.mrf.mxu0
        %v2031 = vadd.f32 0.0, %v2030
        %2032 = vmatmul.bf16.gmra.mxu0 %v1015
        %v2033 = vpop.f32.mrf.mxu0
        %v2034 = vadd.f32 0.0, %v2033
        %v2035 = vpop.f32.mrf.mxu0
        %v2036 = vadd.f32 0.0, %v2035
        %2037 = vmatmul.bf16.gmra.mxu0 %v1016
        %v2038 = vpop.f32.mrf.mxu0
        %v2039 = vadd.f32 0.0, %v2038
        %v2040 = vpop.f32.mrf.mxu0
        %v2041 = vadd.f32 0.0, %v2040
        %2042 = vmatmul.bf16.gmra.mxu0 %v1017
        %v2043 = vpop.f32.mrf.mxu0
        %v2044 = vadd.f32 0.0, %v2043
        %v2045 = vpop.f32.mrf.mxu0
        %v2046 = vadd.f32 0.0, %v2045
        %2047 = vmatmul.bf16.gmra.mxu0 %v1018
        %v2048 = vpop.f32.mrf.mxu0
        %v2049 = vadd.f32 0.0, %v2048
        %v2050 = vpop.f32.mrf.mxu0
        %v2051 = vadd.f32 0.0, %v2050
        %2052 = vmatmul.bf16.gmra.mxu0 %v1019
        %v2053 = vpop.f32.mrf.mxu0
        %v2054 = vadd.f32 0.0, %v2053
        %v2055 = vpop.f32.mrf.mxu0
        %v2056 = vadd.f32 0.0, %v2055
        %2057 = vmatmul.bf16.gmra.mxu0 %v1020
        %v2058 = vpop.f32.mrf.mxu0
        %v2059 = vadd.f32 0.0, %v2058
        %v2060 = vpop.f32.mrf.mxu0
        %v2061 = vadd.f32 0.0, %v2060
        %2062 = vmatmul.bf16.gmra.mxu0 %v1021
        %v2063 = vpop.f32.mrf.mxu0
        %v2064 = vadd.f32 0.0, %v2063
        %v2065 = vpop.f32.mrf.mxu0
        %v2066 = vadd.f32 0.0, %v2065
        %2067 = vmatmul.bf16.gmra.mxu0 %v1022
        %v2068 = vpop.f32.mrf.mxu0
        %v2069 = vadd.f32 0.0, %v2068
        %v2070 = vpop.f32.mrf.mxu0
        %v2071 = vadd.f32 0.0, %v2070
        %2072 = vmatmul.bf16.gmra.mxu0 %v1023
        %v2073 = vpop.f32.mrf.mxu0
        %v2074 = vadd.f32 0.0, %v2073
        %v2075 = vpop.f32.mrf.mxu0
        %v2076 = vadd.f32 0.0, %v2075
        %2077 = vmatmul.bf16.gmra.mxu0 %v1024
        %v2078 = vpop.f32.mrf.mxu0
        %v2079 = vadd.f32 0.0, %v2078
        %v2080 = vpop.f32.mrf.mxu0
        %v2081 = vadd.f32 0.0, %v2080
        %2082 = vmatmul.bf16.gmra.mxu0 %v1025
        %v2083 = vpop.f32.mrf.mxu0
        %v2084 = vadd.f32 0.0, %v2083
        %v2085 = vpop.f32.mrf.mxu0
        %v2086 = vadd.f32 0.0, %v2085
        %2087 = vmatmul.bf16.gmra.mxu0 %v1026
        %v2088 = vpop.f32.mrf.mxu0
        %v2089 = vadd.f32 0.0, %v2088
        %v2090 = vpop.f32.mrf.mxu0
        %v2091 = vadd.f32 0.0, %v2090
        %2092 = vmatmul.bf16.gmra.mxu0 %v1027
        %v2093 = vpop.f32.mrf.mxu0
        %v2094 = vadd.f32 0.0, %v2093
        %v2095 = vpop.f32.mrf.mxu0
        %v2096 = vadd.f32 0.0, %v2095
        %2097 = vmatmul.bf16.gmra.mxu0 %v1028
        %v2098 = vpop.f32.mrf.mxu0
        %v2099 = vadd.f32 0.0, %v2098
        %v2100 = vpop.f32.mrf.mxu0
        %v2101 = vadd.f32 0.0, %v2100
        %2102 = vmatmul.bf16.gmra.mxu0 %v1029
        %v2103 = vpop.f32.mrf.mxu0
        %v2104 = vadd.f32 0.0, %v2103
        %v2105 = vpop.f32.mrf.mxu0
        %v2106 = vadd.f32 0.0, %v2105
        %2107 = vmatmul.bf16.gmra.mxu0 %v1030
        %v2108 = vpop.f32.mrf.mxu0
        %v2109 = vadd.f32 0.0, %v2108
        %v2110 = vpop.f32.mrf.mxu0
        %v2111 = vadd.f32 0.0, %v2110
        %2112 = vmatmul.bf16.gmra.mxu0 %v1031
        %v2113 = vpop.f32.mrf.mxu0
        %v2114 = vadd.f32 0.0, %v2113
        %v2115 = vpop.f32.mrf.mxu0
        %v2116 = vadd.f32 0.0, %v2115
        %2117 = vmatmul.bf16.gmra.mxu0 %v1032
        %v2118 = vpop.f32.mrf.mxu0
        %v2119 = vadd.f32 0.0, %v2118
        %v2120 = vpop.f32.mrf.mxu0
        %v2121 = vadd.f32 0.0, %v2120
        %2122 = vmatmul.bf16.gmra.mxu0 %v1033
        %v2123 = vpop.f32.mrf.mxu0
        %v2124 = vadd.f32 0.0, %v2123
        %v2125 = vpop.f32.mrf.mxu0
        %v2126 = vadd.f32 0.0, %v2125
        %2127 = vmatmul.bf16.gmra.mxu0 %v1034
        %v2128 = vpop.f32.mrf.mxu0
        %v2129 = vadd.f32 0.0, %v2128
        %v2130 = vpop.f32.mrf.mxu0
        %v2131 = vadd.f32 0.0, %v2130
        %2132 = vmatmul.bf16.gmra.mxu0 %v1035
        %v2133 = vpop.f32.mrf.mxu0
        %v2134 = vadd.f32 0.0, %v2133
        %v2135 = vpop.f32.mrf.mxu0
        %v2136 = vadd.f32 0.0, %v2135
        %2137 = vmatmul.bf16.gmra.mxu0 %v1036
        %v2138 = vpop.f32.mrf.mxu0
        %v2139 = vadd.f32 0.0, %v2138
        %v2140 = vpop.f32.mrf.mxu0
        %v2141 = vadd.f32 0.0, %v2140
        %2142 = vmatmul.bf16.gmra.mxu0 %v1037
        %v2143 = vpop.f32.mrf.mxu0
        %v2144 = vadd.f32 0.0, %v2143
        %v2145 = vpop.f32.mrf.mxu0
        %v2146 = vadd.f32 0.0, %v2145
        %2147 = vmatmul.bf16.gmra.mxu0 %v1038
        %v2148 = vpop.f32.mrf.mxu0
        %v2149 = vadd.f32 0.0, %v2148
        %v2150 = vpop.f32.mrf.mxu0
        %v2151 = vadd.f32 0.0, %v2150
        %2152 = vmatmul.bf16.gmra.mxu0 %v1039
        %v2153 = vpop.f32.mrf.mxu0
        %v2154 = vadd.f32 0.0, %v2153
        %v2155 = vpop.f32.mrf.mxu0
        %v2156 = vadd.f32 0.0, %v2155
        %2157 = vmatmul.bf16.gmra.mxu0 %v1040
        %v2158 = vpop.f32.mrf.mxu0
        %v2159 = vadd.f32 0.0, %v2158
        %v2160 = vpop.f32.mrf.mxu0
        %v2161 = vadd.f32 0.0, %v2160
        %2162 = vmatmul.bf16.gmra.mxu0 %v1041
        %v2163 = vpop.f32.mrf.mxu0
        %v2164 = vadd.f32 0.0, %v2163
        %v2165 = vpop.f32.mrf.mxu0
        %v2166 = vadd.f32 0.0, %v2165
        %2167 = vmatmul.bf16.gmra.mxu0 %v1042
        %v2168 = vpop.f32.mrf.mxu0
        %v2169 = vadd.f32 0.0, %v2168
        %v2170 = vpop.f32.mrf.mxu0
        %v2171 = vadd.f32 0.0, %v2170
        %2172 = vmatmul.bf16.gmra.mxu0 %v1043
        %v2173 = vpop.f32.mrf.mxu0
        %v2174 = vadd.f32 0.0, %v2173
        %v2175 = vpop.f32.mrf.mxu0
        %v2176 = vadd.f32 0.0, %v2175
        %2177 = vmatmul.bf16.gmra.mxu0 %v1044
        %v2178 = vpop.f32.mrf.mxu0
        %v2179 = vadd.f32 0.0, %v2178
        %v2180 = vpop.f32.mrf.mxu0
        %v2181 = vadd.f32 0.0, %v2180
        %2182 = vmatmul.bf16.gmra.mxu0 %v1045
        %v2183 = vpop.f32.mrf.mxu0
        %v2184 = vadd.f32 0.0, %v2183
        %v2185 = vpop.f32.mrf.mxu0
        %v2186 = vadd.f32 0.0, %v2185
        %2187 = vmatmul.bf16.gmra.mxu0 %v1046
        %v2188 = vpop.f32.mrf.mxu0
        %v2189 = vadd.f32 0.0, %v2188
        %v2190 = vpop.f32.mrf.mxu0
        %v2191 = vadd.f32 0.0, %v2190
        %2192 = vmatmul.bf16.gmra.mxu0 %v1047
        %v2193 = vpop.f32.mrf.mxu0
        %v2194 = vadd.f32 0.0, %v2193
        %v2195 = vpop.f32.mrf.mxu0
        %v2196 = vadd.f32 0.0, %v2195
        %2197 = vmatmul.bf16.gmra.mxu0 %v1048
        %v2198 = vpop.f32.mrf.mxu0
        %v2199 = vadd.f32 0.0, %v2198
        %v2200 = vpop.f32.mrf.mxu0
        %v2201 = vadd.f32 0.0, %v2200
        %2202 = vmatmul.bf16.gmra.mxu0 %v1049
        %v2203 = vpop.f32.mrf.mxu0
        %v2204 = vadd.f32 0.0, %v2203
        %v2205 = vpop.f32.mrf.mxu0
        %v2206 = vadd.f32 0.0, %v2205
        %2207 = vmatmul.bf16.gmra.mxu0 %v1050
        %v2208 = vpop.f32.mrf.mxu0
        %v2209 = vadd.f32 0.0, %v2208
        %v2210 = vpop.f32.mrf.mxu0
        %v2211 = vadd.f32 0.0, %v2210
        %2212 = vmatmul.bf16.gmra.mxu0 %v1051
        %v2213 = vpop.f32.mrf.mxu0
        %v2214 = vadd.f32 0.0, %v2213
        %v2215 = vpop.f32.mrf.mxu0
        %v2216 = vadd.f32 0.0, %v2215
        %2217 = vmatmul.bf16.gmra.mxu0 %v1052
        %v2218 = vpop.f32.mrf.mxu0
        %v2219 = vadd.f32 0.0, %v2218
        %v2220 = vpop.f32.mrf.mxu0
        %v2221 = vadd.f32 0.0, %v2220
        %2222 = vmatmul.bf16.gmra.mxu0 %v1053
        %v2223 = vpop.f32.mrf.mxu0
        %v2224 = vadd.f32 0.0, %v2223
        %v2225 = vpop.f32.mrf.mxu0
        %v2226 = vadd.f32 0.0, %v2225
        %2227 = vmatmul.bf16.gmra.mxu0 %v1054
        %v2228 = vpop.f32.mrf.mxu0
        %v2229 = vadd.f32 0.0, %v2228
        %v2230 = vpop.f32.mrf.mxu0
        %v2231 = vadd.f32 0.0, %v2230
        %2232 = vmatmul.bf16.gmra.mxu0 %v1055
        %v2233 = vpop.f32.mrf.mxu0
        %v2234 = vadd.f32 0.0, %v2233
        %v2235 = vpop.f32.mrf.mxu0
        %v2236 = vadd.f32 0.0, %v2235
        %2237 = vmatmul.bf16.gmra.mxu0 %v1056
        %v2238 = vpop.f32.mrf.mxu0
        %v2239 = vadd.f32 0.0, %v2238
        %v2240 = vpop.f32.mrf.mxu0
        %v2241 = vadd.f32 0.0, %v2240
        %2242 = vmatmul.bf16.gmra.mxu0 %v1057
        %v2243 = vpop.f32.mrf.mxu0
        %v2244 = vadd.f32 0.0, %v2243
        %v2245 = vpop.f32.mrf.mxu0
        %v2246 = vadd.f32 0.0, %v2245
        %2247 = vmatmul.bf16.gmra.mxu0 %v1058
        %v2248 = vpop.f32.mrf.mxu0
        %v2249 = vadd.f32 0.0, %v2248
        %v2250 = vpop.f32.mrf.mxu0
        %v2251 = vadd.f32 0.0, %v2250
        %2252 = vmatmul.bf16.gmra.mxu0 %v1059
        %v2253 = vpop.f32.mrf.mxu0
        %v2254 = vadd.f32 0.0, %v2253
        %v2255 = vpop.f32.mrf.mxu0
        %v2256 = vadd.f32 0.0, %v2255
        %2257 = vmatmul.bf16.gmra.mxu0 %v1060
        %v2258 = vpop.f32.mrf.mxu0
        %v2259 = vadd.f32 0.0, %v2258
        %v2260 = vpop.f32.mrf.mxu0
        %v2261 = vadd.f32 0.0, %v2260
        %2262 = vmatmul.bf16.gmra.mxu0 %v1061
        %v2263 = vpop.f32.mrf.mxu0
        %v2264 = vadd.f32 0.0, %v2263
        %v2265 = vpop.f32.mrf.mxu0
        %v2266 = vadd.f32 0.0, %v2265
        %2267 = vmatmul.bf16.gmra.mxu0 %v1062
        %v2268 = vpop.f32.mrf.mxu0
        %v2269 = vadd.f32 0.0, %v2268
        %v2270 = vpop.f32.mrf.mxu0
        %v2271 = vadd.f32 0.0, %v2270
        %2272 = vmatmul.bf16.gmra.mxu0 %v1063
        %v2273 = vpop.f32.mrf.mxu0
        %v2274 = vadd.f32 0.0, %v2273
        %v2275 = vpop.f32.mrf.mxu0
        %v2276 = vadd.f32 0.0, %v2275
        %2277 = vmatmul.bf16.gmra.mxu0 %v1064
        %v2278 = vpop.f32.mrf.mxu0
        %v2279 = vadd.f32 0.0, %v2278
        %v2280 = vpop.f32.mrf.mxu0
        %v2281 = vadd.f32 0.0, %v2280
        %2282 = vmatmul.bf16.gmra.mxu0 %v1065
        %v2283 = vpop.f32.mrf.mxu0
        %v2284 = vadd.f32 0.0, %v2283
        %v2285 = vpop.f32.mrf.mxu0
        %v2286 = vadd.f32 0.0, %v2285
        %2287 = vmatmul.bf16.gmra.mxu0 %v1066
        %v2288 = vpop.f32.mrf.mxu0
        %v2289 = vadd.f32 0.0, %v2288
        %v2290 = vpop.f32.mrf.mxu0
        %v2291 = vadd.f32 0.0, %v2290
        %2292 = vmatmul.bf16.gmra.mxu0 %v1067
        %v2293 = vpop.f32.mrf.mxu0
        %v2294 = vadd.f32 0.0, %v2293
        %v2295 = vpop.f32.mrf.mxu0
        %v2296 = vadd.f32 0.0, %v2295
        %2297 = vmatmul.bf16.gmra.mxu0 %v1068
        %v2298 = vpop.f32.mrf.mxu0
        %v2299 = vadd.f32 0.0, %v2298
        %v2300 = vpop.f32.mrf.mxu0
        %v2301 = vadd.f32 0.0, %v2300
        %2302 = vmatmul.bf16.gmra.mxu0 %v1069
        %v2303 = vpop.f32.mrf.mxu0
        %v2304 = vadd.f32 0.0, %v2303
        %v2305 = vpop.f32.mrf.mxu0
        %v2306 = vadd.f32 0.0, %v2305
        %2307 = vmatmul.bf16.gmra.mxu0 %v1070
        %v2308 = vpop.f32.mrf.mxu0
        %v2309 = vadd.f32 0.0, %v2308
        %v2310 = vpop.f32.mrf.mxu0
        %v2311 = vadd.f32 0.0, %v2310
        %2312 = vmatmul.bf16.gmra.mxu0 %v1071
        %v2313 = vpop.f32.mrf.mxu0
        %v2314 = vadd.f32 0.0, %v2313
        %v2315 = vpop.f32.mrf.mxu0
        %v2316 = vadd.f32 0.0, %v2315
        %2317 = vmatmul.bf16.gmra.mxu0 %v1072
        %v2318 = vpop.f32.mrf.mxu0
        %v2319 = vadd.f32 0.0, %v2318
        %v2320 = vpop.f32.mrf.mxu0
        %v2321 = vadd.f32 0.0, %v2320
        %2322 = vmatmul.bf16.gmra.mxu0 %v1073
        %v2323 = vpop.f32.mrf.mxu0
        %v2324 = vadd.f32 0.0, %v2323
        %v2325 = vpop.f32.mrf.mxu0
        %v2326 = vadd.f32 0.0, %v2325
        %2327 = vmatmul.bf16.gmra.mxu0 %v1074
        %v2328 = vpop.f32.mrf.mxu0
        %v2329 = vadd.f32 0.0, %v2328
        %v2330 = vpop.f32.mrf.mxu0
        %v2331 = vadd.f32 0.0, %v2330
        %2332 = vmatmul.bf16.gmra.mxu0 %v1075
        %v2333 = vpop.f32.mrf.mxu0
        %v2334 = vadd.f32 0.0, %v2333
        %v2335 = vpop.f32.mrf.mxu0
        %v2336 = vadd.f32 0.0, %v2335
        %2337 = vmatmul.bf16.gmra.mxu0 %v1076
        %v2338 = vpop.f32.mrf.mxu0
        %v2339 = vadd.f32 0.0, %v2338
        %v2340 = vpop.f32.mrf.mxu0
        %v2341 = vadd.f32 0.0, %v2340
        %2342 = vmatmul.bf16.gmra.mxu0 %v1077
        %v2343 = vpop.f32.mrf.mxu0
        %v2344 = vadd.f32 0.0, %v2343
        %v2345 = vpop.f32.mrf.mxu0
        %v2346 = vadd.f32 0.0, %v2345
        %2347 = vmatmul.bf16.gmra.mxu0 %v1078
        %v2348 = vpop.f32.mrf.mxu0
        %v2349 = vadd.f32 0.0, %v2348
        %v2350 = vpop.f32.mrf.mxu0
        %v2351 = vadd.f32 0.0, %v2350
        %2352 = vmatmul.bf16.gmra.mxu0 %v1079
        %v2353 = vpop.f32.mrf.mxu0
        %v2354 = vadd.f32 0.0, %v2353
        %v2355 = vpop.f32.mrf.mxu0
        %v2356 = vadd.f32 0.0, %v2355
        %2357 = vmatmul.bf16.gmra.mxu0 %v1080
        %v2358 = vpop.f32.mrf.mxu0
        %v2359 = vadd.f32 0.0, %v2358
        %v2360 = vpop.f32.mrf.mxu0
        %v2361 = vadd.f32 0.0, %v2360
        %2362 = vmatmul.bf16.gmra.mxu0 %v1081
        %v2363 = vpop.f32.mrf.mxu0
        %v2364 = vadd.f32 0.0, %v2363
        %v2365 = vpop.f32.mrf.mxu0
        %v2366 = vadd.f32 0.0, %v2365
        %2367 = vmatmul.bf16.gmra.mxu0 %v1082
        %v2368 = vpop.f32.mrf.mxu0
        %v2369 = vadd.f32 0.0, %v2368
        %v2370 = vpop.f32.mrf.mxu0
        %v2371 = vadd.f32 0.0, %v2370
        %2372 = vmatmul.bf16.gmra.mxu0 %v1083
        %v2373 = vpop.f32.mrf.mxu0
        %v2374 = vadd.f32 0.0, %v2373
        %v2375 = vpop.f32.mrf.mxu0
        %v2376 = vadd.f32 0.0, %v2375
        %2377 = vmatmul.bf16.gmra.mxu0 %v1084
        %v2378 = vpop.f32.mrf.mxu0
        %v2379 = vadd.f32 0.0, %v2378
        %v2380 = vpop.f32.mrf.mxu0
        %v2381 = vadd.f32 0.0, %v2380
        %2382 = vmatmul.bf16.gmra.mxu0 %v1085
        %v2383 = vpop.f32.mrf.mxu0
        %v2384 = vadd.f32 0.0, %v2383
        %v2385 = vpop.f32.mrf.mxu0
        %v2386 = vadd.f32 0.0, %v2385
        %2387 = vmatmul.bf16.gmra.mxu0 %v1086
        %v2388 = vpop.f32.mrf.mxu0
        %v2389 = vadd.f32 0.0, %v2388
        %v2390 = vpop.f32.mrf.mxu0
        %v2391 = vadd.f32 0.0, %v2390
        %2392 = vmatmul.bf16.gmra.mxu0 %v1087
        %v2393 = vpop.f32.mrf.mxu0
        %v2394 = vadd.f32 0.0, %v2393
        %v2395 = vpop.f32.mrf.mxu0
        %v2396 = vadd.f32 0.0, %v2395
        %2397 = vmatmul.bf16.gmra.mxu0 %v1088
        %v2398 = vpop.f32.mrf.mxu0
        %v2399 = vadd.f32 0.0, %v2398
        %v2400 = vpop.f32.mrf.mxu0
        %v2401 = vadd.f32 0.0, %v2400
        %2402 = vmatmul.bf16.gmra.mxu0 %v1089
        %v2403 = vpop.f32.mrf.mxu0
        %v2404 = vadd.f32 0.0, %v2403
        %v2405 = vpop.f32.mrf.mxu0
        %v2406 = vadd.f32 0.0, %v2405
        %2407 = vmatmul.bf16.gmra.mxu0 %v1090
        %v2408 = vpop.f32.mrf.mxu0
        %v2409 = vadd.f32 0.0, %v2408
        %v2410 = vpop.f32.mrf.mxu0
        %v2411 = vadd.f32 0.0, %v2410
        %2412 = vmatmul.bf16.gmra.mxu0 %v1091
        %v2413 = vpop.f32.mrf.mxu0
        %v2414 = vadd.f32 0.0, %v2413
        %v2415 = vpop.f32.mrf.mxu0
        %v2416 = vadd.f32 0.0, %v2415
        %2417 = vmatmul.bf16.gmra.mxu0 %v1092
        %v2418 = vpop.f32.mrf.mxu0
        %v2419 = vadd.f32 0.0, %v2418
        %v2420 = vpop.f32.mrf.mxu0
        %v2421 = vadd.f32 0.0, %v2420
        %2422 = vmatmul.bf16.gmra.mxu0 %v1093
        %v2423 = vpop.f32.mrf.mxu0
        %v2424 = vadd.f32 0.0, %v2423
        %v2425 = vpop.f32.mrf.mxu0
        %v2426 = vadd.f32 0.0, %v2425
        %2427 = vmatmul.bf16.gmra.mxu0 %v1094
        %v2428 = vpop.f32.mrf.mxu0
        %v2429 = vadd.f32 0.0, %v2428
        %v2430 = vpop.f32.mrf.mxu0
        %v2431 = vadd.f32 0.0, %v2430
        %2432 = vmatmul.bf16.gmra.mxu0 %v1095
        %v2433 = vpop.f32.mrf.mxu0
        %v2434 = vadd.f32 0.0, %v2433
        %v2435 = vpop.f32.mrf.mxu0
        %v2436 = vadd.f32 0.0, %v2435
        %2437 = vmatmul.bf16.gmra.mxu0 %v1096
        %v2438 = vpop.f32.mrf.mxu0
        %v2439 = vadd.f32 0.0, %v2438
        %v2440 = vpop.f32.mrf.mxu0
        %v2441 = vadd.f32 0.0, %v2440
        %2442 = vmatmul.bf16.gmra.mxu0 %v1097
        %v2443 = vpop.f32.mrf.mxu0
        %v2444 = vadd.f32 0.0, %v2443
        %v2445 = vpop.f32.mrf.mxu0
        %v2446 = vadd.f32 0.0, %v2445
        %2447 = vmatmul.bf16.gmra.mxu0 %v1098
        %v2448 = vpop.f32.mrf.mxu0
        %v2449 = vadd.f32 0.0, %v2448
        %v2450 = vpop.f32.mrf.mxu0
        %v2451 = vadd.f32 0.0, %v2450
        %2452 = vmatmul.bf16.gmra.mxu0 %v1099
        %v2453 = vpop.f32.mrf.mxu0
        %v2454 = vadd.f32 0.0, %v2453
        %v2455 = vpop.f32.mrf.mxu0
        %v2456 = vadd.f32 0.0, %v2455
        %2457 = vmatmul.bf16.gmra.mxu0 %v1100
        %v2458 = vpop.f32.mrf.mxu0
        %v2459 = vadd.f32 0.0, %v2458
        %v2460 = vpop.f32.mrf.mxu0
        %v2461 = vadd.f32 0.0, %v2460
        %2462 = vmatmul.bf16.gmra.mxu0 %v1101
        %v2463 = vpop.f32.mrf.mxu0
        %v2464 = vadd.f32 0.0, %v2463
        %v2465 = vpop.f32.mrf.mxu0
        %v2466 = vadd.f32 0.0, %v2465
        %2467 = vmatmul.bf16.gmra.mxu0 %v1102
        %v2468 = vpop.f32.mrf.mxu0
        %v2469 = vadd.f32 0.0, %v2468
        %v2470 = vpop.f32.mrf.mxu0
        %v2471 = vadd.f32 0.0, %v2470
        %2472 = vmatmul.bf16.gmra.mxu0 %v1103
        %v2473 = vpop.f32.mrf.mxu0
        %v2474 = vadd.f32 0.0, %v2473
        %v2475 = vpop.f32.mrf.mxu0
        %v2476 = vadd.f32 0.0, %v2475
        %2477 = vmatmul.bf16.gmra.mxu0 %v1104
        %v2478 = vpop.f32.mrf.mxu0
        %v2479 = vadd.f32 0.0, %v2478
        %v2480 = vpop.f32.mrf.mxu0
        %v2481 = vadd.f32 0.0, %v2480
        %2482 = vmatmul.bf16.gmra.mxu0 %v1105
        %v2483 = vpop.f32.mrf.mxu0
        %v2484 = vadd.f32 0.0, %v2483
        %v2485 = vpop.f32.mrf.mxu0
        %v2486 = vadd.f32 0.0, %v2485
        %2487 = vmatmul.bf16.gmra.mxu0 %v1106
        %v2488 = vpop.f32.mrf.mxu0
        %v2489 = vadd.f32 0.0, %v2488
        %v2490 = vpop.f32.mrf.mxu0
        %v2491 = vadd.f32 0.0, %v2490
        %2492 = vmatmul.bf16.gmra.mxu0 %v1107
        %v2493 = vpop.f32.mrf.mxu0
        %v2494 = vadd.f32 0.0, %v2493
        %v2495 = vpop.f32.mrf.mxu0
        %v2496 = vadd.f32 0.0, %v2495
        %2497 = vmatmul.bf16.gmra.mxu0 %v1108
        %v2498 = vpop.f32.mrf.mxu0
        %v2499 = vadd.f32 0.0, %v2498
        %v2500 = vpop.f32.mrf.mxu0
        %v2501 = vadd.f32 0.0, %v2500
        %2502 = vmatmul.bf16.gmra.mxu0 %v1109
        %v2503 = vpop.f32.mrf.mxu0
        %v2504 = vadd.f32 0.0, %v2503
        %v2505 = vpop.f32.mrf.mxu0
        %v2506 = vadd.f32 0.0, %v2505
        %2507 = vmatmul.bf16.gmra.mxu0 %v1110
        %v2508 = vpop.f32.mrf.mxu0
        %v2509 = vadd.f32 0.0, %v2508
        %v2510 = vpop.f32.mrf.mxu0
        %v2511 = vadd.f32 0.0, %v2510
        %2512 = vmatmul.bf16.gmra.mxu0 %v1111
        %v2513 = vpop.f32.mrf.mxu0
        %v2514 = vadd.f32 0.0, %v2513
        %v2515 = vpop.f32.mrf.mxu0
        %v2516 = vadd.f32 0.0, %v2515
        %2517 = vmatmul.bf16.gmra.mxu0 %v1112
        %v2518 = vpop.f32.mrf.mxu0
        %v2519 = vadd.f32 0.0, %v2518
        %v2520 = vpop.f32.mrf.mxu0
        %v2521 = vadd.f32 0.0, %v2520
        %2522 = vmatmul.bf16.gmra.mxu0 %v1113
        %v2523 = vpop.f32.mrf.mxu0
        %v2524 = vadd.f32 0.0, %v2523
        %v2525 = vpop.f32.mrf.mxu0
        %v2526 = vadd.f32 0.0, %v2525
        %2527 = vmatmul.bf16.gmra.mxu0 %v1114
        %v2528 = vpop.f32.mrf.mxu0
        %v2529 = vadd.f32 0.0, %v2528
        %v2530 = vpop.f32.mrf.mxu0
        %v2531 = vadd.f32 0.0, %v2530
        %2532 = vmatmul.bf16.gmra.mxu0 %v1115
        %v2533 = vpop.f32.mrf.mxu0
        %v2534 = vadd.f32 0.0, %v2533
        %v2535 = vpop.f32.mrf.mxu0
        %v2536 = vadd.f32 0.0, %v2535
        %2537 = vmatmul.bf16.gmra.mxu0 %v1116
        %v2538 = vpop.f32.mrf.mxu0
        %v2539 = vadd.f32 0.0, %v2538
        %v2540 = vpop.f32.mrf.mxu0
        %v2541 = vadd.f32 0.0, %v2540
        %2542 = vmatmul.bf16.gmra.mxu0 %v1117
        %v2543 = vpop.f32.mrf.mxu0
        %v2544 = vadd.f32 0.0, %v2543
        %v2545 = vpop.f32.mrf.mxu0
        %v2546 = vadd.f32 0.0, %v2545
        %2547 = vmatmul.bf16.gmra.mxu0 %v1118
        %v2548 = vpop.f32.mrf.mxu0
        %v2549 = vadd.f32 0.0, %v2548
        %v2550 = vpop.f32.mrf.mxu0
        %v2551 = vadd.f32 0.0, %v2550
        %2552 = vmatmul.bf16.gmra.mxu0 %v1119
        %v2553 = vpop.f32.mrf.mxu0
        %v2554 = vadd.f32 0.0, %v2553
        %v2555 = vpop.f32.mrf.mxu0
        %v2556 = vadd.f32 0.0, %v2555
        %2557 = vmatmul.bf16.gmra.mxu0 %v1120
        %v2558 = vpop.f32.mrf.mxu0
        %v2559 = vadd.f32 0.0, %v2558
        %v2560 = vpop.f32.mrf.mxu0
        %v2561 = vadd.f32 0.0, %v2560
        %2562 = vmatmul.bf16.gmra.mxu0 %v1121
        %v2563 = vpop.f32.mrf.mxu0
        %v2564 = vadd.f32 0.0, %v2563
        %v2565 = vpop.f32.mrf.mxu0
        %v2566 = vadd.f32 0.0, %v2565
        %2567 = vmatmul.bf16.gmra.mxu0 %v1122
        %v2568 = vpop.f32.mrf.mxu0
        %v2569 = vadd.f32 0.0, %v2568
        %v2570 = vpop.f32.mrf.mxu0
        %v2571 = vadd.f32 0.0, %v2570
        %2572 = vmatmul.bf16.gmra.mxu0 %v1123
        %v2573 = vpop.f32.mrf.mxu0
        %v2574 = vadd.f32 0.0, %v2573
        %v2575 = vpop.f32.mrf.mxu0
        %v2576 = vadd.f32 0.0, %v2575
        %2577 = vmatmul.bf16.gmra.mxu0 %v1124
        %v2578 = vpop.f32.mrf.mxu0
        %v2579 = vadd.f32 0.0, %v2578
        %v2580 = vpop.f32.mrf.mxu0
        %v2581 = vadd.f32 0.0, %v2580
        %2582 = vmatmul.bf16.gmra.mxu0 %v1125
        %v2583 = vpop.f32.mrf.mxu0
        %v2584 = vadd.f32 0.0, %v2583
        %v2585 = vpop.f32.mrf.mxu0
        %v2586 = vadd.f32 0.0, %v2585
        %2587 = vmatmul.bf16.gmra.mxu0 %v1126
        %v2588 = vpop.f32.mrf.mxu0
        %v2589 = vadd.f32 0.0, %v2588
        %v2590 = vpop.f32.mrf.mxu0
        %v2591 = vadd.f32 0.0, %v2590
        %2592 = vmatmul.bf16.gmra.mxu0 %v1127
        %v2593 = vpop.f32.mrf.mxu0
        %v2594 = vadd.f32 0.0, %v2593
        %v2595 = vpop.f32.mrf.mxu0
        %v2596 = vadd.f32 0.0, %v2595
        %2597 = vmatmul.bf16.gmra.mxu0 %v1128
        %v2598 = vpop.f32.mrf.mxu0
        %v2599 = vadd.f32 0.0, %v2598
        %v2600 = vpop.f32.mrf.mxu0
        %v2601 = vadd.f32 0.0, %v2600
        %2602 = vmatmul.bf16.gmra.mxu0 %v1129
        %v2603 = vpop.f32.mrf.mxu0
        %v2604 = vadd.f32 0.0, %v2603
        %v2605 = vpop.f32.mrf.mxu0
        %v2606 = vadd.f32 0.0, %v2605
        %2607 = vmatmul.bf16.gmra.mxu0 %v1130
        %v2608 = vpop.f32.mrf.mxu0
        %v2609 = vadd.f32 0.0, %v2608
        %v2610 = vpop.f32.mrf.mxu0
        %v2611 = vadd.f32 0.0, %v2610
        %2612 = vmatmul.bf16.gmra.mxu0 %v1131
        %v2613 = vpop.f32.mrf.mxu0
        %v2614 = vadd.f32 0.0, %v2613
        %v2615 = vpop.f32.mrf.mxu0
        %v2616 = vadd.f32 0.0, %v2615
        %2617 = vmatmul.bf16.gmra.mxu0 %v1132
        %v2618 = vpop.f32.mrf.mxu0
        %v2619 = vadd.f32 0.0, %v2618
        %v2620 = vpop.f32.mrf.mxu0
        %v2621 = vadd.f32 0.0, %v2620
        %2622 = vmatmul.bf16.gmra.mxu0 %v1133
        %v2623 = vpop.f32.mrf.mxu0
        %v2624 = vadd.f32 0.0, %v2623
        %v2625 = vpop.f32.mrf.mxu0
        %v2626 = vadd.f32 0.0, %v2625
        %2627 = vmatmul.bf16.gmra.mxu0 %v1134
        %v2628 = vpop.f32.mrf.mxu0
        %v2629 = vadd.f32 0.0, %v2628
        %v2630 = vpop.f32.mrf.mxu0
        %v2631 = vadd.f32 0.0, %v2630
        %2632 = vmatmul.bf16.gmra.mxu0 %v1135
        %v2633 = vpop.f32.mrf.mxu0
        %v2634 = vadd.f32 0.0, %v2633
        %v2635 = vpop.f32.mrf.mxu0
        %v2636 = vadd.f32 0.0, %v2635
        %2637 = vmatmul.bf16.gmra.mxu0 %v1136
        %v2638 = vpop.f32.mrf.mxu0
        %v2639 = vadd.f32 0.0, %v2638
        %v2640 = vpop.f32.mrf.mxu0
        %v2641 = vadd.f32 0.0, %v2640
        %2642 = vdwg.mxu0
        %v2643 = vmax.f32 %v1355, 0.0
        %v2644 = vmax.f32 %v2004, 0.0
        %v2645 = vmax.f32 %v1357, 0.0
        %v2646 = vmax.f32 %v2006, 0.0
        %v2647 = vmax.f32 %v1360, 0.0
        %v2648 = vmax.f32 %v2009, 0.0
        %v2649 = vmax.f32 %v1362, 0.0
        %v2650 = vmax.f32 %v2011, 0.0
        %v2651 = vmax.f32 %v1365, 0.0
        %v2652 = vmax.f32 %v2014, 0.0
        %v2653 = vmax.f32 %v1367, 0.0
        %v2654 = vmax.f32 %v2016, 0.0
        %v2655 = vmax.f32 %v1370, 0.0
        %v2656 = vmax.f32 %v2019, 0.0
        %v2657 = vmax.f32 %v1372, 0.0
        %v2658 = vmax.f32 %v2021, 0.0
        %v2659 = vmax.f32 %v1375, 0.0
        %v2660 = vmax.f32 %v2024, 0.0
        %v2661 = vmax.f32 %v1377, 0.0
        %v2662 = vmax.f32 %v2026, 0.0
        %v2663 = vmax.f32 %v1380, 0.0
        %v2664 = vmax.f32 %v2029, 0.0
        %v2665 = vmax.f32 %v1382, 0.0
        %v2666 = vmax.f32 %v2031, 0.0
        %v2667 = vmax.f32 %v1385, 0.0
        %v2668 = vmax.f32 %v2034, 0.0
        %v2669 = vmax.f32 %v1387, 0.0
        %v2670 = vmax.f32 %v2036, 0.0
        %v2671 = vmax.f32 %v1390, 0.0
        %v2672 = vmax.f32 %v2039, 0.0
        %v2673 = vmax.f32 %v1392, 0.0
        %v2674 = vmax.f32 %v2041, 0.0
        %v2675 = vmax.f32 %v1395, 0.0
        %v2676 = vmax.f32 %v2044, 0.0
        %v2677 = vmax.f32 %v1397, 0.0
        %v2678 = vmax.f32 %v2046, 0.0
        %v2679 = vmax.f32 %v1400, 0.0
        %v2680 = vmax.f32 %v2049, 0.0
        %v2681 = vmax.f32 %v1402, 0.0
        %v2682 = vmax.f32 %v2051, 0.0
        %v2683 = vmax.f32 %v1405, 0.0
        %v2684 = vmax.f32 %v2054, 0.0
        %v2685 = vmax.f32 %v1407, 0.0
        %v2686 = vmax.f32 %v2056, 0.0
        %v2687 = vmax.f32 %v1410, 0.0
        %v2688 = vmax.f32 %v2059, 0.0
        %v2689 = vmax.f32 %v1412, 0.0
        %v2690 = vmax.f32 %v2061, 0.0
        %v2691 = vmax.f32 %v1415, 0.0
        %v2692 = vmax.f32 %v2064, 0.0
        %v2693 = vmax.f32 %v1417, 0.0
        %v2694 = vmax.f32 %v2066, 0.0
        %v2695 = vmax.f32 %v1420, 0.0
        %v2696 = vmax.f32 %v2069, 0.0
        %v2697 = vmax.f32 %v1422, 0.0
        %v2698 = vmax.f32 %v2071, 0.0
        %v2699 = vmax.f32 %v1425, 0.0
        %v2700 = vmax.f32 %v2074, 0.0
        %v2701 = vmax.f32 %v1427, 0.0
        %v2702 = vmax.f32 %v2076, 0.0
        %v2703 = vmax.f32 %v1430, 0.0
        %v2704 = vmax.f32 %v2079, 0.0
        %v2705 = vmax.f32 %v1432, 0.0
        %v2706 = vmax.f32 %v2081, 0.0
        %v2707 = vmax.f32 %v1435, 0.0
        %v2708 = vmax.f32 %v2084, 0.0
        %v2709 = vmax.f32 %v1437, 0.0
        %v2710 = vmax.f32 %v2086, 0.0
        %v2711 = vmax.f32 %v1440, 0.0
        %v2712 = vmax.f32 %v2089, 0.0
        %v2713 = vmax.f32 %v1442, 0.0
        %v2714 = vmax.f32 %v2091, 0.0
        %v2715 = vmax.f32 %v1445, 0.0
        %v2716 = vmax.f32 %v2094, 0.0
        %v2717 = vmax.f32 %v1447, 0.0
        %v2718 = vmax.f32 %v2096, 0.0
        %v2719 = vmax.f32 %v1450, 0.0
        %v2720 = vmax.f32 %v2099, 0.0
        %v2721 = vmax.f32 %v1452, 0.0
        %v2722 = vmax.f32 %v2101, 0.0
        %v2723 = vmax.f32 %v1455, 0.0
        %v2724 = vmax.f32 %v2104, 0.0
        %v2725 = vmax.f32 %v1457, 0.0
        %v2726 = vmax.f32 %v2106, 0.0
        %v2727 = vmax.f32 %v1460, 0.0
        %v2728 = vmax.f32 %v2109, 0.0
        %v2729 = vmax.f32 %v1462, 0.0
        %v2730 = vmax.f32 %v2111, 0.0
        %v2731 = vmax.f32 %v1465, 0.0
        %v2732 = vmax.f32 %v2114, 0.0
        %v2733 = vmax.f32 %v1467, 0.0
        %v2734 = vmax.f32 %v2116, 0.0
        %v2735 = vmax.f32 %v1470, 0.0
        %v2736 = vmax.f32 %v2119, 0.0
        %v2737 = vmax.f32 %v1472, 0.0
        %v2738 = vmax.f32 %v2121, 0.0
        %v2739 = vmax.f32 %v1475, 0.0
        %v2740 = vmax.f32 %v2124, 0.0
        %v2741 = vmax.f32 %v1477, 0.0
        %v2742 = vmax.f32 %v2126, 0.0
        %v2743 = vmax.f32 %v1480, 0.0
        %v2744 = vmax.f32 %v2129, 0.0
        %v2745 = vmax.f32 %v1482, 0.0
        %v2746 = vmax.f32 %v2131, 0.0
        %v2747 = vmax.f32 %v1485, 0.0
        %v2748 = vmax.f32 %v2134, 0.0
        %v2749 = vmax.f32 %v1487, 0.0
        %v2750 = vmax.f32 %v2136, 0.0
        %v2751 = vmax.f32 %v1490, 0.0
        %v2752 = vmax.f32 %v2139, 0.0
        %v2753 = vmax.f32 %v1492, 0.0
        %v2754 = vmax.f32 %v2141, 0.0
        %v2755 = vmax.f32 %v1495, 0.0
        %v2756 = vmax.f32 %v2144, 0.0
        %v2757 = vmax.f32 %v1497, 0.0
        %v2758 = vmax.f32 %v2146, 0.0
        %v2759 = vmax.f32 %v1500, 0.0
        %v2760 = vmax.f32 %v2149, 0.0
        %v2761 = vmax.f32 %v1502, 0.0
        %v2762 = vmax.f32 %v2151, 0.0
        %v2763 = vmax.f32 %v1505, 0.0
        %v2764 = vmax.f32 %v2154, 0.0
        %v2765 = vmax.f32 %v1507, 0.0
        %v2766 = vmax.f32 %v2156, 0.0
        %v2767 = vmax.f32 %v1510, 0.0
        %v2768 = vmax.f32 %v2159, 0.0
        %v2769 = vmax.f32 %v1512, 0.0
        %v2770 = vmax.f32 %v2161, 0.0
        %v2771 = vmax.f32 %v1515, 0.0
        %v2772 = vmax.f32 %v2164, 0.0
        %v2773 = vmax.f32 %v1517, 0.0
        %v2774 = vmax.f32 %v2166, 0.0
        %v2775 = vmax.f32 %v1520, 0.0
        %v2776 = vmax.f32 %v2169, 0.0
        %v2777 = vmax.f32 %v1522, 0.0
        %v2778 = vmax.f32 %v2171, 0.0
        %v2779 = vmax.f32 %v1525, 0.0
        %v2780 = vmax.f32 %v2174, 0.0
        %v2781 = vmax.f32 %v1527, 0.0
        %v2782 = vmax.f32 %v2176, 0.0
        %v2783 = vmax.f32 %v1530, 0.0
        %v2784 = vmax.f32 %v2179, 0.0
        %v2785 = vmax.f32 %v1532, 0.0
        %v2786 = vmax.f32 %v2181, 0.0
        %v2787 = vmax.f32 %v1535, 0.0
        %v2788 = vmax.f32 %v2184, 0.0
        %v2789 = vmax.f32 %v1537, 0.0
        %v2790 = vmax.f32 %v2186, 0.0
        %v2791 = vmax.f32 %v1540, 0.0
        %v2792 = vmax.f32 %v2189, 0.0
        %v2793 = vmax.f32 %v1542, 0.0
        %v2794 = vmax.f32 %v2191, 0.0
        %v2795 = vmax.f32 %v1545, 0.0
        %v2796 = vmax.f32 %v2194, 0.0
        %v2797 = vmax.f32 %v1547, 0.0
        %v2798 = vmax.f32 %v2196, 0.0
        %v2799 = vmax.f32 %v1550, 0.0
        %v2800 = vmax.f32 %v2199, 0.0
        %v2801 = vmax.f32 %v1552, 0.0
        %v2802 = vmax.f32 %v2201, 0.0
        %v2803 = vmax.f32 %v1555, 0.0
        %v2804 = vmax.f32 %v2204, 0.0
        %v2805 = vmax.f32 %v1557, 0.0
        %v2806 = vmax.f32 %v2206, 0.0
        %v2807 = vmax.f32 %v1560, 0.0
        %v2808 = vmax.f32 %v2209, 0.0
        %v2809 = vmax.f32 %v1562, 0.0
        %v2810 = vmax.f32 %v2211, 0.0
        %v2811 = vmax.f32 %v1565, 0.0
        %v2812 = vmax.f32 %v2214, 0.0
        %v2813 = vmax.f32 %v1567, 0.0
        %v2814 = vmax.f32 %v2216, 0.0
        %v2815 = vmax.f32 %v1570, 0.0
        %v2816 = vmax.f32 %v2219, 0.0
        %v2817 = vmax.f32 %v1572, 0.0
        %v2818 = vmax.f32 %v2221, 0.0
        %v2819 = vmax.f32 %v1575, 0.0
        %v2820 = vmax.f32 %v2224, 0.0
        %v2821 = vmax.f32 %v1577, 0.0
        %v2822 = vmax.f32 %v2226, 0.0
        %v2823 = vmax.f32 %v1580, 0.0
        %v2824 = vmax.f32 %v2229, 0.0
        %v2825 = vmax.f32 %v1582, 0.0
        %v2826 = vmax.f32 %v2231, 0.0
        %v2827 = vmax.f32 %v1585, 0.0
        %v2828 = vmax.f32 %v2234, 0.0
        %v2829 = vmax.f32 %v1587, 0.0
        %v2830 = vmax.f32 %v2236, 0.0
        %v2831 = vmax.f32 %v1590, 0.0
        %v2832 = vmax.f32 %v2239, 0.0
        %v2833 = vmax.f32 %v1592, 0.0
        %v2834 = vmax.f32 %v2241, 0.0
        %v2835 = vmax.f32 %v1595, 0.0
        %v2836 = vmax.f32 %v2244, 0.0
        %v2837 = vmax.f32 %v1597, 0.0
        %v2838 = vmax.f32 %v2246, 0.0
        %v2839 = vmax.f32 %v1600, 0.0
        %v2840 = vmax.f32 %v2249, 0.0
        %v2841 = vmax.f32 %v1602, 0.0
        %v2842 = vmax.f32 %v2251, 0.0
        %v2843 = vmax.f32 %v1605, 0.0
        %v2844 = vmax.f32 %v2254, 0.0
        %v2845 = vmax.f32 %v1607, 0.0
        %v2846 = vmax.f32 %v2256, 0.0
        %v2847 = vmax.f32 %v1610, 0.0
        %v2848 = vmax.f32 %v2259, 0.0
        %v2849 = vmax.f32 %v1612, 0.0
        %v2850 = vmax.f32 %v2261, 0.0
        %v2851 = vmax.f32 %v1615, 0.0
        %v2852 = vmax.f32 %v2264, 0.0
        %v2853 = vmax.f32 %v1617, 0.0
        %v2854 = vmax.f32 %v2266, 0.0
        %v2855 = vmax.f32 %v1620, 0.0
        %v2856 = vmax.f32 %v2269, 0.0
        %v2857 = vmax.f32 %v1622, 0.0
        %v2858 = vmax.f32 %v2271, 0.0
        %v2859 = vmax.f32 %v1625, 0.0
        %v2860 = vmax.f32 %v2274, 0.0
        %v2861 = vmax.f32 %v1627, 0.0
        %v2862 = vmax.f32 %v2276, 0.0
        %v2863 = vmax.f32 %v1630, 0.0
        %v2864 = vmax.f32 %v2279, 0.0
        %v2865 = vmax.f32 %v1632, 0.0
        %v2866 = vmax.f32 %v2281, 0.0
        %v2867 = vmax.f32 %v1635, 0.0
        %v2868 = vmax.f32 %v2284, 0.0
        %v2869 = vmax.f32 %v1637, 0.0
        %v2870 = vmax.f32 %v2286, 0.0
        %v2871 = vmax.f32 %v1640, 0.0
        %v2872 = vmax.f32 %v2289, 0.0
        %v2873 = vmax.f32 %v1642, 0.0
        %v2874 = vmax.f32 %v2291, 0.0
        %v2875 = vmax.f32 %v1645, 0.0
        %v2876 = vmax.f32 %v2294, 0.0
        %v2877 = vmax.f32 %v1647, 0.0
        %v2878 = vmax.f32 %v2296, 0.0
        %v2879 = vmax.f32 %v1650, 0.0
        %v2880 = vmax.f32 %v2299, 0.0
        %v2881 = vmax.f32 %v1652, 0.0
        %v2882 = vmax.f32 %v2301, 0.0
        %v2883 = vmax.f32 %v1655, 0.0
        %v2884 = vmax.f32 %v2304, 0.0
        %v2885 = vmax.f32 %v1657, 0.0
        %v2886 = vmax.f32 %v2306, 0.0
        %v2887 = vmax.f32 %v1660, 0.0
        %v2888 = vmax.f32 %v2309, 0.0
        %v2889 = vmax.f32 %v1662, 0.0
        %v2890 = vmax.f32 %v2311, 0.0
        %v2891 = vmax.f32 %v1665, 0.0
        %v2892 = vmax.f32 %v2314, 0.0
        %v2893 = vmax.f32 %v1667, 0.0
        %v2894 = vmax.f32 %v2316, 0.0
        %v2895 = vmax.f32 %v1670, 0.0
        %v2896 = vmax.f32 %v2319, 0.0
        %v2897 = vmax.f32 %v1672, 0.0
        %v2898 = vmax.f32 %v2321, 0.0
        %v2899 = vmax.f32 %v1675, 0.0
        %v2900 = vmax.f32 %v2324, 0.0
        %v2901 = vmax.f32 %v1677, 0.0
        %v2902 = vmax.f32 %v2326, 0.0
        %v2903 = vmax.f32 %v1680, 0.0
        %v2904 = vmax.f32 %v2329, 0.0
        %v2905 = vmax.f32 %v1682, 0.0
        %v2906 = vmax.f32 %v2331, 0.0
        %v2907 = vmax.f32 %v1685, 0.0
        %v2908 = vmax.f32 %v2334, 0.0
        %v2909 = vmax.f32 %v1687, 0.0
        %v2910 = vmax.f32 %v2336, 0.0
        %v2911 = vmax.f32 %v1690, 0.0
        %v2912 = vmax.f32 %v2339, 0.0
        %v2913 = vmax.f32 %v1692, 0.0
        %v2914 = vmax.f32 %v2341, 0.0
        %v2915 = vmax.f32 %v1695, 0.0
        %v2916 = vmax.f32 %v2344, 0.0
        %v2917 = vmax.f32 %v1697, 0.0
        %v2918 = vmax.f32 %v2346, 0.0
        %v2919 = vmax.f32 %v1700, 0.0
        %v2920 = vmax.f32 %v2349, 0.0
        %v2921 = vmax.f32 %v1702, 0.0
        %v2922 = vmax.f32 %v2351, 0.0
        %v2923 = vmax.f32 %v1705, 0.0
        %v2924 = vmax.f32 %v2354, 0.0
        %v2925 = vmax.f32 %v1707, 0.0
        %v2926 = vmax.f32 %v2356, 0.0
        %v2927 = vmax.f32 %v1710, 0.0
        %v2928 = vmax.f32 %v2359, 0.0
        %v2929 = vmax.f32 %v1712, 0.0
        %v2930 = vmax.f32 %v2361, 0.0
        %v2931 = vmax.f32 %v1715, 0.0
        %v2932 = vmax.f32 %v2364, 0.0
        %v2933 = vmax.f32 %v1717, 0.0
        %v2934 = vmax.f32 %v2366, 0.0
        %v2935 = vmax.f32 %v1720, 0.0
        %v2936 = vmax.f32 %v2369, 0.0
        %v2937 = vmax.f32 %v1722, 0.0
        %v2938 = vmax.f32 %v2371, 0.0
        %v2939 = vmax.f32 %v1725, 0.0
        %v2940 = vmax.f32 %v2374, 0.0
        %v2941 = vmax.f32 %v1727, 0.0
        %v2942 = vmax.f32 %v2376, 0.0
        %v2943 = vmax.f32 %v1730, 0.0
        %v2944 = vmax.f32 %v2379, 0.0
        %v2945 = vmax.f32 %v1732, 0.0
        %v2946 = vmax.f32 %v2381, 0.0
        %v2947 = vmax.f32 %v1735, 0.0
        %v2948 = vmax.f32 %v2384, 0.0
        %v2949 = vmax.f32 %v1737, 0.0
        %v2950 = vmax.f32 %v2386, 0.0
        %v2951 = vmax.f32 %v1740, 0.0
        %v2952 = vmax.f32 %v2389, 0.0
        %v2953 = vmax.f32 %v1742, 0.0
        %v2954 = vmax.f32 %v2391, 0.0
        %v2955 = vmax.f32 %v1745, 0.0
        %v2956 = vmax.f32 %v2394, 0.0
        %v2957 = vmax.f32 %v1747, 0.0
        %v2958 = vmax.f32 %v2396, 0.0
        %v2959 = vmax.f32 %v1750, 0.0
        %v2960 = vmax.f32 %v2399, 0.0
        %v2961 = vmax.f32 %v1752, 0.0
        %v2962 = vmax.f32 %v2401, 0.0
        %v2963 = vmax.f32 %v1755, 0.0
        %v2964 = vmax.f32 %v2404, 0.0
        %v2965 = vmax.f32 %v1757, 0.0
        %v2966 = vmax.f32 %v2406, 0.0
        %v2967 = vmax.f32 %v1760, 0.0
        %v2968 = vmax.f32 %v2409, 0.0
        %v2969 = vmax.f32 %v1762, 0.0
        %v2970 = vmax.f32 %v2411, 0.0
        %v2971 = vmax.f32 %v1765, 0.0
        %v2972 = vmax.f32 %v2414, 0.0
        %v2973 = vmax.f32 %v1767, 0.0
        %v2974 = vmax.f32 %v2416, 0.0
        %v2975 = vmax.f32 %v1770, 0.0
        %v2976 = vmax.f32 %v2419, 0.0
        %v2977 = vmax.f32 %v1772, 0.0
        %v2978 = vmax.f32 %v2421, 0.0
        %v2979 = vmax.f32 %v1775, 0.0
        %v2980 = vmax.f32 %v2424, 0.0
        %v2981 = vmax.f32 %v1777, 0.0
        %v2982 = vmax.f32 %v2426, 0.0
        %v2983 = vmax.f32 %v1780, 0.0
        %v2984 = vmax.f32 %v2429, 0.0
        %v2985 = vmax.f32 %v1782, 0.0
        %v2986 = vmax.f32 %v2431, 0.0
        %v2987 = vmax.f32 %v1785, 0.0
        %v2988 = vmax.f32 %v2434, 0.0
        %v2989 = vmax.f32 %v1787, 0.0
        %v2990 = vmax.f32 %v2436, 0.0
        %v2991 = vmax.f32 %v1790, 0.0
        %v2992 = vmax.f32 %v2439, 0.0
        %v2993 = vmax.f32 %v1792, 0.0
        %v2994 = vmax.f32 %v2441, 0.0
        %v2995 = vmax.f32 %v1795, 0.0
        %v2996 = vmax.f32 %v2444, 0.0
        %v2997 = vmax.f32 %v1797, 0.0
        %v2998 = vmax.f32 %v2446, 0.0
        %v2999 = vmax.f32 %v1800, 0.0
        %v3000 = vmax.f32 %v2449, 0.0
        %v3001 = vmax.f32 %v1802, 0.0
        %v3002 = vmax.f32 %v2451, 0.0
        %v3003 = vmax.f32 %v1805, 0.0
        %v3004 = vmax.f32 %v2454, 0.0
        %v3005 = vmax.f32 %v1807, 0.0
        %v3006 = vmax.f32 %v2456, 0.0
        %v3007 = vmax.f32 %v1810, 0.0
        %v3008 = vmax.f32 %v2459, 0.0
        %v3009 = vmax.f32 %v1812, 0.0
        %v3010 = vmax.f32 %v2461, 0.0
        %v3011 = vmax.f32 %v1815, 0.0
        %v3012 = vmax.f32 %v2464, 0.0
        %v3013 = vmax.f32 %v1817, 0.0
        %v3014 = vmax.f32 %v2466, 0.0
        %v3015 = vmax.f32 %v1820, 0.0
        %v3016 = vmax.f32 %v2469, 0.0
        %v3017 = vmax.f32 %v1822, 0.0
        %v3018 = vmax.f32 %v2471, 0.0
        %v3019 = vmax.f32 %v1825, 0.0
        %v3020 = vmax.f32 %v2474, 0.0
        %v3021 = vmax.f32 %v1827, 0.0
        %v3022 = vmax.f32 %v2476, 0.0
        %v3023 = vmax.f32 %v1830, 0.0
        %v3024 = vmax.f32 %v2479, 0.0
        %v3025 = vmax.f32 %v1832, 0.0
        %v3026 = vmax.f32 %v2481, 0.0
        %v3027 = vmax.f32 %v1835, 0.0
        %v3028 = vmax.f32 %v2484, 0.0
        %v3029 = vmax.f32 %v1837, 0.0
        %v3030 = vmax.f32 %v2486, 0.0
        %v3031 = vmax.f32 %v1840, 0.0
        %v3032 = vmax.f32 %v2489, 0.0
        %v3033 = vmax.f32 %v1842, 0.0
        %v3034 = vmax.f32 %v2491, 0.0
        %v3035 = vmax.f32 %v1845, 0.0
        %v3036 = vmax.f32 %v2494, 0.0
        %v3037 = vmax.f32 %v1847, 0.0
        %v3038 = vmax.f32 %v2496, 0.0
        %v3039 = vmax.f32 %v1850, 0.0
        %v3040 = vmax.f32 %v2499, 0.0
        %v3041 = vmax.f32 %v1852, 0.0
        %v3042 = vmax.f32 %v2501, 0.0
        %v3043 = vmax.f32 %v1855, 0.0
        %v3044 = vmax.f32 %v2504, 0.0
        %v3045 = vmax.f32 %v1857, 0.0
        %v3046 = vmax.f32 %v2506, 0.0
        %v3047 = vmax.f32 %v1860, 0.0
        %v3048 = vmax.f32 %v2509, 0.0
        %v3049 = vmax.f32 %v1862, 0.0
        %v3050 = vmax.f32 %v2511, 0.0
        %v3051 = vmax.f32 %v1865, 0.0
        %v3052 = vmax.f32 %v2514, 0.0
        %v3053 = vmax.f32 %v1867, 0.0
        %v3054 = vmax.f32 %v2516, 0.0
        %v3055 = vmax.f32 %v1870, 0.0
        %v3056 = vmax.f32 %v2519, 0.0
        %v3057 = vmax.f32 %v1872, 0.0
        %v3058 = vmax.f32 %v2521, 0.0
        %v3059 = vmax.f32 %v1875, 0.0
        %v3060 = vmax.f32 %v2524, 0.0
        %v3061 = vmax.f32 %v1877, 0.0
        %v3062 = vmax.f32 %v2526, 0.0
        %v3063 = vmax.f32 %v1880, 0.0
        %v3064 = vmax.f32 %v2529, 0.0
        %v3065 = vmax.f32 %v1882, 0.0
        %v3066 = vmax.f32 %v2531, 0.0
        %v3067 = vmax.f32 %v1885, 0.0
        %v3068 = vmax.f32 %v2534, 0.0
        %v3069 = vmax.f32 %v1887, 0.0
        %v3070 = vmax.f32 %v2536, 0.0
        %v3071 = vmax.f32 %v1890, 0.0
        %v3072 = vmax.f32 %v2539, 0.0
        %v3073 = vmax.f32 %v1892, 0.0
        %v3074 = vmax.f32 %v2541, 0.0
        %v3075 = vmax.f32 %v1895, 0.0
        %v3076 = vmax.f32 %v2544, 0.0
        %v3077 = vmax.f32 %v1897, 0.0
        %v3078 = vmax.f32 %v2546, 0.0
        %v3079 = vmax.f32 %v1900, 0.0
        %v3080 = vmax.f32 %v2549, 0.0
        %v3081 = vmax.f32 %v1902, 0.0
        %v3082 = vmax.f32 %v2551, 0.0
        %v3083 = vmax.f32 %v1905, 0.0
        %v3084 = vmax.f32 %v2554, 0.0
        %v3085 = vmax.f32 %v1907, 0.0
        %v3086 = vmax.f32 %v2556, 0.0
        %v3087 = vmax.f32 %v1910, 0.0
        %v3088 = vmax.f32 %v2559, 0.0
        %v3089 = vmax.f32 %v1912, 0.0
        %v3090 = vmax.f32 %v2561, 0.0
        %v3091 = vmax.f32 %v1915, 0.0
        %v3092 = vmax.f32 %v2564, 0.0
        %v3093 = vmax.f32 %v1917, 0.0
        %v3094 = vmax.f32 %v2566, 0.0
        %v3095 = vmax.f32 %v1920, 0.0
        %v3096 = vmax.f32 %v2569, 0.0
        %v3097 = vmax.f32 %v1922, 0.0
        %v3098 = vmax.f32 %v2571, 0.0
        %v3099 = vmax.f32 %v1925, 0.0
        %v3100 = vmax.f32 %v2574, 0.0
        %v3101 = vmax.f32 %v1927, 0.0
        %v3102 = vmax.f32 %v2576, 0.0
        %v3103 = vmax.f32 %v1930, 0.0
        %v3104 = vmax.f32 %v2579, 0.0
        %v3105 = vmax.f32 %v1932, 0.0
        %v3106 = vmax.f32 %v2581, 0.0
        %v3107 = vmax.f32 %v1935, 0.0
        %v3108 = vmax.f32 %v2584, 0.0
        %v3109 = vmax.f32 %v1937, 0.0
        %v3110 = vmax.f32 %v2586, 0.0
        %v3111 = vmax.f32 %v1940, 0.0
        %v3112 = vmax.f32 %v2589, 0.0
        %v3113 = vmax.f32 %v1942, 0.0
        %v3114 = vmax.f32 %v2591, 0.0
        %v3115 = vmax.f32 %v1945, 0.0
        %v3116 = vmax.f32 %v2594, 0.0
        %v3117 = vmax.f32 %v1947, 0.0
        %v3118 = vmax.f32 %v2596, 0.0
        %v3119 = vmax.f32 %v1950, 0.0
        %v3120 = vmax.f32 %v2599, 0.0
        %v3121 = vmax.f32 %v1952, 0.0
        %v3122 = vmax.f32 %v2601, 0.0
        %v3123 = vmax.f32 %v1955, 0.0
        %v3124 = vmax.f32 %v2604, 0.0
        %v3125 = vmax.f32 %v1957, 0.0
        %v3126 = vmax.f32 %v2606, 0.0
        %v3127 = vmax.f32 %v1960, 0.0
        %v3128 = vmax.f32 %v2609, 0.0
        %v3129 = vmax.f32 %v1962, 0.0
        %v3130 = vmax.f32 %v2611, 0.0
        %v3131 = vmax.f32 %v1965, 0.0
        %v3132 = vmax.f32 %v2614, 0.0
        %v3133 = vmax.f32 %v1967, 0.0
        %v3134 = vmax.f32 %v2616, 0.0
        %v3135 = vmax.f32 %v1970, 0.0
        %v3136 = vmax.f32 %v2619, 0.0
        %v3137 = vmax.f32 %v1972, 0.0
        %v3138 = vmax.f32 %v2621, 0.0
        %v3139 = vmax.f32 %v1975, 0.0
        %v3140 = vmax.f32 %v2624, 0.0
        %v3141 = vmax.f32 %v1977, 0.0
        %v3142 = vmax.f32 %v2626, 0.0
        %v3143 = vmax.f32 %v1980, 0.0
        %v3144 = vmax.f32 %v2629, 0.0
        %v3145 = vmax.f32 %v1982, 0.0
        %v3146 = vmax.f32 %v2631, 0.0
        %v3147 = vmax.f32 %v1985, 0.0
        %v3148 = vmax.f32 %v2634, 0.0
        %v3149 = vmax.f32 %v1987, 0.0
        %v3150 = vmax.f32 %v2636, 0.0
        %v3151 = vmax.f32 %v1990, 0.0
        %v3152 = vmax.f32 %v2639, 0.0
        %v3153 = vmax.f32 %v1992, 0.0
        %v3154 = vmax.f32 %v2641, 0.0
        %v3155 = vld [vmem:[%s2] sm:$0xff]
        %v3156 = vld [vmem:[%s2 + $0x8] sm:$0xff]
        %v3157 = vld [vmem:[%s2 + $0x10] sm:$0xff]
        %v3158 = vld [vmem:[%s2 + $0x18] sm:$0xff]
        %v3159 = vld [vmem:[%s2 + $0x20] sm:$0xff]
        %v3160 = vld [vmem:[%s2 + $0x28] sm:$0xff]
        %v3161 = vld [vmem:[%s2 + $0x30] sm:$0xff]
        %v3162 = vld [vmem:[%s2 + $0x38] sm:$0xff]
        %v3163 = vld [vmem:[%s2 + $0x40] sm:$0xff]
        %v3164 = vld [vmem:[%s2 + $0x48] sm:$0xff]
        %v3165 = vld [vmem:[%s2 + $0x50] sm:$0xff]
        %v3166 = vld [vmem:[%s2 + $0x58] sm:$0xff]
        %v3167 = vld [vmem:[%s2 + $0x60] sm:$0xff]
        %v3168 = vld [vmem:[%s2 + $0x68] sm:$0xff]
        %v3169 = vld [vmem:[%s2 + $0x70] sm:$0xff]
        %v3170 = vld [vmem:[%s2 + $0x78] sm:$0xff]
        %3171 = vmatpush.msra.mxu0 %v2673
        %3172 = vmatpush.msra.mxu0 %v2671
        %3173 = vmatpush.msra.mxu0 %v2669
        %3174 = vmatpush.msra.mxu0 %v2667
        %3175 = vmatpush.msra.mxu0 %v2665
        %3176 = vmatpush.msra.mxu0 %v2663
        %3177 = vmatpush.msra.mxu0 %v2661
        %3178 = vmatpush.msra.mxu0 %v2659
        %3179 = vmatpush.msra.mxu0 %v2657
        %3180 = vmatpush.msra.mxu0 %v2655
        %3181 = vmatpush.msra.mxu0 %v2653
        %3182 = vmatpush.msra.mxu0 %v2651
        %3183 = vmatpush.msra.mxu0 %v2649
        %3184 = vmatpush.msra.mxu0 %v2647
        %3185 = vmatpush.msra.mxu0 %v2645
        %3186 = vmatpush.msra.mxu0 %v2643
        %3187 = vmatmul.f32.gmra.mxu0 %v3155
        %v3188 = vpop.f32.mrf.mxu0
        %v3189 = vadd.f32 0.0, %v3188
        %3190 = vdwg.mxu0
        %3191 = vmatpush.msra.mxu0 %v2705
        %3192 = vmatpush.msra.mxu0 %v2703
        %3193 = vmatpush.msra.mxu0 %v2701
        %3194 = vmatpush.msra.mxu0 %v2699
        %3195 = vmatpush.msra.mxu0 %v2697
        %3196 = vmatpush.msra.mxu0 %v2695
        %3197 = vmatpush.msra.mxu0 %v2693
        %3198 = vmatpush.msra.mxu0 %v2691
        %3199 = vmatpush.msra.mxu0 %v2689
        %3200 = vmatpush.msra.mxu0 %v2687
        %3201 = vmatpush.msra.mxu0 %v2685
        %3202 = vmatpush.msra.mxu0 %v2683
        %3203 = vmatpush.msra.mxu0 %v2681
        %3204 = vmatpush.msra.mxu0 %v2679
        %3205 = vmatpush.msra.mxu0 %v2677
        %3206 = vmatpush.msra.mxu0 %v2675
        %3207 = vmatmul.f32.gmra.mxu0 %v3156
        %v3208 = vpop.f32.mrf.mxu0
        %v3209 = vadd.f32 %v3189, %v3208
        %3210 = vdwg.mxu0
        %3211 = vmatpush.msra.mxu0 %v2737
        %3212 = vmatpush.msra.mxu0 %v2735
        %3213 = vmatpush.msra.mxu0 %v2733
        %3214 = vmatpush.msra.mxu0 %v2731
        %3215 = vmatpush.msra.mxu0 %v2729
        %3216 = vmatpush.msra.mxu0 %v2727
        %3217 = vmatpush.msra.mxu0 %v2725
        %3218 = vmatpush.msra.mxu0 %v2723
        %3219 = vmatpush.msra.mxu0 %v2721
        %3220 = vmatpush.msra.mxu0 %v2719
        %3221 = vmatpush.msra.mxu0 %v2717
        %3222 = vmatpush.msra.mxu0 %v2715
        %3223 = vmatpush.msra.mxu0 %v2713
        %3224 = vmatpush.msra.mxu0 %v2711
        %3225 = vmatpush.msra.mxu0 %v2709
        %3226 = vmatpush.msra.mxu0 %v2707
        %3227 = vmatmul.f32.gmra.mxu0 %v3157
        %v3228 = vpop.f32.mrf.mxu0
        %v3229 = vadd.f32 %v3209, %v3228
        %3230 = vdwg.mxu0
        %3231 = vmatpush.msra.mxu0 %v2769
        %3232 = vmatpush.msra.mxu0 %v2767
        %3233 = vmatpush.msra.mxu0 %v2765
        %3234 = vmatpush.msra.mxu0 %v2763
        %3235 = vmatpush.msra.mxu0 %v2761
        %3236 = vmatpush.msra.mxu0 %v2759
        %3237 = vmatpush.msra.mxu0 %v2757
        %3238 = vmatpush.msra.mxu0 %v2755
        %3239 = vmatpush.msra.mxu0 %v2753
        %3240 = vmatpush.msra.mxu0 %v2751
        %3241 = vmatpush.msra.mxu0 %v2749
        %3242 = vmatpush.msra.mxu0 %v2747
        %3243 = vmatpush.msra.mxu0 %v2745
        %3244 = vmatpush.msra.mxu0 %v2743
        %3245 = vmatpush.msra.mxu0 %v2741
        %3246 = vmatpush.msra.mxu0 %v2739
        %3247 = vmatmul.f32.gmra.mxu0 %v3158
        %v3248 = vpop.f32.mrf.mxu0
        %v3249 = vadd.f32 %v3229, %v3248
        %3250 = vdwg.mxu0
        %3251 = vmatpush.msra.mxu0 %v2801
        %3252 = vmatpush.msra.mxu0 %v2799
        %3253 = vmatpush.msra.mxu0 %v2797
        %3254 = vmatpush.msra.mxu0 %v2795
        %3255 = vmatpush.msra.mxu0 %v2793
        %3256 = vmatpush.msra.mxu0 %v2791
        %3257 = vmatpush.msra.mxu0 %v2789
        %3258 = vmatpush.msra.mxu0 %v2787
        %3259 = vmatpush.msra.mxu0 %v2785
        %3260 = vmatpush.msra.mxu0 %v2783
        %3261 = vmatpush.msra.mxu0 %v2781
        %3262 = vmatpush.msra.mxu0 %v2779
        %3263 = vmatpush.msra.mxu0 %v2777
        %3264 = vmatpush.msra.mxu0 %v2775
        %3265 = vmatpush.msra.mxu0 %v2773
        %3266 = vmatpush.msra.mxu0 %v2771
        %3267 = vmatmul.f32.gmra.mxu0 %v3159
        %v3268 = vpop.f32.mrf.mxu0
        %v3269 = vadd.f32 %v3249, %v3268
        %3270 = vdwg.mxu0
        %3271 = vmatpush.msra.mxu0 %v2833
        %3272 = vmatpush.msra.mxu0 %v2831
        %3273 = vmatpush.msra.mxu0 %v2829
        %3274 = vmatpush.msra.mxu0 %v2827
        %3275 = vmatpush.msra.mxu0 %v2825
        %3276 = vmatpush.msra.mxu0 %v2823
        %3277 = vmatpush.msra.mxu0 %v2821
        %3278 = vmatpush.msra.mxu0 %v2819
        %3279 = vmatpush.msra.mxu0 %v2817
        %3280 = vmatpush.msra.mxu0 %v2815
        %3281 = vmatpush.msra.mxu0 %v2813
        %3282 = vmatpush.msra.mxu0 %v2811
        %3283 = vmatpush.msra.mxu0 %v2809
        %3284 = vmatpush.msra.mxu0 %v2807
        %3285 = vmatpush.msra.mxu0 %v2805
        %3286 = vmatpush.msra.mxu0 %v2803
        %3287 = vmatmul.f32.gmra.mxu0 %v3160
        %v3288 = vpop.f32.mrf.mxu0
        %v3289 = vadd.f32 %v3269, %v3288
        %3290 = vdwg.mxu0
        %3291 = vmatpush.msra.mxu0 %v2865
        %3292 = vmatpush.msra.mxu0 %v2863
        %3293 = vmatpush.msra.mxu0 %v2861
        %3294 = vmatpush.msra.mxu0 %v2859
        %3295 = vmatpush.msra.mxu0 %v2857
        %3296 = vmatpush.msra.mxu0 %v2855
        %3297 = vmatpush.msra.mxu0 %v2853
        %3298 = vmatpush.msra.mxu0 %v2851
        %3299 = vmatpush.msra.mxu0 %v2849
        %3300 = vmatpush.msra.mxu0 %v2847
        %3301 = vmatpush.msra.mxu0 %v2845
        %3302 = vmatpush.msra.mxu0 %v2843
        %3303 = vmatpush.msra.mxu0 %v2841
        %3304 = vmatpush.msra.mxu0 %v2839
        %3305 = vmatpush.msra.mxu0 %v2837
        %3306 = vmatpush.msra.mxu0 %v2835
        %3307 = vmatmul.f32.gmra.mxu0 %v3161
        %v3308 = vpop.f32.mrf.mxu0
        %v3309 = vadd.f32 %v3289, %v3308
        %3310 = vdwg.mxu0
        %3311 = vmatpush.msra.mxu0 %v2897
        %3312 = vmatpush.msra.mxu0 %v2895
        %3313 = vmatpush.msra.mxu0 %v2893
        %3314 = vmatpush.msra.mxu0 %v2891
        %3315 = vmatpush.msra.mxu0 %v2889
        %3316 = vmatpush.msra.mxu0 %v2887
        %3317 = vmatpush.msra.mxu0 %v2885
        %3318 = vmatpush.msra.mxu0 %v2883
        %3319 = vmatpush.msra.mxu0 %v2881
        %3320 = vmatpush.msra.mxu0 %v2879
        %3321 = vmatpush.msra.mxu0 %v2877
        %3322 = vmatpush.msra.mxu0 %v2875
        %3323 = vmatpush.msra.mxu0 %v2873
        %3324 = vmatpush.msra.mxu0 %v2871
        %3325 = vmatpush.msra.mxu0 %v2869
        %3326 = vmatpush.msra.mxu0 %v2867
        %3327 = vmatmul.f32.gmra.mxu0 %v3162
        %v3328 = vpop.f32.mrf.mxu0
        %v3329 = vadd.f32 %v3309, %v3328
        %3330 = vdwg.mxu0
        %3331 = vmatpush.msra.mxu0 %v2929
        %3332 = vmatpush.msra.mxu0 %v2927
        %3333 = vmatpush.msra.mxu0 %v2925
        %3334 = vmatpush.msra.mxu0 %v2923
        %3335 = vmatpush.msra.mxu0 %v2921
        %3336 = vmatpush.msra.mxu0 %v2919
        %3337 = vmatpush.msra.mxu0 %v2917
        %3338 = vmatpush.msra.mxu0 %v2915
        %3339 = vmatpush.msra.mxu0 %v2913
        %3340 = vmatpush.msra.mxu0 %v2911
        %3341 = vmatpush.msra.mxu0 %v2909
        %3342 = vmatpush.msra.mxu0 %v2907
        %3343 = vmatpush.msra.mxu0 %v2905
        %3344 = vmatpush.msra.mxu0 %v2903
        %3345 = vmatpush.msra.mxu0 %v2901
        %3346 = vmatpush.msra.mxu0 %v2899
        %3347 = vmatmul.f32.gmra.mxu0 %v3163
        %v3348 = vpop.f32.mrf.mxu0
        %v3349 = vadd.f32 %v3329, %v3348
        %3350 = vdwg.mxu0
        %3351 = vmatpush.msra.mxu0 %v2961
        %3352 = vmatpush.msra.mxu0 %v2959
        %3353 = vmatpush.msra.mxu0 %v2957
        %3354 = vmatpush.msra.mxu0 %v2955
        %3355 = vmatpush.msra.mxu0 %v2953
        %3356 = vmatpush.msra.mxu0 %v2951
        %3357 = vmatpush.msra.mxu0 %v2949
        %3358 = vmatpush.msra.mxu0 %v2947
        %3359 = vmatpush.msra.mxu0 %v2945
        %3360 = vmatpush.msra.mxu0 %v2943
        %3361 = vmatpush.msra.mxu0 %v2941
        %3362 = vmatpush.msra.mxu0 %v2939
        %3363 = vmatpush.msra.mxu0 %v2937
        %3364 = vmatpush.msra.mxu0 %v2935
        %3365 = vmatpush.msra.mxu0 %v2933
        %3366 = vmatpush.msra.mxu0 %v2931
        %3367 = vmatmul.f32.gmra.mxu0 %v3164
        %v3368 = vpop.f32.mrf.mxu0
        %v3369 = vadd.f32 %v3349, %v3368
        %3370 = vdwg.mxu0
        %3371 = vmatpush.msra.mxu0 %v2993
        %3372 = vmatpush.msra.mxu0 %v2991
        %3373 = vmatpush.msra.mxu0 %v2989
        %3374 = vmatpush.msra.mxu0 %v2987
        %3375 = vmatpush.msra.mxu0 %v2985
        %3376 = vmatpush.msra.mxu0 %v2983
        %3377 = vmatpush.msra.mxu0 %v2981
        %3378 = vmatpush.msra.mxu0 %v2979
        %3379 = vmatpush.msra.mxu0 %v2977
        %3380 = vmatpush.msra.mxu0 %v2975
        %3381 = vmatpush.msra.mxu0 %v2973
        %3382 = vmatpush.msra.mxu0 %v2971
        %3383 = vmatpush.msra.mxu0 %v2969
        %3384 = vmatpush.msra.mxu0 %v2967
        %3385 = vmatpush.msra.mxu0 %v2965
        %3386 = vmatpush.msra.mxu0 %v2963
        %3387 = vmatmul.f32.gmra.mxu0 %v3165
        %v3388 = vpop.f32.mrf.mxu0
        %v3389 = vadd.f32 %v3369, %v3388
        %3390 = vdwg.mxu0
        %3391 = vmatpush.msra.mxu0 %v3025
        %3392 = vmatpush.msra.mxu0 %v3023
        %3393 = vmatpush.msra.mxu0 %v3021
        %3394 = vmatpush.msra.mxu0 %v3019
        %3395 = vmatpush.msra.mxu0 %v3017
        %3396 = vmatpush.msra.mxu0 %v3015
        %3397 = vmatpush.msra.mxu0 %v3013
        %3398 = vmatpush.msra.mxu0 %v3011
        %3399 = vmatpush.msra.mxu0 %v3009
        %3400 = vmatpush.msra.mxu0 %v3007
        %3401 = vmatpush.msra.mxu0 %v3005
        %3402 = vmatpush.msra.mxu0 %v3003
        %3403 = vmatpush.msra.mxu0 %v3001
        %3404 = vmatpush.msra.mxu0 %v2999
        %3405 = vmatpush.msra.mxu0 %v2997
        %3406 = vmatpush.msra.mxu0 %v2995
        %3407 = vmatmul.f32.gmra.mxu0 %v3166
        %v3408 = vpop.f32.mrf.mxu0
        %v3409 = vadd.f32 %v3389, %v3408
        %3410 = vdwg.mxu0
        %3411 = vmatpush.msra.mxu0 %v3057
        %3412 = vmatpush.msra.mxu0 %v3055
        %3413 = vmatpush.msra.mxu0 %v3053
        %3414 = vmatpush.msra.mxu0 %v3051
        %3415 = vmatpush.msra.mxu0 %v3049
        %3416 = vmatpush.msra.mxu0 %v3047
        %3417 = vmatpush.msra.mxu0 %v3045
        %3418 = vmatpush.msra.mxu0 %v3043
        %3419 = vmatpush.msra.mxu0 %v3041
        %3420 = vmatpush.msra.mxu0 %v3039
        %3421 = vmatpush.msra.mxu0 %v3037
        %3422 = vmatpush.msra.mxu0 %v3035
        %3423 = vmatpush.msra.mxu0 %v3033
        %3424 = vmatpush.msra.mxu0 %v3031
        %3425 = vmatpush.msra.mxu0 %v3029
        %3426 = vmatpush.msra.mxu0 %v3027
        %3427 = vmatmul.f32.gmra.mxu0 %v3167
        %v3428 = vpop.f32.mrf.mxu0
        %v3429 = vadd.f32 %v3409, %v3428
        %3430 = vdwg.mxu0
        %3431 = vmatpush.msra.mxu0 %v3089
        %3432 = vmatpush.msra.mxu0 %v3087
        %3433 = vmatpush.msra.mxu0 %v3085
        %3434 = vmatpush.msra.mxu0 %v3083
        %3435 = vmatpush.msra.mxu0 %v3081
        %3436 = vmatpush.msra.mxu0 %v3079
        %3437 = vmatpush.msra.mxu0 %v3077
        %3438 = vmatpush.msra.mxu0 %v3075
        %3439 = vmatpush.msra.mxu0 %v3073
        %3440 = vmatpush.msra.mxu0 %v3071
        %3441 = vmatpush.msra.mxu0 %v3069
        %3442 = vmatpush.msra.mxu0 %v3067
        %3443 = vmatpush.msra.mxu0 %v3065
        %3444 = vmatpush.msra.mxu0 %v3063
        %3445 = vmatpush.msra.mxu0 %v3061
        %3446 = vmatpush.msra.mxu0 %v3059
        %3447 = vmatmul.f32.gmra.mxu0 %v3168
        %v3448 = vpop.f32.mrf.mxu0
        %v3449 = vadd.f32 %v3429, %v3448
        %3450 = vdwg.mxu0
        %3451 = vmatpush.msra.mxu0 %v3121
        %3452 = vmatpush.msra.mxu0 %v3119
        %3453 = vmatpush.msra.mxu0 %v3117
        %3454 = vmatpush.msra.mxu0 %v3115
        %3455 = vmatpush.msra.mxu0 %v3113
        %3456 = vmatpush.msra.mxu0 %v3111
        %3457 = vmatpush.msra.mxu0 %v3109
        %3458 = vmatpush.msra.mxu0 %v3107
        %3459 = vmatpush.msra.mxu0 %v3105
        %3460 = vmatpush.msra.mxu0 %v3103
        %3461 = vmatpush.msra.mxu0 %v3101
        %3462 = vmatpush.msra.mxu0 %v3099
        %3463 = vmatpush.msra.mxu0 %v3097
        %3464 = vmatpush.msra.mxu0 %v3095
        %3465 = vmatpush.msra.mxu0 %v3093
        %3466 = vmatpush.msra.mxu0 %v3091
        %3467 = vmatmul.f32.gmra.mxu0 %v3169
        %v3468 = vpop.f32.mrf.mxu0
        %v3469 = vadd.f32 %v3449, %v3468
        %3470 = vdwg.mxu0
        %3471 = vmatpush.msra.mxu0 %v3153
        %3472 = vmatpush.msra.mxu0 %v3151
        %3473 = vmatpush.msra.mxu0 %v3149
        %3474 = vmatpush.msra.mxu0 %v3147
        %3475 = vmatpush.msra.mxu0 %v3145
        %3476 = vmatpush.msra.mxu0 %v3143
        %3477 = vmatpush.msra.mxu0 %v3141
        %3478 = vmatpush.msra.mxu0 %v3139
        %3479 = vmatpush.msra.mxu0 %v3137
        %3480 = vmatpush.msra.mxu0 %v3135
        %3481 = vmatpush.msra.mxu0 %v3133
        %3482 = vmatpush.msra.mxu0 %v3131
        %3483 = vmatpush.msra.mxu0 %v3129
        %3484 = vmatpush.msra.mxu0 %v3127
        %3485 = vmatpush.msra.mxu0 %v3125
        %3486 = vmatpush.msra.mxu0 %v3123
        %3487 = vmatmul.f32.gmra.mxu0 %v3170
        %v3488 = vpop.f32.mrf.mxu0
        %v3489 = vadd.f32 %v3469, %v3488
        %3490 = vdwg.mxu0
        %3491 = vmatpush.msra.mxu0 %v2674
        %3492 = vmatpush.msra.mxu0 %v2672
        %3493 = vmatpush.msra.mxu0 %v2670
        %3494 = vmatpush.msra.mxu0 %v2668
        %3495 = vmatpush.msra.mxu0 %v2666
        %3496 = vmatpush.msra.mxu0 %v2664
        %3497 = vmatpush.msra.mxu0 %v2662
        %3498 = vmatpush.msra.mxu0 %v2660
        %3499 = vmatpush.msra.mxu0 %v2658
        %3500 = vmatpush.msra.mxu0 %v2656
        %3501 = vmatpush.msra.mxu0 %v2654
        %3502 = vmatpush.msra.mxu0 %v2652
        %3503 = vmatpush.msra.mxu0 %v2650
        %3504 = vmatpush.msra.mxu0 %v2648
        %3505 = vmatpush.msra.mxu0 %v2646
        %3506 = vmatpush.msra.mxu0 %v2644
        %3507 = vmatmul.f32.gmra.mxu0 %v3155
        %v3508 = vpop.f32.mrf.mxu0
        %v3509 = vadd.f32 0.0, %v3508
        %3510 = vdwg.mxu0
        %3511 = vmatpush.msra.mxu0 %v2706
        %3512 = vmatpush.msra.mxu0 %v2704
        %3513 = vmatpush.msra.mxu0 %v2702
        %3514 = vmatpush.msra.mxu0 %v2700
        %3515 = vmatpush.msra.mxu0 %v2698
        %3516 = vmatpush.msra.mxu0 %v2696
        %3517 = vmatpush.msra.mxu0 %v2694
        %3518 = vmatpush.msra.mxu0 %v2692
        %3519 = vmatpush.msra.mxu0 %v2690
        %3520 = vmatpush.msra.mxu0 %v2688
        %3521 = vmatpush.msra.mxu0 %v2686
        %3522 = vmatpush.msra.mxu0 %v2684
        %3523 = vmatpush.msra.mxu0 %v2682
        %3524 = vmatpush.msra.mxu0 %v2680
        %3525 = vmatpush.msra.mxu0 %v2678
        %3526 = vmatpush.msra.mxu0 %v2676
        %3527 = vmatmul.f32.gmra.mxu0 %v3156
        %v3528 = vpop.f32.mrf.mxu0
        %v3529 = vadd.f32 %v3509, %v3528
        %3530 = vdwg.mxu0
        %3531 = vmatpush.msra.mxu0 %v2738
        %3532 = vmatpush.msra.mxu0 %v2736
        %3533 = vmatpush.msra.mxu0 %v2734
        %3534 = vmatpush.msra.mxu0 %v2732
        %3535 = vmatpush.msra.mxu0 %v2730
        %3536 = vmatpush.msra.mxu0 %v2728
        %3537 = vmatpush.msra.mxu0 %v2726
        %3538 = vmatpush.msra.mxu0 %v2724
        %3539 = vmatpush.msra.mxu0 %v2722
        %3540 = vmatpush.msra.mxu0 %v2720
        %3541 = vmatpush.msra.mxu0 %v2718
        %3542 = vmatpush.msra.mxu0 %v2716
        %3543 = vmatpush.msra.mxu0 %v2714
        %3544 = vmatpush.msra.mxu0 %v2712
        %3545 = vmatpush.msra.mxu0 %v2710
        %3546 = vmatpush.msra.mxu0 %v2708
        %3547 = vmatmul.f32.gmra.mxu0 %v3157
        %v3548 = vpop.f32.mrf.mxu0
        %v3549 = vadd.f32 %v3529, %v3548
        %3550 = vdwg.mxu0
        %3551 = vmatpush.msra.mxu0 %v2770
        %3552 = vmatpush.msra.mxu0 %v2768
        %3553 = vmatpush.msra.mxu0 %v2766
        %3554 = vmatpush.msra.mxu0 %v2764
        %3555 = vmatpush.msra.mxu0 %v2762
        %3556 = vmatpush.msra.mxu0 %v2760
        %3557 = vmatpush.msra.mxu0 %v2758
        %3558 = vmatpush.msra.mxu0 %v2756
        %3559 = vmatpush.msra.mxu0 %v2754
        %3560 = vmatpush.msra.mxu0 %v2752
        %3561 = vmatpush.msra.mxu0 %v2750
        %3562 = vmatpush.msra.mxu0 %v2748
        %3563 = vmatpush.msra.mxu0 %v2746
        %3564 = vmatpush.msra.mxu0 %v2744
        %3565 = vmatpush.msra.mxu0 %v2742
        %3566 = vmatpush.msra.mxu0 %v2740
        %3567 = vmatmul.f32.gmra.mxu0 %v3158
        %v3568 = vpop.f32.mrf.mxu0
        %v3569 = vadd.f32 %v3549, %v3568
        %3570 = vdwg.mxu0
        %3571 = vmatpush.msra.mxu0 %v2802
        %3572 = vmatpush.msra.mxu0 %v2800
        %3573 = vmatpush.msra.mxu0 %v2798
        %3574 = vmatpush.msra.mxu0 %v2796
        %3575 = vmatpush.msra.mxu0 %v2794
        %3576 = vmatpush.msra.mxu0 %v2792
        %3577 = vmatpush.msra.mxu0 %v2790
        %3578 = vmatpush.msra.mxu0 %v2788
        %3579 = vmatpush.msra.mxu0 %v2786
        %3580 = vmatpush.msra.mxu0 %v2784
        %3581 = vmatpush.msra.mxu0 %v2782
        %3582 = vmatpush.msra.mxu0 %v2780
        %3583 = vmatpush.msra.mxu0 %v2778
        %3584 = vmatpush.msra.mxu0 %v2776
        %3585 = vmatpush.msra.mxu0 %v2774
        %3586 = vmatpush.msra.mxu0 %v2772
        %3587 = vmatmul.f32.gmra.mxu0 %v3159
        %v3588 = vpop.f32.mrf.mxu0
        %v3589 = vadd.f32 %v3569, %v3588
        %3590 = vdwg.mxu0
        %3591 = vmatpush.msra.mxu0 %v2834
        %3592 = vmatpush.msra.mxu0 %v2832
        %3593 = vmatpush.msra.mxu0 %v2830
        %3594 = vmatpush.msra.mxu0 %v2828
        %3595 = vmatpush.msra.mxu0 %v2826
        %3596 = vmatpush.msra.mxu0 %v2824
        %3597 = vmatpush.msra.mxu0 %v2822
        %3598 = vmatpush.msra.mxu0 %v2820
        %3599 = vmatpush.msra.mxu0 %v2818
        %3600 = vmatpush.msra.mxu0 %v2816
        %3601 = vmatpush.msra.mxu0 %v2814
        %3602 = vmatpush.msra.mxu0 %v2812
        %3603 = vmatpush.msra.mxu0 %v2810
        %3604 = vmatpush.msra.mxu0 %v2808
        %3605 = vmatpush.msra.mxu0 %v2806
        %3606 = vmatpush.msra.mxu0 %v2804
        %3607 = vmatmul.f32.gmra.mxu0 %v3160
        %v3608 = vpop.f32.mrf.mxu0
        %v3609 = vadd.f32 %v3589, %v3608
        %3610 = vdwg.mxu0
        %3611 = vmatpush.msra.mxu0 %v2866
        %3612 = vmatpush.msra.mxu0 %v2864
        %3613 = vmatpush.msra.mxu0 %v2862
        %3614 = vmatpush.msra.mxu0 %v2860
        %3615 = vmatpush.msra.mxu0 %v2858
        %3616 = vmatpush.msra.mxu0 %v2856
        %3617 = vmatpush.msra.mxu0 %v2854
        %3618 = vmatpush.msra.mxu0 %v2852
        %3619 = vmatpush.msra.mxu0 %v2850
        %3620 = vmatpush.msra.mxu0 %v2848
        %3621 = vmatpush.msra.mxu0 %v2846
        %3622 = vmatpush.msra.mxu0 %v2844
        %3623 = vmatpush.msra.mxu0 %v2842
        %3624 = vmatpush.msra.mxu0 %v2840
        %3625 = vmatpush.msra.mxu0 %v2838
        %3626 = vmatpush.msra.mxu0 %v2836
        %3627 = vmatmul.f32.gmra.mxu0 %v3161
        %v3628 = vpop.f32.mrf.mxu0
        %v3629 = vadd.f32 %v3609, %v3628
        %3630 = vdwg.mxu0
        %3631 = vmatpush.msra.mxu0 %v2898
        %3632 = vmatpush.msra.mxu0 %v2896
        %3633 = vmatpush.msra.mxu0 %v2894
        %3634 = vmatpush.msra.mxu0 %v2892
        %3635 = vmatpush.msra.mxu0 %v2890
        %3636 = vmatpush.msra.mxu0 %v2888
        %3637 = vmatpush.msra.mxu0 %v2886
        %3638 = vmatpush.msra.mxu0 %v2884
        %3639 = vmatpush.msra.mxu0 %v2882
        %3640 = vmatpush.msra.mxu0 %v2880
        %3641 = vmatpush.msra.mxu0 %v2878
        %3642 = vmatpush.msra.mxu0 %v2876
        %3643 = vmatpush.msra.mxu0 %v2874
        %3644 = vmatpush.msra.mxu0 %v2872
        %3645 = vmatpush.msra.mxu0 %v2870
        %3646 = vmatpush.msra.mxu0 %v2868
        %3647 = vmatmul.f32.gmra.mxu0 %v3162
        %v3648 = vpop.f32.mrf.mxu0
        %v3649 = vadd.f32 %v3629, %v3648
        %3650 = vdwg.mxu0
        %3651 = vmatpush.msra.mxu0 %v2930
        %3652 = vmatpush.msra.mxu0 %v2928
        %3653 = vmatpush.msra.mxu0 %v2926
        %3654 = vmatpush.msra.mxu0 %v2924
        %3655 = vmatpush.msra.mxu0 %v2922
        %3656 = vmatpush.msra.mxu0 %v2920
        %3657 = vmatpush.msra.mxu0 %v2918
        %3658 = vmatpush.msra.mxu0 %v2916
        %3659 = vmatpush.msra.mxu0 %v2914
        %3660 = vmatpush.msra.mxu0 %v2912
        %3661 = vmatpush.msra.mxu0 %v2910
        %3662 = vmatpush.msra.mxu0 %v2908
        %3663 = vmatpush.msra.mxu0 %v2906
        %3664 = vmatpush.msra.mxu0 %v2904
        %3665 = vmatpush.msra.mxu0 %v2902
        %3666 = vmatpush.msra.mxu0 %v2900
        %3667 = vmatmul.f32.gmra.mxu0 %v3163
        %v3668 = vpop.f32.mrf.mxu0
        %v3669 = vadd.f32 %v3649, %v3668
        %3670 = vdwg.mxu0
        %3671 = vmatpush.msra.mxu0 %v2962
        %3672 = vmatpush.msra.mxu0 %v2960
        %3673 = vmatpush.msra.mxu0 %v2958
        %3674 = vmatpush.msra.mxu0 %v2956
        %3675 = vmatpush.msra.mxu0 %v2954
        %3676 = vmatpush.msra.mxu0 %v2952
        %3677 = vmatpush.msra.mxu0 %v2950
        %3678 = vmatpush.msra.mxu0 %v2948
        %3679 = vmatpush.msra.mxu0 %v2946
        %3680 = vmatpush.msra.mxu0 %v2944
        %3681 = vmatpush.msra.mxu0 %v2942
        %3682 = vmatpush.msra.mxu0 %v2940
        %3683 = vmatpush.msra.mxu0 %v2938
        %3684 = vmatpush.msra.mxu0 %v2936
        %3685 = vmatpush.msra.mxu0 %v2934
        %3686 = vmatpush.msra.mxu0 %v2932
        %3687 = vmatmul.f32.gmra.mxu0 %v3164
        %v3688 = vpop.f32.mrf.mxu0
        %v3689 = vadd.f32 %v3669, %v3688
        %3690 = vdwg.mxu0
        %3691 = vmatpush.msra.mxu0 %v2994
        %3692 = vmatpush.msra.mxu0 %v2992
        %3693 = vmatpush.msra.mxu0 %v2990
        %3694 = vmatpush.msra.mxu0 %v2988
        %3695 = vmatpush.msra.mxu0 %v2986
        %3696 = vmatpush.msra.mxu0 %v2984
        %3697 = vmatpush.msra.mxu0 %v2982
        %3698 = vmatpush.msra.mxu0 %v2980
        %3699 = vmatpush.msra.mxu0 %v2978
        %3700 = vmatpush.msra.mxu0 %v2976
        %3701 = vmatpush.msra.mxu0 %v2974
        %3702 = vmatpush.msra.mxu0 %v2972
        %3703 = vmatpush.msra.mxu0 %v2970
        %3704 = vmatpush.msra.mxu0 %v2968
        %3705 = vmatpush.msra.mxu0 %v2966
        %3706 = vmatpush.msra.mxu0 %v2964
        %3707 = vmatmul.f32.gmra.mxu0 %v3165
        %v3708 = vpop.f32.mrf.mxu0
        %v3709 = vadd.f32 %v3689, %v3708
        %3710 = vdwg.mxu0
        %3711 = vmatpush.msra.mxu0 %v3026
        %3712 = vmatpush.msra.mxu0 %v3024
        %3713 = vmatpush.msra.mxu0 %v3022
        %3714 = vmatpush.msra.mxu0 %v3020
        %3715 = vmatpush.msra.mxu0 %v3018
        %3716 = vmatpush.msra.mxu0 %v3016
        %3717 = vmatpush.msra.mxu0 %v3014
        %3718 = vmatpush.msra.mxu0 %v3012
        %3719 = vmatpush.msra.mxu0 %v3010
        %3720 = vmatpush.msra.mxu0 %v3008
        %3721 = vmatpush.msra.mxu0 %v3006
        %3722 = vmatpush.msra.mxu0 %v3004
        %3723 = vmatpush.msra.mxu0 %v3002
        %3724 = vmatpush.msra.mxu0 %v3000
        %3725 = vmatpush.msra.mxu0 %v2998
        %3726 = vmatpush.msra.mxu0 %v2996
        %3727 = vmatmul.f32.gmra.mxu0 %v3166
        %v3728 = vpop.f32.mrf.mxu0
        %v3729 = vadd.f32 %v3709, %v3728
        %3730 = vdwg.mxu0
        %3731 = vmatpush.msra.mxu0 %v3058
        %3732 = vmatpush.msra.mxu0 %v3056
        %3733 = vmatpush.msra.mxu0 %v3054
        %3734 = vmatpush.msra.mxu0 %v3052
        %3735 = vmatpush.msra.mxu0 %v3050
        %3736 = vmatpush.msra.mxu0 %v3048
        %3737 = vmatpush.msra.mxu0 %v3046
        %3738 = vmatpush.msra.mxu0 %v3044
        %3739 = vmatpush.msra.mxu0 %v3042
        %3740 = vmatpush.msra.mxu0 %v3040
        %3741 = vmatpush.msra.mxu0 %v3038
        %3742 = vmatpush.msra.mxu0 %v3036
        %3743 = vmatpush.msra.mxu0 %v3034
        %3744 = vmatpush.msra.mxu0 %v3032
        %3745 = vmatpush.msra.mxu0 %v3030
        %3746 = vmatpush.msra.mxu0 %v3028
        %3747 = vmatmul.f32.gmra.mxu0 %v3167
        %v3748 = vpop.f32.mrf.mxu0
        %v3749 = vadd.f32 %v3729, %v3748
        %3750 = vdwg.mxu0
        %3751 = vmatpush.msra.mxu0 %v3090
        %3752 = vmatpush.msra.mxu0 %v3088
        %3753 = vmatpush.msra.mxu0 %v3086
        %3754 = vmatpush.msra.mxu0 %v3084
        %3755 = vmatpush.msra.mxu0 %v3082
        %3756 = vmatpush.msra.mxu0 %v3080
        %3757 = vmatpush.msra.mxu0 %v3078
        %3758 = vmatpush.msra.mxu0 %v3076
        %3759 = vmatpush.msra.mxu0 %v3074
        %3760 = vmatpush.msra.mxu0 %v3072
        %3761 = vmatpush.msra.mxu0 %v3070
        %3762 = vmatpush.msra.mxu0 %v3068
        %3763 = vmatpush.msra.mxu0 %v3066
        %3764 = vmatpush.msra.mxu0 %v3064
        %3765 = vmatpush.msra.mxu0 %v3062
        %3766 = vmatpush.msra.mxu0 %v3060
        %3767 = vmatmul.f32.gmra.mxu0 %v3168
        %v3768 = vpop.f32.mrf.mxu0
        %v3769 = vadd.f32 %v3749, %v3768
        %3770 = vdwg.mxu0
        %3771 = vmatpush.msra.mxu0 %v3122
        %3772 = vmatpush.msra.mxu0 %v3120
        %3773 = vmatpush.msra.mxu0 %v3118
        %3774 = vmatpush.msra.mxu0 %v3116
        %3775 = vmatpush.msra.mxu0 %v3114
        %3776 = vmatpush.msra.mxu0 %v3112
        %3777 = vmatpush.msra.mxu0 %v3110
        %3778 = vmatpush.msra.mxu0 %v3108
        %3779 = vmatpush.msra.mxu0 %v3106
        %3780 = vmatpush.msra.mxu0 %v3104
        %3781 = vmatpush.msra.mxu0 %v3102
        %3782 = vmatpush.msra.mxu0 %v3100
        %3783 = vmatpush.msra.mxu0 %v3098
        %3784 = vmatpush.msra.mxu0 %v3096
        %3785 = vmatpush.msra.mxu0 %v3094
        %3786 = vmatpush.msra.mxu0 %v3092
        %3787 = vmatmul.f32.gmra.mxu0 %v3169
        %v3788 = vpop.f32.mrf.mxu0
        %v3789 = vadd.f32 %v3769, %v3788
        %3790 = vdwg.mxu0
        %3791 = vmatpush.msra.mxu0 %v3154
        %3792 = vmatpush.msra.mxu0 %v3152
        %3793 = vmatpush.msra.mxu0 %v3150
        %3794 = vmatpush.msra.mxu0 %v3148
        %3795 = vmatpush.msra.mxu0 %v3146
        %3796 = vmatpush.msra.mxu0 %v3144
        %3797 = vmatpush.msra.mxu0 %v3142
        %3798 = vmatpush.msra.mxu0 %v3140
        %3799 = vmatpush.msra.mxu0 %v3138
        %3800 = vmatpush.msra.mxu0 %v3136
        %3801 = vmatpush.msra.mxu0 %v3134
        %3802 = vmatpush.msra.mxu0 %v3132
        %3803 = vmatpush.msra.mxu0 %v3130
        %3804 = vmatpush.msra.mxu0 %v3128
        %3805 = vmatpush.msra.mxu0 %v3126
        %3806 = vmatpush.msra.mxu0 %v3124
        %3807 = vmatmul.f32.gmra.mxu0 %v3170
        %v3808 = vpop.f32.mrf.mxu0
        %v3809 = vadd.f32 %v3789, %v3808
        %3810 = vdwg.mxu0
        %v3811 = vld [vmem:[%s3] sm:$0xff]
        %v3812 = vld [vmem:[%s3 + $0x8] sm:$0xff]
        %v3813 = vld [vmem:[%s3 + $0x10] sm:$0xff]
        %v3814 = vld [vmem:[%s3 + $0x18] sm:$0xff]
        %v3815 = vld [vmem:[%s3 + $0x20] sm:$0xff]
        %v3816 = vld [vmem:[%s3 + $0x28] sm:$0xff]
        %v3817 = vld [vmem:[%s3 + $0x30] sm:$0xff]
        %v3818 = vld [vmem:[%s3 + $0x38] sm:$0xff]
        %v3819 = vld [vmem:[%s3 + $0x40] sm:$0xff]
        %v3820 = vld [vmem:[%s3 + $0x48] sm:$0xff]
        %v3821 = vld [vmem:[%s3 + $0x50] sm:$0xff]
        %v3822 = vld [vmem:[%s3 + $0x58] sm:$0xff]
        %v3823 = vld [vmem:[%s3 + $0x60] sm:$0xff]
        %v3824 = vld [vmem:[%s3 + $0x68] sm:$0xff]
        %v3825 = vld [vmem:[%s3 + $0x70] sm:$0xff]
        %v3826 = vld [vmem:[%s3 + $0x78] sm:$0xff]
        %v3827 = vld [vmem:[%s3 + $0x80] sm:$0xff]
        %v3828 = vld [vmem:[%s3 + $0x88] sm:$0xff]
        %v3829 = vld [vmem:[%s3 + $0x90] sm:$0xff]
        %v3830 = vld [vmem:[%s3 + $0x98] sm:$0xff]
        %v3831 = vld [vmem:[%s3 + $0xa0] sm:$0xff]
        %v3832 = vld [vmem:[%s3 + $0xa8] sm:$0xff]
        %v3833 = vld [vmem:[%s3 + $0xb0] sm:$0xff]
        %v3834 = vld [vmem:[%s3 + $0xb8] sm:$0xff]
        %v3835 = vld [vmem:[%s3 + $0xc0] sm:$0xff]
        %v3836 = vld [vmem:[%s3 + $0xc8] sm:$0xff]
        %v3837 = vld [vmem:[%s3 + $0xd0] sm:$0xff]
        %v3838 = vld [vmem:[%s3 + $0xd8] sm:$0xff]
        %v3839 = vld [vmem:[%s3 + $0xe0] sm:$0xff]
        %v3840 = vld [vmem:[%s3 + $0xe8] sm:$0xff]
        %v3841 = vld [vmem:[%s3 + $0xf0] sm:$0xff]
        %v3842 = vld [vmem:[%s3 + $0xf8] sm:$0xff]
        %v3843 = vld [vmem:[%s4] sm:$0x1]
        %v3845 = vperm.slane %v3843, 0
        %3847 = vmatpush.msra.mxu0 %v3826
        %3848 = vmatpush.msra.mxu0 %v3825
        %3849 = vmatpush.msra.mxu0 %v3824
        %3850 = vmatpush.msra.mxu0 %v3823
        %3851 = vmatpush.msra.mxu0 %v3822
        %3852 = vmatpush.msra.mxu0 %v3821
        %3853 = vmatpush.msra.mxu0 %v3820
        %3854 = vmatpush.msra.mxu0 %v3819
        %3855 = vmatpush.msra.mxu0 %v3818
        %3856 = vmatpush.msra.mxu0 %v3817
        %3857 = vmatpush.msra.mxu0 %v3816
        %3858 = vmatpush.msra.mxu0 %v3815
        %3859 = vmatpush.msra.mxu0 %v3814
        %3860 = vmatpush.msra.mxu0 %v3813
        %3861 = vmatpush.msra.mxu0 %v3812
        %3862 = vmatpush.msra.mxu0 %v3811
        %3863 = vmatmul.f32.gmra.mxu0 %v3489
        %v3864 = vpop.f32.mrf.mxu0
        %v3865 = vadd.f32 %v3845, %v3864
        %3866 = vdwg.mxu0
        %3867 = vmatpush.msra.mxu0 %v3842
        %3868 = vmatpush.msra.mxu0 %v3841
        %3869 = vmatpush.msra.mxu0 %v3840
        %3870 = vmatpush.msra.mxu0 %v3839
        %3871 = vmatpush.msra.mxu0 %v3838
        %3872 = vmatpush.msra.mxu0 %v3837
        %3873 = vmatpush.msra.mxu0 %v3836
        %3874 = vmatpush.msra.mxu0 %v3835
        %3875 = vmatpush.msra.mxu0 %v3834
        %3876 = vmatpush.msra.mxu0 %v3833
        %3877 = vmatpush.msra.mxu0 %v3832
        %3878 = vmatpush.msra.mxu0 %v3831
        %3879 = vmatpush.msra.mxu0 %v3830
        %3880 = vmatpush.msra.mxu0 %v3829
        %3881 = vmatpush.msra.mxu0 %v3828
        %3882 = vmatpush.msra.mxu0 %v3827
        %3883 = vmatmul.f32.gmra.mxu0 %v3809
        %v3884 = vpop.f32.mrf.mxu0
        %v3885 = vadd.f32 %v3865, %v3884
        %3886 = vdwg.mxu0
        %3887 = vst [vmem:[%s218] sm:$0xff] %v3885
        %s3888 = sand.u32 %s137, 1
        %s3889 = scalar_lea.sflag [#allocation3], %s3888
        %s3890 = sand.u32 %s137, 1
        %s3891 = smul.addr %s3890, 8
        %s3892 = scalar_lea.vmem [#allocation2], %s3891
        // Predicated region
        $region41: #{classification_network_forward.1} parent=39 // pred_check
          %p3893 = pneg %p147
        $region42: #{classification_network_forward.1} parent=39 // pred_check_branch
          %3895 = sbr.rel (%p3893) target = $region44
        $region43: #{classification_network_forward.1} parent=39 // pred_region
          %3897 = vsyncadd %s3889, 0
          %s3898 = smul.addr %s19, 8
          %s3899 = scalar_lea.hbm %s5, %s3898
          %s3901 = sshll.u32 %s3892, 4
          %s3902 = int_to_ptr.vmem [resolvable:$true] %s3901
          %s3903 = sshll.u32 %s3899, 4
          %s3904 = int_to_ptr.hbm [resolvable:$true] %s3903
          %3906 = dma.vmem_to_hbm [thread:$0]  %s3902, 128, %s3904, %s3889
        $region44: #{classification_network_forward.1} parent=39 // pred_fallthru
          _
      $region40: #{classification_network_forward.1} parent=5 // pred_fallthru
        _
      %p3907 = scmp.le.s32.totalorder 2, %s14
      // Predicated region
      $region45: #{classification_network_forward.1} parent=5 // pred_check
        %p3908 = pneg %p3907
      $region46: #{classification_network_forward.1} parent=5 // pred_check_branch
        %3910 = sbr.rel (%p3908) target = $region48
      $region47: #{classification_network_forward.1} parent=5 // pred_region
        %s3911 = ssub.s32 %s14, 2
        // Predicated region
        $region49: #{classification_network_forward.1} parent=47 // pred_check
          %p3912 = pneg %p153
        $region50: #{classification_network_forward.1} parent=47 // pred_check_branch
          %3914 = sbr.rel (%p3912) target = $region52
        $region51: #{classification_network_forward.1} parent=47 // pred_region
          %s3915 = sand.u32 %s138, 1
          %s3916 = scalar_lea.sflag [#allocation3], %s3915
          %s3917 = sand.u32 %s138, 1
          %s3918 = smul.addr %s3917, 8
          %s3919 = scalar_lea.vmem [#allocation2], %s3918
          %3921 = dma.done %s3916, 128
        $region52: #{classification_network_forward.1} parent=47 // pred_fallthru
          _
      $region48: #{classification_network_forward.1} parent=5 // pred_fallthru
        _
    $region6: #{classification_network_forward.1} parent=1 // loop_footer
      %s18 = sadd.s32 1, %s14
    $region7: #{classification_network_forward.1} parent=1 // loop_footer_branch
      %13 = sbr.rel target = $region3
    $region8: #{classification_network_forward.1} parent=1 // loop_exit
      _
    %3922 = vsyncpa [#allocation3], 1
    %s3923 = scalar_lea.sflag [#allocation3], 1
    %3924 = vsyncpa %s3923, 1

</llo_original>
